<compile_context>
chip_gen: v7x
topology: tpu7x:2x2x1
jax: 0.10.0
libtpu: 0.0.40
codegen_flags: <defaults>
</compile_context>

<pallas_src>
import functools

import jax
import jax.numpy as jnp
import numpy as np
from jax.experimental import pallas as pl
from jax.experimental.pallas import tpu as pltpu

LANES = 128


def _round_up(x, m):
    return -(-x // m) * m


def _tree_sum(parts):
    """Balanced adder tree over a list of equally-shaped arrays."""
    parts = list(parts)
    while len(parts) > 1:
        nxt = [parts[i] + parts[i + 1] for i in range(0, len(parts) - 1, 2)]
        if len(parts) % 2:
            nxt.append(parts[-1])
        parts = nxt
    return parts[0]


def _make_kernel(B, N, E, F, Kp, off):
    """Build the kernel with all static sizes / slab offsets closed over."""
    E2 = 2 * E
    f32 = jnp.float32

    def kernel(io_ref, par_ref, sc_ref, out_ref):
        # io_ref : (B, 2*LANES) VMEM   [0:Kp) = z(+1,0-pad), [128:128+E) = cond
        # par_ref: (rows, 128)  VMEM   packed parameter slab
        # sc_ref : (N*N+1,)     SMEM   flattened adj followed by PReLU alpha
        # out_ref: (B, F)       VMEM
        alpha = sc_ref[N * N]

        def leaky(v):                     # LeakyReLU(0.1) -- module uses 0.1
            return jnp.where(v >= 0, v, 0.1 * v)

        def prelu(v):                     # PReLU, single shared slope
            return jnp.where(v >= 0, v, alpha * v)

        z = io_ref[:, 0:Kp]               # (B, Kp)  bias column folded via 1s
        cond = io_ref[:, LANES:LANES + E]  # (B, E)

        # ---- rand_to_proj + LeakyReLU, emitted per node straight into the
        #      node-major rows (row n*B + b). ----
        pieces = []
        for n in range(N - 1):
            wp_n = par_ref[off["wp"] + n * Kp: off["wp"] + (n + 1) * Kp, 0:E]
            pieces.append(leaky(jnp.dot(z, wp_n, preferred_element_type=f32)))
        pieces.append(cond)                               # condition node last
        x0 = jnp.concatenate(pieces, axis=0)              # (N*B, E)

        x_init = x0                                       # skip tensors
        x_init2 = jnp.concatenate([x0, x0], axis=-1)      # == torch repeat(1,1,2)

        # ---- GC weights / biases: static, sublane-aligned ref slices ----
        w1 = par_ref[off["w1"]:off["w1"] + E, 0:E2]
        w2 = par_ref[off["w2"]:off["w2"] + E2, 0:E2]
        w3 = par_ref[off["w3"]:off["w3"] + E2, 0:E]
        b1 = par_ref[off["b"] + 0:off["b"] + 1, 0:E2]
        b2 = par_ref[off["b"] + 1:off["b"] + 2, 0:E2]
        b3 = par_ref[off["b"] + 2:off["b"] + 3, 0:E]
        bf = par_ref[off["b"] + 3:off["b"] + 4, 0:F]

        def node_mix(sup):
            # kron-free (adj (x) I_B) @ sup:
            #   Y[n*B+b, :] = sum_m adj[n, m] * sup[m*B+b, :]
            # Contiguous (B, C) node blocks, SMEM scalar broadcasts, add tree.
            blocks = [sup[m * B:(m + 1) * B, :] for m in range(N)]
            rows = [_tree_sum([sc_ref[n * N + m] * blocks[m] for m in range(N)])
                    for n in range(N)]
            return jnp.concatenate(rows, axis=0)          # node-major again

        def gconv(x, w, b):
            support = jnp.dot(x, w, preferred_element_type=f32)
            return node_mix(support) + b

        x = prelu(gconv(x0, w1, b1) + x_init2)            # (N*B, 2E)
        x = prelu(gconv(x, w2, b2) + x_init2)             # (N*B, 2E)
        x = prelu(gconv(x, w3, b3) + x_init)              # (N*B, E)

        # ---- proj_to_final: N per-node (B,E)@(E,F) partials + adder tree ----
        parts = []
        for n in range(N):
            wf_n = par_ref[off["wf"] + n * E: off["wf"] + (n + 1) * E, 0:F]
            parts.append(jnp.dot(x[n * B:(n + 1) * B, :], wf_n,
                                 preferred_element_type=f32))
        out_ref[...] = _tree_sum(parts) + bf              # single (B, F) store

    return kernel


def _pack_params(p, rand_dim, num_nodes, embed_dim, final_dim):
    """One-time, host-side packing of all parameters into one (rows,128) slab."""
    N, E, R, F = num_nodes, embed_dim, rand_dim, final_dim
    E2 = 2 * E
    K_aug = R + 1                         # ones column folds the Linear bias
    Kp = _round_up(K_aug, 8)
    assert max(Kp, E2, E, F) <= LANES, "slab lane width exceeded"

    off, r = {}, 0
    off["wp"] = r; r += (N - 1) * Kp
    off["w1"] = r; r += E
    off["w2"] = r; r += E2
    off["w3"] = r; r += E2
    off["b"] = r; r += 8
    off["wf"] = r; r += N * E
    rows = _round_up(r, 8)

    slab = np.zeros((rows, LANES), np.float32)
    wp_nodes = np.asarray(p["wp"], np.float32).reshape(R, N - 1, E).transpose(1, 0, 2)
    bp_nodes = np.asarray(p["bp"], np.float32).reshape(N - 1, E)
    for n in range(N - 1):
        r0 = off["wp"] + n * Kp
        slab[r0:r0 + R, :E] = wp_nodes[n]
        slab[r0 + R, :E] = bp_nodes[n]                    # folded bias row
    slab[off["w1"]:off["w1"] + E, :E2] = np.asarray(p["w1"], np.float32)
    slab[off["w2"]:off["w2"] + E2, :E2] = np.asarray(p["w2"], np.float32)
    slab[off["w3"]:off["w3"] + E2, :E] = np.asarray(p["w3"], np.float32)
    slab[off["b"] + 0, :E2] = np.asarray(p["b1"], np.float32).reshape(-1)
    slab[off["b"] + 1, :E2] = np.asarray(p["b2"], np.float32).reshape(-1)
    slab[off["b"] + 2, :E] = np.asarray(p["b3"], np.float32).reshape(-1)
    slab[off["b"] + 3, :F] = np.asarray(p["bf"], np.float32).reshape(-1)
    slab[off["wf"]:off["wf"] + N * E, :F] = np.asarray(p["wf"], np.float32)
    return jnp.asarray(slab), off, Kp


def make_nodewise_generator(params, rand_dim, num_nodes, embed_dim, final_dim,
                            batch_size):
    """Pack parameters once and return a jitted forward(z, cond, adj)."""
    B, N, E, F = batch_size, num_nodes, embed_dim, final_dim
    E2 = 2 * E
    K_aug = rand_dim + 1

    slab, off, Kp = _pack_params(params, rand_dim, num_nodes, embed_dim, final_dim)
    alpha = jnp.asarray(params["alpha"], jnp.float32).reshape(-1)[:1]
    kernel = _make_kernel(B, N, E, F, Kp, off)

    flops = 2 * B * (
        (N - 1) * K_aug * E                               # rand_to_proj
        + N * E * E2 + N * N * E2                         # gc1: X@W1 + node mix
        + N * E2 * E2 + N * N * E2                        # gc2
        + N * E2 * E + N * N * E                          # gc3
        + N * E * F)                                      # proj_to_final
    bytes_accessed = 4 * (B * 2 * LANES + int(slab.size) + (N * N + 1) + B * F)

    vmem = pl.BlockSpec(memory_space=pltpu.MemorySpace.VMEM)
    smem = pl.BlockSpec(memory_space=pltpu.MemorySpace.SMEM)

    call = pl.pallas_call(
        kernel,
        out_shape=jax.ShapeDtypeStruct((B, F), jnp.float32),
        in_specs=[vmem, vmem, smem],
        out_specs=vmem,
        cost_estimate=pl.CostEstimate(flops=flops, transcendentals=0,
                                      bytes_accessed=bytes_accessed),
    )

    @jax.jit
    def forward(z, cond_tensor, adj):
        f32 = jnp.float32
        io = jnp.zeros((B, 2 * LANES), f32)
        io = io.at[:, :rand_dim].set(z.astype(f32))
        io = io.at[:, rand_dim].set(1.0)                  # folded Linear bias
        io = io.at[:, LANES:LANES + E].set(cond_tensor.reshape(B, E).astype(f32))
        sc = jnp.concatenate([adj.astype(f32).reshape(-1), alpha], axis=0)
        return call(io, slab, sc)

    return forward


def make_params(key, rand_dim, num_nodes, embed_dim, final_dim):
    N, E, R = num_nodes, embed_dim, rand_dim

    def uni(k, shape, scale):
        return jax.random.uniform(k, shape, jnp.float32, -scale, scale)

    ks = jax.random.split(key, 8)
    return dict(
        # nn.Linear(rand_dim, (N-1)*E)
        wp=uni(ks[0], (R, (N - 1) * E), 1.0 / np.sqrt(R)),
        bp=uni(ks[1], (1, (N - 1) * E), 1.0 / np.sqrt(R)),
        # GraphConvolution: uniform(-1/sqrt(out), 1/sqrt(out)), bias zero
        w1=uni(ks[2], (E, 2 * E), 1.0 / np.sqrt(2 * E)),
        b1=jnp.zeros((1, 2 * E), jnp.float32),
        w2=uni(ks[3], (2 * E, 2 * E), 1.0 / np.sqrt(2 * E)),
        b2=jnp.zeros((1, 2 * E), jnp.float32),
        w3=uni(ks[4], (2 * E, E), 1.0 / np.sqrt(E)),
        b3=jnp.zeros((1, E), jnp.float32),
        # nn.Linear(N*E, final_dim)
        wf=uni(ks[5], (N * E, final_dim), 1.0 / np.sqrt(N * E)),
        bf=uni(ks[6], (1, final_dim), 1.0 / np.sqrt(N * E)),
        # PReLU default init
        alpha=jnp.array([0.25], jnp.float32),
    )


def reference(z, cond, adj, p):
    """Pure-JAX reference mirroring the PyTorch forward."""
    B = z.shape[0]
    N = adj.shape[0]
    E = cond.shape[-1]
    alpha = p["alpha"][0]

    h1 = jax.nn.leaky_relu(z @ p["wp"] + p["bp"], 0.1)
    x = jnp.concatenate([h1.reshape(B, N - 1, E), cond], axis=1)   # (B, N, E)
    x_init = x
    x_init2 = jnp.tile(x, (1, 1, 2))

    def prelu(v):
        return jnp.where(v >= 0, v, alpha * v)

    def gc(xv, w, b):
        return jnp.einsum("nm,bmf->bnf", adj, xv @ w) + b

    x = prelu(gc(x, p["w1"], p["b1"]) + x_init2)
    x = prelu(gc(x, p["w2"], p["b2"]) + x_init2)
    x = prelu(gc(x, p["w3"], p["b3"]) + x_init)
    g = x.reshape(B, -1)
    return g @ p["wf"] + p["bf"]


if __name__ == "__main__":
    key = jax.random.PRNGKey(0)
    B, rand_dim, num_nodes, embed_dim = 2, 16, 8, 32
    n_per_node = 4                                     # metadata['details'][i]['n']
    final_dim = (num_nodes - 1) * n_per_node           # 28

    kz, kc, ka, kp = jax.random.split(key, 4)
    z = jax.random.normal(kz, (B, rand_dim), jnp.float32)
    cond_tensor = jax.random.normal(kc, (B, 1, embed_dim), jnp.float32)
    adj = jax.random.uniform(ka, (num_nodes, num_nodes), jnp.float32)
    params = make_params(kp, rand_dim, num_nodes, embed_dim, final_dim)

    fwd = make_nodewise_generator(params, rand_dim, num_nodes, embed_dim,
                                  final_dim, B)
    out = jax.block_until_ready(fwd(z, cond_tensor, adj))

    ref = reference(z, cond_tensor, adj, params)
    if not np.allclose(np.asarray(out), np.asarray(ref), rtol=1e-4, atol=1e-4):
        raise AssertionError("Pallas kernel does not match reference")
    print("KERNEL_OK")
</pallas_src>

<mosaic_0001>
module attributes {stable_mosaic.version = 11 : i64} {
  func.func @kernel(%arg0: memref<2x256xf32, #tpu.memory_space<vmem>>, %arg1: memref<592x128xf32, #tpu.memory_space<vmem>>, %arg2: memref<65xf32, #tpu.memory_space<smem>>, %arg3: memref<2x28xf32, #tpu.memory_space<vmem>>) attributes {dimension_semantics = [], scalar_prefetch = 0 : i64, scratch_operands = 0 : i64, tpu.core_type = #tpu.core_type<tc>} {
    %c64 = arith.constant 64 : index
    %0 = memref.load %arg2[%c64] : memref<65xf32, #tpu.memory_space<smem>>
    %c0 = arith.constant 0 : index
    %c0_0 = arith.constant 0 : index
    %1 = vector.load %arg0[%c0, %c0_0] : memref<2x256xf32, #tpu.memory_space<vmem>>, vector<2x24xf32>
    %c0_1 = arith.constant 0 : index
    %c128 = arith.constant 128 : index
    %2 = vector.load %arg0[%c0_1, %c128] : memref<2x256xf32, #tpu.memory_space<vmem>>, vector<2x32xf32>
    %c0_2 = arith.constant 0 : index
    %c0_3 = arith.constant 0 : index
    %3 = vector.load %arg1[%c0_2, %c0_3] : memref<592x128xf32, #tpu.memory_space<vmem>>, vector<24x32xf32>
    %cst = arith.constant dense<0.000000e+00> : vector<2x32xf32>
    %4 = tpu.matmul %1, %3, %cst {dimension_numbers = #tpu.dot_dimension_numbers<[1], [0], [0], [1], [0, 0, 1, 1], [], []>} : vector<2x24xf32>, vector<24x32xf32>, vector<2x32xf32> -> vector<2x32xf32>
    %cst_4 = arith.constant 0.000000e+00 : f32
    %5 = vector.broadcast %cst_4 : f32 to vector<2x32xf32>
    %6 = arith.cmpf oge, %4, %5 : vector<2x32xf32>
    %cst_5 = arith.constant 1.000000e-01 : f32
    %7 = vector.broadcast %cst_5 : f32 to vector<2x32xf32>
    %8 = arith.mulf %7, %4 : vector<2x32xf32>
    %9 = arith.select %6, %4, %8 : vector<2x32xi1>, vector<2x32xf32>
    %c24 = arith.constant 24 : index
    %c0_6 = arith.constant 0 : index
    %10 = vector.load %arg1[%c24, %c0_6] : memref<592x128xf32, #tpu.memory_space<vmem>>, vector<24x32xf32>
    %cst_7 = arith.constant dense<0.000000e+00> : vector<2x32xf32>
    %11 = tpu.matmul %1, %10, %cst_7 {dimension_numbers = #tpu.dot_dimension_numbers<[1], [0], [0], [1], [0, 0, 1, 1], [], []>} : vector<2x24xf32>, vector<24x32xf32>, vector<2x32xf32> -> vector<2x32xf32>
    %cst_8 = arith.constant 0.000000e+00 : f32
    %12 = vector.broadcast %cst_8 : f32 to vector<2x32xf32>
    %13 = arith.cmpf oge, %11, %12 : vector<2x32xf32>
    %cst_9 = arith.constant 1.000000e-01 : f32
    %14 = vector.broadcast %cst_9 : f32 to vector<2x32xf32>
    %15 = arith.mulf %14, %11 : vector<2x32xf32>
    %16 = arith.select %13, %11, %15 : vector<2x32xi1>, vector<2x32xf32>
    %c48 = arith.constant 48 : index
    %c0_10 = arith.constant 0 : index
    %17 = vector.load %arg1[%c48, %c0_10] : memref<592x128xf32, #tpu.memory_space<vmem>>, vector<24x32xf32>
    %cst_11 = arith.constant dense<0.000000e+00> : vector<2x32xf32>
    %18 = tpu.matmul %1, %17, %cst_11 {dimension_numbers = #tpu.dot_dimension_numbers<[1], [0], [0], [1], [0, 0, 1, 1], [], []>} : vector<2x24xf32>, vector<24x32xf32>, vector<2x32xf32> -> vector<2x32xf32>
    %cst_12 = arith.constant 0.000000e+00 : f32
    %19 = vector.broadcast %cst_12 : f32 to vector<2x32xf32>
    %20 = arith.cmpf oge, %18, %19 : vector<2x32xf32>
    %cst_13 = arith.constant 1.000000e-01 : f32
    %21 = vector.broadcast %cst_13 : f32 to vector<2x32xf32>
    %22 = arith.mulf %21, %18 : vector<2x32xf32>
    %23 = arith.select %20, %18, %22 : vector<2x32xi1>, vector<2x32xf32>
    %c72 = arith.constant 72 : index
    %c0_14 = arith.constant 0 : index
    %24 = vector.load %arg1[%c72, %c0_14] : memref<592x128xf32, #tpu.memory_space<vmem>>, vector<24x32xf32>
    %cst_15 = arith.constant dense<0.000000e+00> : vector<2x32xf32>
    %25 = tpu.matmul %1, %24, %cst_15 {dimension_numbers = #tpu.dot_dimension_numbers<[1], [0], [0], [1], [0, 0, 1, 1], [], []>} : vector<2x24xf32>, vector<24x32xf32>, vector<2x32xf32> -> vector<2x32xf32>
    %cst_16 = arith.constant 0.000000e+00 : f32
    %26 = vector.broadcast %cst_16 : f32 to vector<2x32xf32>
    %27 = arith.cmpf oge, %25, %26 : vector<2x32xf32>
    %cst_17 = arith.constant 1.000000e-01 : f32
    %28 = vector.broadcast %cst_17 : f32 to vector<2x32xf32>
    %29 = arith.mulf %28, %25 : vector<2x32xf32>
    %30 = arith.select %27, %25, %29 : vector<2x32xi1>, vector<2x32xf32>
    %c96 = arith.constant 96 : index
    %c0_18 = arith.constant 0 : index
    %31 = vector.load %arg1[%c96, %c0_18] : memref<592x128xf32, #tpu.memory_space<vmem>>, vector<24x32xf32>
    %cst_19 = arith.constant dense<0.000000e+00> : vector<2x32xf32>
    %32 = tpu.matmul %1, %31, %cst_19 {dimension_numbers = #tpu.dot_dimension_numbers<[1], [0], [0], [1], [0, 0, 1, 1], [], []>} : vector<2x24xf32>, vector<24x32xf32>, vector<2x32xf32> -> vector<2x32xf32>
    %cst_20 = arith.constant 0.000000e+00 : f32
    %33 = vector.broadcast %cst_20 : f32 to vector<2x32xf32>
    %34 = arith.cmpf oge, %32, %33 : vector<2x32xf32>
    %cst_21 = arith.constant 1.000000e-01 : f32
    %35 = vector.broadcast %cst_21 : f32 to vector<2x32xf32>
    %36 = arith.mulf %35, %32 : vector<2x32xf32>
    %37 = arith.select %34, %32, %36 : vector<2x32xi1>, vector<2x32xf32>
    %c120 = arith.constant 120 : index
    %c0_22 = arith.constant 0 : index
    %38 = vector.load %arg1[%c120, %c0_22] : memref<592x128xf32, #tpu.memory_space<vmem>>, vector<24x32xf32>
    %cst_23 = arith.constant dense<0.000000e+00> : vector<2x32xf32>
    %39 = tpu.matmul %1, %38, %cst_23 {dimension_numbers = #tpu.dot_dimension_numbers<[1], [0], [0], [1], [0, 0, 1, 1], [], []>} : vector<2x24xf32>, vector<24x32xf32>, vector<2x32xf32> -> vector<2x32xf32>
    %cst_24 = arith.constant 0.000000e+00 : f32
    %40 = vector.broadcast %cst_24 : f32 to vector<2x32xf32>
    %41 = arith.cmpf oge, %39, %40 : vector<2x32xf32>
    %cst_25 = arith.constant 1.000000e-01 : f32
    %42 = vector.broadcast %cst_25 : f32 to vector<2x32xf32>
    %43 = arith.mulf %42, %39 : vector<2x32xf32>
    %44 = arith.select %41, %39, %43 : vector<2x32xi1>, vector<2x32xf32>
    %c144 = arith.constant 144 : index
    %c0_26 = arith.constant 0 : index
    %45 = vector.load %arg1[%c144, %c0_26] : memref<592x128xf32, #tpu.memory_space<vmem>>, vector<24x32xf32>
    %cst_27 = arith.constant dense<0.000000e+00> : vector<2x32xf32>
    %46 = tpu.matmul %1, %45, %cst_27 {dimension_numbers = #tpu.dot_dimension_numbers<[1], [0], [0], [1], [0, 0, 1, 1], [], []>} : vector<2x24xf32>, vector<24x32xf32>, vector<2x32xf32> -> vector<2x32xf32>
    %cst_28 = arith.constant 0.000000e+00 : f32
    %47 = vector.broadcast %cst_28 : f32 to vector<2x32xf32>
    %48 = arith.cmpf oge, %46, %47 : vector<2x32xf32>
    %cst_29 = arith.constant 1.000000e-01 : f32
    %49 = vector.broadcast %cst_29 : f32 to vector<2x32xf32>
    %50 = arith.mulf %49, %46 : vector<2x32xf32>
    %51 = arith.select %48, %46, %50 : vector<2x32xi1>, vector<2x32xf32>
    %52 = tpu.concatenate %9, %16, %23, %30, %37, %44, %51, %2 in 0 : vector<2x32xf32>, vector<2x32xf32>, vector<2x32xf32>, vector<2x32xf32>, vector<2x32xf32>, vector<2x32xf32>, vector<2x32xf32>, vector<2x32xf32> -> vector<16x32xf32>
    %53 = tpu.concatenate %52, %52 in 1 : vector<16x32xf32>, vector<16x32xf32> -> vector<16x64xf32>
    %c168 = arith.constant 168 : index
    %c0_30 = arith.constant 0 : index
    %54 = vector.load %arg1[%c168, %c0_30] : memref<592x128xf32, #tpu.memory_space<vmem>>, vector<32x64xf32>
    %c200 = arith.constant 200 : index
    %c0_31 = arith.constant 0 : index
    %55 = vector.load %arg1[%c200, %c0_31] : memref<592x128xf32, #tpu.memory_space<vmem>>, vector<64x64xf32>
    %c264 = arith.constant 264 : index
    %c0_32 = arith.constant 0 : index
    %56 = vector.load %arg1[%c264, %c0_32] : memref<592x128xf32, #tpu.memory_space<vmem>>, vector<64x32xf32>
    %c328 = arith.constant 328 : index
    %c0_33 = arith.constant 0 : index
    %57 = vector.load %arg1[%c328, %c0_33] : memref<592x128xf32, #tpu.memory_space<vmem>>, vector<1x64xf32>
    %c329 = arith.constant 329 : index
    %c0_34 = arith.constant 0 : index
    %58 = vector.load %arg1[%c329, %c0_34] : memref<592x128xf32, #tpu.memory_space<vmem>>, vector<1x64xf32>
    %c330 = arith.constant 330 : index
    %c0_35 = arith.constant 0 : index
    %59 = vector.load %arg1[%c330, %c0_35] : memref<592x128xf32, #tpu.memory_space<vmem>>, vector<1x32xf32>
    %c331 = arith.constant 331 : index
    %c0_36 = arith.constant 0 : index
    %60 = vector.load %arg1[%c331, %c0_36] : memref<592x128xf32, #tpu.memory_space<vmem>>, vector<1x28xf32>
    %cst_37 = arith.constant dense<0.000000e+00> : vector<16x64xf32>
    %61 = tpu.matmul %52, %54, %cst_37 {dimension_numbers = #tpu.dot_dimension_numbers<[1], [0], [0], [1], [0, 0, 1, 1], [], []>} : vector<16x32xf32>, vector<32x64xf32>, vector<16x64xf32> -> vector<16x64xf32>
    %62 = vector.extract_strided_slice %61 {offsets = [0, 0], sizes = [2, 64], strides = [1, 1]} : vector<16x64xf32> to vector<2x64xf32>
    %63 = vector.extract_strided_slice %61 {offsets = [2, 0], sizes = [2, 64], strides = [1, 1]} : vector<16x64xf32> to vector<2x64xf32>
    %64 = vector.extract_strided_slice %61 {offsets = [4, 0], sizes = [2, 64], strides = [1, 1]} : vector<16x64xf32> to vector<2x64xf32>
    %65 = vector.extract_strided_slice %61 {offsets = [6, 0], sizes = [2, 64], strides = [1, 1]} : vector<16x64xf32> to vector<2x64xf32>
    %66 = vector.extract_strided_slice %61 {offsets = [8, 0], sizes = [2, 64], strides = [1, 1]} : vector<16x64xf32> to vector<2x64xf32>
    %67 = vector.extract_strided_slice %61 {offsets = [10, 0], sizes = [2, 64], strides = [1, 1]} : vector<16x64xf32> to vector<2x64xf32>
    %68 = vector.extract_strided_slice %61 {offsets = [12, 0], sizes = [2, 64], strides = [1, 1]} : vector<16x64xf32> to vector<2x64xf32>
    %69 = vector.extract_strided_slice %61 {offsets = [14, 0], sizes = [2, 64], strides = [1, 1]} : vector<16x64xf32> to vector<2x64xf32>
    %c0_38 = arith.constant 0 : index
    %70 = memref.load %arg2[%c0_38] : memref<65xf32, #tpu.memory_space<smem>>
    %71 = vector.broadcast %70 : f32 to vector<2x64xf32>
    %72 = arith.mulf %71, %62 : vector<2x64xf32>
    %c1 = arith.constant 1 : index
    %73 = memref.load %arg2[%c1] : memref<65xf32, #tpu.memory_space<smem>>
    %74 = vector.broadcast %73 : f32 to vector<2x64xf32>
    %75 = arith.mulf %74, %63 : vector<2x64xf32>
    %c2 = arith.constant 2 : index
    %76 = memref.load %arg2[%c2] : memref<65xf32, #tpu.memory_space<smem>>
    %77 = vector.broadcast %76 : f32 to vector<2x64xf32>
    %78 = arith.mulf %77, %64 : vector<2x64xf32>
    %c3 = arith.constant 3 : index
    %79 = memref.load %arg2[%c3] : memref<65xf32, #tpu.memory_space<smem>>
    %80 = vector.broadcast %79 : f32 to vector<2x64xf32>
    %81 = arith.mulf %80, %65 : vector<2x64xf32>
    %c4 = arith.constant 4 : index
    %82 = memref.load %arg2[%c4] : memref<65xf32, #tpu.memory_space<smem>>
    %83 = vector.broadcast %82 : f32 to vector<2x64xf32>
    %84 = arith.mulf %83, %66 : vector<2x64xf32>
    %c5 = arith.constant 5 : index
    %85 = memref.load %arg2[%c5] : memref<65xf32, #tpu.memory_space<smem>>
    %86 = vector.broadcast %85 : f32 to vector<2x64xf32>
    %87 = arith.mulf %86, %67 : vector<2x64xf32>
    %c6 = arith.constant 6 : index
    %88 = memref.load %arg2[%c6] : memref<65xf32, #tpu.memory_space<smem>>
    %89 = vector.broadcast %88 : f32 to vector<2x64xf32>
    %90 = arith.mulf %89, %68 : vector<2x64xf32>
    %c7 = arith.constant 7 : index
    %91 = memref.load %arg2[%c7] : memref<65xf32, #tpu.memory_space<smem>>
    %92 = vector.broadcast %91 : f32 to vector<2x64xf32>
    %93 = arith.mulf %92, %69 : vector<2x64xf32>
    %94 = arith.addf %72, %75 : vector<2x64xf32>
    %95 = arith.addf %78, %81 : vector<2x64xf32>
    %96 = arith.addf %84, %87 : vector<2x64xf32>
    %97 = arith.addf %90, %93 : vector<2x64xf32>
    %98 = arith.addf %94, %95 : vector<2x64xf32>
    %99 = arith.addf %96, %97 : vector<2x64xf32>
    %100 = arith.addf %98, %99 : vector<2x64xf32>
    %c8 = arith.constant 8 : index
    %101 = memref.load %arg2[%c8] : memref<65xf32, #tpu.memory_space<smem>>
    %102 = vector.broadcast %101 : f32 to vector<2x64xf32>
    %103 = arith.mulf %102, %62 : vector<2x64xf32>
    %c9 = arith.constant 9 : index
    %104 = memref.load %arg2[%c9] : memref<65xf32, #tpu.memory_space<smem>>
    %105 = vector.broadcast %104 : f32 to vector<2x64xf32>
    %106 = arith.mulf %105, %63 : vector<2x64xf32>
    %c10 = arith.constant 10 : index
    %107 = memref.load %arg2[%c10] : memref<65xf32, #tpu.memory_space<smem>>
    %108 = vector.broadcast %107 : f32 to vector<2x64xf32>
    %109 = arith.mulf %108, %64 : vector<2x64xf32>
    %c11 = arith.constant 11 : index
    %110 = memref.load %arg2[%c11] : memref<65xf32, #tpu.memory_space<smem>>
    %111 = vector.broadcast %110 : f32 to vector<2x64xf32>
    %112 = arith.mulf %111, %65 : vector<2x64xf32>
    %c12 = arith.constant 12 : index
    %113 = memref.load %arg2[%c12] : memref<65xf32, #tpu.memory_space<smem>>
    %114 = vector.broadcast %113 : f32 to vector<2x64xf32>
    %115 = arith.mulf %114, %66 : vector<2x64xf32>
    %c13 = arith.constant 13 : index
    %116 = memref.load %arg2[%c13] : memref<65xf32, #tpu.memory_space<smem>>
    %117 = vector.broadcast %116 : f32 to vector<2x64xf32>
    %118 = arith.mulf %117, %67 : vector<2x64xf32>
    %c14 = arith.constant 14 : index
    %119 = memref.load %arg2[%c14] : memref<65xf32, #tpu.memory_space<smem>>
    %120 = vector.broadcast %119 : f32 to vector<2x64xf32>
    %121 = arith.mulf %120, %68 : vector<2x64xf32>
    %c15 = arith.constant 15 : index
    %122 = memref.load %arg2[%c15] : memref<65xf32, #tpu.memory_space<smem>>
    %123 = vector.broadcast %122 : f32 to vector<2x64xf32>
    %124 = arith.mulf %123, %69 : vector<2x64xf32>
    %125 = arith.addf %103, %106 : vector<2x64xf32>
    %126 = arith.addf %109, %112 : vector<2x64xf32>
    %127 = arith.addf %115, %118 : vector<2x64xf32>
    %128 = arith.addf %121, %124 : vector<2x64xf32>
    %129 = arith.addf %125, %126 : vector<2x64xf32>
    %130 = arith.addf %127, %128 : vector<2x64xf32>
    %131 = arith.addf %129, %130 : vector<2x64xf32>
    %c16 = arith.constant 16 : index
    %132 = memref.load %arg2[%c16] : memref<65xf32, #tpu.memory_space<smem>>
    %133 = vector.broadcast %132 : f32 to vector<2x64xf32>
    %134 = arith.mulf %133, %62 : vector<2x64xf32>
    %c17 = arith.constant 17 : index
    %135 = memref.load %arg2[%c17] : memref<65xf32, #tpu.memory_space<smem>>
    %136 = vector.broadcast %135 : f32 to vector<2x64xf32>
    %137 = arith.mulf %136, %63 : vector<2x64xf32>
    %c18 = arith.constant 18 : index
    %138 = memref.load %arg2[%c18] : memref<65xf32, #tpu.memory_space<smem>>
    %139 = vector.broadcast %138 : f32 to vector<2x64xf32>
    %140 = arith.mulf %139, %64 : vector<2x64xf32>
    %c19 = arith.constant 19 : index
    %141 = memref.load %arg2[%c19] : memref<65xf32, #tpu.memory_space<smem>>
    %142 = vector.broadcast %141 : f32 to vector<2x64xf32>
    %143 = arith.mulf %142, %65 : vector<2x64xf32>
    %c20 = arith.constant 20 : index
    %144 = memref.load %arg2[%c20] : memref<65xf32, #tpu.memory_space<smem>>
    %145 = vector.broadcast %144 : f32 to vector<2x64xf32>
    %146 = arith.mulf %145, %66 : vector<2x64xf32>
    %c21 = arith.constant 21 : index
    %147 = memref.load %arg2[%c21] : memref<65xf32, #tpu.memory_space<smem>>
    %148 = vector.broadcast %147 : f32 to vector<2x64xf32>
    %149 = arith.mulf %148, %67 : vector<2x64xf32>
    %c22 = arith.constant 22 : index
    %150 = memref.load %arg2[%c22] : memref<65xf32, #tpu.memory_space<smem>>
    %151 = vector.broadcast %150 : f32 to vector<2x64xf32>
    %152 = arith.mulf %151, %68 : vector<2x64xf32>
    %c23 = arith.constant 23 : index
    %153 = memref.load %arg2[%c23] : memref<65xf32, #tpu.memory_space<smem>>
    %154 = vector.broadcast %153 : f32 to vector<2x64xf32>
    %155 = arith.mulf %154, %69 : vector<2x64xf32>
    %156 = arith.addf %134, %137 : vector<2x64xf32>
    %157 = arith.addf %140, %143 : vector<2x64xf32>
    %158 = arith.addf %146, %149 : vector<2x64xf32>
    %159 = arith.addf %152, %155 : vector<2x64xf32>
    %160 = arith.addf %156, %157 : vector<2x64xf32>
    %161 = arith.addf %158, %159 : vector<2x64xf32>
    %162 = arith.addf %160, %161 : vector<2x64xf32>
    %c24_39 = arith.constant 24 : index
    %163 = memref.load %arg2[%c24_39] : memref<65xf32, #tpu.memory_space<smem>>
    %164 = vector.broadcast %163 : f32 to vector<2x64xf32>
    %165 = arith.mulf %164, %62 : vector<2x64xf32>
    %c25 = arith.constant 25 : index
    %166 = memref.load %arg2[%c25] : memref<65xf32, #tpu.memory_space<smem>>
    %167 = vector.broadcast %166 : f32 to vector<2x64xf32>
    %168 = arith.mulf %167, %63 : vector<2x64xf32>
    %c26 = arith.constant 26 : index
    %169 = memref.load %arg2[%c26] : memref<65xf32, #tpu.memory_space<smem>>
    %170 = vector.broadcast %169 : f32 to vector<2x64xf32>
    %171 = arith.mulf %170, %64 : vector<2x64xf32>
    %c27 = arith.constant 27 : index
    %172 = memref.load %arg2[%c27] : memref<65xf32, #tpu.memory_space<smem>>
    %173 = vector.broadcast %172 : f32 to vector<2x64xf32>
    %174 = arith.mulf %173, %65 : vector<2x64xf32>
    %c28 = arith.constant 28 : index
    %175 = memref.load %arg2[%c28] : memref<65xf32, #tpu.memory_space<smem>>
    %176 = vector.broadcast %175 : f32 to vector<2x64xf32>
    %177 = arith.mulf %176, %66 : vector<2x64xf32>
    %c29 = arith.constant 29 : index
    %178 = memref.load %arg2[%c29] : memref<65xf32, #tpu.memory_space<smem>>
    %179 = vector.broadcast %178 : f32 to vector<2x64xf32>
    %180 = arith.mulf %179, %67 : vector<2x64xf32>
    %c30 = arith.constant 30 : index
    %181 = memref.load %arg2[%c30] : memref<65xf32, #tpu.memory_space<smem>>
    %182 = vector.broadcast %181 : f32 to vector<2x64xf32>
    %183 = arith.mulf %182, %68 : vector<2x64xf32>
    %c31 = arith.constant 31 : index
    %184 = memref.load %arg2[%c31] : memref<65xf32, #tpu.memory_space<smem>>
    %185 = vector.broadcast %184 : f32 to vector<2x64xf32>
    %186 = arith.mulf %185, %69 : vector<2x64xf32>
    %187 = arith.addf %165, %168 : vector<2x64xf32>
    %188 = arith.addf %171, %174 : vector<2x64xf32>
    %189 = arith.addf %177, %180 : vector<2x64xf32>
    %190 = arith.addf %183, %186 : vector<2x64xf32>
    %191 = arith.addf %187, %188 : vector<2x64xf32>
    %192 = arith.addf %189, %190 : vector<2x64xf32>
    %193 = arith.addf %191, %192 : vector<2x64xf32>
    %c32 = arith.constant 32 : index
    %194 = memref.load %arg2[%c32] : memref<65xf32, #tpu.memory_space<smem>>
    %195 = vector.broadcast %194 : f32 to vector<2x64xf32>
    %196 = arith.mulf %195, %62 : vector<2x64xf32>
    %c33 = arith.constant 33 : index
    %197 = memref.load %arg2[%c33] : memref<65xf32, #tpu.memory_space<smem>>
    %198 = vector.broadcast %197 : f32 to vector<2x64xf32>
    %199 = arith.mulf %198, %63 : vector<2x64xf32>
    %c34 = arith.constant 34 : index
    %200 = memref.load %arg2[%c34] : memref<65xf32, #tpu.memory_space<smem>>
    %201 = vector.broadcast %200 : f32 to vector<2x64xf32>
    %202 = arith.mulf %201, %64 : vector<2x64xf32>
    %c35 = arith.constant 35 : index
    %203 = memref.load %arg2[%c35] : memref<65xf32, #tpu.memory_space<smem>>
    %204 = vector.broadcast %203 : f32 to vector<2x64xf32>
    %205 = arith.mulf %204, %65 : vector<2x64xf32>
    %c36 = arith.constant 36 : index
    %206 = memref.load %arg2[%c36] : memref<65xf32, #tpu.memory_space<smem>>
    %207 = vector.broadcast %206 : f32 to vector<2x64xf32>
    %208 = arith.mulf %207, %66 : vector<2x64xf32>
    %c37 = arith.constant 37 : index
    %209 = memref.load %arg2[%c37] : memref<65xf32, #tpu.memory_space<smem>>
    %210 = vector.broadcast %209 : f32 to vector<2x64xf32>
    %211 = arith.mulf %210, %67 : vector<2x64xf32>
    %c38 = arith.constant 38 : index
    %212 = memref.load %arg2[%c38] : memref<65xf32, #tpu.memory_space<smem>>
    %213 = vector.broadcast %212 : f32 to vector<2x64xf32>
    %214 = arith.mulf %213, %68 : vector<2x64xf32>
    %c39 = arith.constant 39 : index
    %215 = memref.load %arg2[%c39] : memref<65xf32, #tpu.memory_space<smem>>
    %216 = vector.broadcast %215 : f32 to vector<2x64xf32>
    %217 = arith.mulf %216, %69 : vector<2x64xf32>
    %218 = arith.addf %196, %199 : vector<2x64xf32>
    %219 = arith.addf %202, %205 : vector<2x64xf32>
    %220 = arith.addf %208, %211 : vector<2x64xf32>
    %221 = arith.addf %214, %217 : vector<2x64xf32>
    %222 = arith.addf %218, %219 : vector<2x64xf32>
    %223 = arith.addf %220, %221 : vector<2x64xf32>
    %224 = arith.addf %222, %223 : vector<2x64xf32>
    %c40 = arith.constant 40 : index
    %225 = memref.load %arg2[%c40] : memref<65xf32, #tpu.memory_space<smem>>
    %226 = vector.broadcast %225 : f32 to vector<2x64xf32>
    %227 = arith.mulf %226, %62 : vector<2x64xf32>
    %c41 = arith.constant 41 : index
    %228 = memref.load %arg2[%c41] : memref<65xf32, #tpu.memory_space<smem>>
    %229 = vector.broadcast %228 : f32 to vector<2x64xf32>
    %230 = arith.mulf %229, %63 : vector<2x64xf32>
    %c42 = arith.constant 42 : index
    %231 = memref.load %arg2[%c42] : memref<65xf32, #tpu.memory_space<smem>>
    %232 = vector.broadcast %231 : f32 to vector<2x64xf32>
    %233 = arith.mulf %232, %64 : vector<2x64xf32>
    %c43 = arith.constant 43 : index
    %234 = memref.load %arg2[%c43] : memref<65xf32, #tpu.memory_space<smem>>
    %235 = vector.broadcast %234 : f32 to vector<2x64xf32>
    %236 = arith.mulf %235, %65 : vector<2x64xf32>
    %c44 = arith.constant 44 : index
    %237 = memref.load %arg2[%c44] : memref<65xf32, #tpu.memory_space<smem>>
    %238 = vector.broadcast %237 : f32 to vector<2x64xf32>
    %239 = arith.mulf %238, %66 : vector<2x64xf32>
    %c45 = arith.constant 45 : index
    %240 = memref.load %arg2[%c45] : memref<65xf32, #tpu.memory_space<smem>>
    %241 = vector.broadcast %240 : f32 to vector<2x64xf32>
    %242 = arith.mulf %241, %67 : vector<2x64xf32>
    %c46 = arith.constant 46 : index
    %243 = memref.load %arg2[%c46] : memref<65xf32, #tpu.memory_space<smem>>
    %244 = vector.broadcast %243 : f32 to vector<2x64xf32>
    %245 = arith.mulf %244, %68 : vector<2x64xf32>
    %c47 = arith.constant 47 : index
    %246 = memref.load %arg2[%c47] : memref<65xf32, #tpu.memory_space<smem>>
    %247 = vector.broadcast %246 : f32 to vector<2x64xf32>
    %248 = arith.mulf %247, %69 : vector<2x64xf32>
    %249 = arith.addf %227, %230 : vector<2x64xf32>
    %250 = arith.addf %233, %236 : vector<2x64xf32>
    %251 = arith.addf %239, %242 : vector<2x64xf32>
    %252 = arith.addf %245, %248 : vector<2x64xf32>
    %253 = arith.addf %249, %250 : vector<2x64xf32>
    %254 = arith.addf %251, %252 : vector<2x64xf32>
    %255 = arith.addf %253, %254 : vector<2x64xf32>
    %c48_40 = arith.constant 48 : index
    %256 = memref.load %arg2[%c48_40] : memref<65xf32, #tpu.memory_space<smem>>
    %257 = vector.broadcast %256 : f32 to vector<2x64xf32>
    %258 = arith.mulf %257, %62 : vector<2x64xf32>
    %c49 = arith.constant 49 : index
    %259 = memref.load %arg2[%c49] : memref<65xf32, #tpu.memory_space<smem>>
    %260 = vector.broadcast %259 : f32 to vector<2x64xf32>
    %261 = arith.mulf %260, %63 : vector<2x64xf32>
    %c50 = arith.constant 50 : index
    %262 = memref.load %arg2[%c50] : memref<65xf32, #tpu.memory_space<smem>>
    %263 = vector.broadcast %262 : f32 to vector<2x64xf32>
    %264 = arith.mulf %263, %64 : vector<2x64xf32>
    %c51 = arith.constant 51 : index
    %265 = memref.load %arg2[%c51] : memref<65xf32, #tpu.memory_space<smem>>
    %266 = vector.broadcast %265 : f32 to vector<2x64xf32>
    %267 = arith.mulf %266, %65 : vector<2x64xf32>
    %c52 = arith.constant 52 : index
    %268 = memref.load %arg2[%c52] : memref<65xf32, #tpu.memory_space<smem>>
    %269 = vector.broadcast %268 : f32 to vector<2x64xf32>
    %270 = arith.mulf %269, %66 : vector<2x64xf32>
    %c53 = arith.constant 53 : index
    %271 = memref.load %arg2[%c53] : memref<65xf32, #tpu.memory_space<smem>>
    %272 = vector.broadcast %271 : f32 to vector<2x64xf32>
    %273 = arith.mulf %272, %67 : vector<2x64xf32>
    %c54 = arith.constant 54 : index
    %274 = memref.load %arg2[%c54] : memref<65xf32, #tpu.memory_space<smem>>
    %275 = vector.broadcast %274 : f32 to vector<2x64xf32>
    %276 = arith.mulf %275, %68 : vector<2x64xf32>
    %c55 = arith.constant 55 : index
    %277 = memref.load %arg2[%c55] : memref<65xf32, #tpu.memory_space<smem>>
    %278 = vector.broadcast %277 : f32 to vector<2x64xf32>
    %279 = arith.mulf %278, %69 : vector<2x64xf32>
    %280 = arith.addf %258, %261 : vector<2x64xf32>
    %281 = arith.addf %264, %267 : vector<2x64xf32>
    %282 = arith.addf %270, %273 : vector<2x64xf32>
    %283 = arith.addf %276, %279 : vector<2x64xf32>
    %284 = arith.addf %280, %281 : vector<2x64xf32>
    %285 = arith.addf %282, %283 : vector<2x64xf32>
    %286 = arith.addf %284, %285 : vector<2x64xf32>
    %c56 = arith.constant 56 : index
    %287 = memref.load %arg2[%c56] : memref<65xf32, #tpu.memory_space<smem>>
    %288 = vector.broadcast %287 : f32 to vector<2x64xf32>
    %289 = arith.mulf %288, %62 : vector<2x64xf32>
    %c57 = arith.constant 57 : index
    %290 = memref.load %arg2[%c57] : memref<65xf32, #tpu.memory_space<smem>>
    %291 = vector.broadcast %290 : f32 to vector<2x64xf32>
    %292 = arith.mulf %291, %63 : vector<2x64xf32>
    %c58 = arith.constant 58 : index
    %293 = memref.load %arg2[%c58] : memref<65xf32, #tpu.memory_space<smem>>
    %294 = vector.broadcast %293 : f32 to vector<2x64xf32>
    %295 = arith.mulf %294, %64 : vector<2x64xf32>
    %c59 = arith.constant 59 : index
    %296 = memref.load %arg2[%c59] : memref<65xf32, #tpu.memory_space<smem>>
    %297 = vector.broadcast %296 : f32 to vector<2x64xf32>
    %298 = arith.mulf %297, %65 : vector<2x64xf32>
    %c60 = arith.constant 60 : index
    %299 = memref.load %arg2[%c60] : memref<65xf32, #tpu.memory_space<smem>>
    %300 = vector.broadcast %299 : f32 to vector<2x64xf32>
    %301 = arith.mulf %300, %66 : vector<2x64xf32>
    %c61 = arith.constant 61 : index
    %302 = memref.load %arg2[%c61] : memref<65xf32, #tpu.memory_space<smem>>
    %303 = vector.broadcast %302 : f32 to vector<2x64xf32>
    %304 = arith.mulf %303, %67 : vector<2x64xf32>
    %c62 = arith.constant 62 : index
    %305 = memref.load %arg2[%c62] : memref<65xf32, #tpu.memory_space<smem>>
    %306 = vector.broadcast %305 : f32 to vector<2x64xf32>
    %307 = arith.mulf %306, %68 : vector<2x64xf32>
    %c63 = arith.constant 63 : index
    %308 = memref.load %arg2[%c63] : memref<65xf32, #tpu.memory_space<smem>>
    %309 = vector.broadcast %308 : f32 to vector<2x64xf32>
    %310 = arith.mulf %309, %69 : vector<2x64xf32>
    %311 = arith.addf %289, %292 : vector<2x64xf32>
    %312 = arith.addf %295, %298 : vector<2x64xf32>
    %313 = arith.addf %301, %304 : vector<2x64xf32>
    %314 = arith.addf %307, %310 : vector<2x64xf32>
    %315 = arith.addf %311, %312 : vector<2x64xf32>
    %316 = arith.addf %313, %314 : vector<2x64xf32>
    %317 = arith.addf %315, %316 : vector<2x64xf32>
    %318 = tpu.concatenate %100, %131, %162, %193, %224, %255, %286, %317 in 0 : vector<2x64xf32>, vector<2x64xf32>, vector<2x64xf32>, vector<2x64xf32>, vector<2x64xf32>, vector<2x64xf32>, vector<2x64xf32>, vector<2x64xf32> -> vector<16x64xf32>
    %319 = vector.broadcast %57 : vector<1x64xf32> to vector<16x64xf32>
    %320 = arith.addf %318, %319 : vector<16x64xf32>
    %321 = arith.addf %320, %53 : vector<16x64xf32>
    %cst_41 = arith.constant 0.000000e+00 : f32
    %322 = vector.broadcast %cst_41 : f32 to vector<16x64xf32>
    %323 = arith.cmpf oge, %321, %322 : vector<16x64xf32>
    %324 = vector.broadcast %0 : f32 to vector<16x64xf32>
    %325 = arith.mulf %324, %321 : vector<16x64xf32>
    %326 = arith.select %323, %321, %325 : vector<16x64xi1>, vector<16x64xf32>
    %cst_42 = arith.constant dense<0.000000e+00> : vector<16x64xf32>
    %327 = tpu.matmul %326, %55, %cst_42 {dimension_numbers = #tpu.dot_dimension_numbers<[1], [0], [0], [1], [0, 0, 1, 1], [], []>} : vector<16x64xf32>, vector<64x64xf32>, vector<16x64xf32> -> vector<16x64xf32>
    %328 = vector.extract_strided_slice %327 {offsets = [0, 0], sizes = [2, 64], strides = [1, 1]} : vector<16x64xf32> to vector<2x64xf32>
    %329 = vector.extract_strided_slice %327 {offsets = [2, 0], sizes = [2, 64], strides = [1, 1]} : vector<16x64xf32> to vector<2x64xf32>
    %330 = vector.extract_strided_slice %327 {offsets = [4, 0], sizes = [2, 64], strides = [1, 1]} : vector<16x64xf32> to vector<2x64xf32>
    %331 = vector.extract_strided_slice %327 {offsets = [6, 0], sizes = [2, 64], strides = [1, 1]} : vector<16x64xf32> to vector<2x64xf32>
    %332 = vector.extract_strided_slice %327 {offsets = [8, 0], sizes = [2, 64], strides = [1, 1]} : vector<16x64xf32> to vector<2x64xf32>
    %333 = vector.extract_strided_slice %327 {offsets = [10, 0], sizes = [2, 64], strides = [1, 1]} : vector<16x64xf32> to vector<2x64xf32>
    %334 = vector.extract_strided_slice %327 {offsets = [12, 0], sizes = [2, 64], strides = [1, 1]} : vector<16x64xf32> to vector<2x64xf32>
    %335 = vector.extract_strided_slice %327 {offsets = [14, 0], sizes = [2, 64], strides = [1, 1]} : vector<16x64xf32> to vector<2x64xf32>
    %c0_43 = arith.constant 0 : index
    %336 = memref.load %arg2[%c0_43] : memref<65xf32, #tpu.memory_space<smem>>
    %337 = vector.broadcast %336 : f32 to vector<2x64xf32>
    %338 = arith.mulf %337, %328 : vector<2x64xf32>
    %c1_44 = arith.constant 1 : index
    %339 = memref.load %arg2[%c1_44] : memref<65xf32, #tpu.memory_space<smem>>
    %340 = vector.broadcast %339 : f32 to vector<2x64xf32>
    %341 = arith.mulf %340, %329 : vector<2x64xf32>
    %c2_45 = arith.constant 2 : index
    %342 = memref.load %arg2[%c2_45] : memref<65xf32, #tpu.memory_space<smem>>
    %343 = vector.broadcast %342 : f32 to vector<2x64xf32>
    %344 = arith.mulf %343, %330 : vector<2x64xf32>
    %c3_46 = arith.constant 3 : index
    %345 = memref.load %arg2[%c3_46] : memref<65xf32, #tpu.memory_space<smem>>
    %346 = vector.broadcast %345 : f32 to vector<2x64xf32>
    %347 = arith.mulf %346, %331 : vector<2x64xf32>
    %c4_47 = arith.constant 4 : index
    %348 = memref.load %arg2[%c4_47] : memref<65xf32, #tpu.memory_space<smem>>
    %349 = vector.broadcast %348 : f32 to vector<2x64xf32>
    %350 = arith.mulf %349, %332 : vector<2x64xf32>
    %c5_48 = arith.constant 5 : index
    %351 = memref.load %arg2[%c5_48] : memref<65xf32, #tpu.memory_space<smem>>
    %352 = vector.broadcast %351 : f32 to vector<2x64xf32>
    %353 = arith.mulf %352, %333 : vector<2x64xf32>
    %c6_49 = arith.constant 6 : index
    %354 = memref.load %arg2[%c6_49] : memref<65xf32, #tpu.memory_space<smem>>
    %355 = vector.broadcast %354 : f32 to vector<2x64xf32>
    %356 = arith.mulf %355, %334 : vector<2x64xf32>
    %c7_50 = arith.constant 7 : index
    %357 = memref.load %arg2[%c7_50] : memref<65xf32, #tpu.memory_space<smem>>
    %358 = vector.broadcast %357 : f32 to vector<2x64xf32>
    %359 = arith.mulf %358, %335 : vector<2x64xf32>
    %360 = arith.addf %338, %341 : vector<2x64xf32>
    %361 = arith.addf %344, %347 : vector<2x64xf32>
    %362 = arith.addf %350, %353 : vector<2x64xf32>
    %363 = arith.addf %356, %359 : vector<2x64xf32>
    %364 = arith.addf %360, %361 : vector<2x64xf32>
    %365 = arith.addf %362, %363 : vector<2x64xf32>
    %366 = arith.addf %364, %365 : vector<2x64xf32>
    %c8_51 = arith.constant 8 : index
    %367 = memref.load %arg2[%c8_51] : memref<65xf32, #tpu.memory_space<smem>>
    %368 = vector.broadcast %367 : f32 to vector<2x64xf32>
    %369 = arith.mulf %368, %328 : vector<2x64xf32>
    %c9_52 = arith.constant 9 : index
    %370 = memref.load %arg2[%c9_52] : memref<65xf32, #tpu.memory_space<smem>>
    %371 = vector.broadcast %370 : f32 to vector<2x64xf32>
    %372 = arith.mulf %371, %329 : vector<2x64xf32>
    %c10_53 = arith.constant 10 : index
    %373 = memref.load %arg2[%c10_53] : memref<65xf32, #tpu.memory_space<smem>>
    %374 = vector.broadcast %373 : f32 to vector<2x64xf32>
    %375 = arith.mulf %374, %330 : vector<2x64xf32>
    %c11_54 = arith.constant 11 : index
    %376 = memref.load %arg2[%c11_54] : memref<65xf32, #tpu.memory_space<smem>>
    %377 = vector.broadcast %376 : f32 to vector<2x64xf32>
    %378 = arith.mulf %377, %331 : vector<2x64xf32>
    %c12_55 = arith.constant 12 : index
    %379 = memref.load %arg2[%c12_55] : memref<65xf32, #tpu.memory_space<smem>>
    %380 = vector.broadcast %379 : f32 to vector<2x64xf32>
    %381 = arith.mulf %380, %332 : vector<2x64xf32>
    %c13_56 = arith.constant 13 : index
    %382 = memref.load %arg2[%c13_56] : memref<65xf32, #tpu.memory_space<smem>>
    %383 = vector.broadcast %382 : f32 to vector<2x64xf32>
    %384 = arith.mulf %383, %333 : vector<2x64xf32>
    %c14_57 = arith.constant 14 : index
    %385 = memref.load %arg2[%c14_57] : memref<65xf32, #tpu.memory_space<smem>>
    %386 = vector.broadcast %385 : f32 to vector<2x64xf32>
    %387 = arith.mulf %386, %334 : vector<2x64xf32>
    %c15_58 = arith.constant 15 : index
    %388 = memref.load %arg2[%c15_58] : memref<65xf32, #tpu.memory_space<smem>>
    %389 = vector.broadcast %388 : f32 to vector<2x64xf32>
    %390 = arith.mulf %389, %335 : vector<2x64xf32>
    %391 = arith.addf %369, %372 : vector<2x64xf32>
    %392 = arith.addf %375, %378 : vector<2x64xf32>
    %393 = arith.addf %381, %384 : vector<2x64xf32>
    %394 = arith.addf %387, %390 : vector<2x64xf32>
    %395 = arith.addf %391, %392 : vector<2x64xf32>
    %396 = arith.addf %393, %394 : vector<2x64xf32>
    %397 = arith.addf %395, %396 : vector<2x64xf32>
    %c16_59 = arith.constant 16 : index
    %398 = memref.load %arg2[%c16_59] : memref<65xf32, #tpu.memory_space<smem>>
    %399 = vector.broadcast %398 : f32 to vector<2x64xf32>
    %400 = arith.mulf %399, %328 : vector<2x64xf32>
    %c17_60 = arith.constant 17 : index
    %401 = memref.load %arg2[%c17_60] : memref<65xf32, #tpu.memory_space<smem>>
    %402 = vector.broadcast %401 : f32 to vector<2x64xf32>
    %403 = arith.mulf %402, %329 : vector<2x64xf32>
    %c18_61 = arith.constant 18 : index
    %404 = memref.load %arg2[%c18_61] : memref<65xf32, #tpu.memory_space<smem>>
    %405 = vector.broadcast %404 : f32 to vector<2x64xf32>
    %406 = arith.mulf %405, %330 : vector<2x64xf32>
    %c19_62 = arith.constant 19 : index
    %407 = memref.load %arg2[%c19_62] : memref<65xf32, #tpu.memory_space<smem>>
    %408 = vector.broadcast %407 : f32 to vector<2x64xf32>
    %409 = arith.mulf %408, %331 : vector<2x64xf32>
    %c20_63 = arith.constant 20 : index
    %410 = memref.load %arg2[%c20_63] : memref<65xf32, #tpu.memory_space<smem>>
    %411 = vector.broadcast %410 : f32 to vector<2x64xf32>
    %412 = arith.mulf %411, %332 : vector<2x64xf32>
    %c21_64 = arith.constant 21 : index
    %413 = memref.load %arg2[%c21_64] : memref<65xf32, #tpu.memory_space<smem>>
    %414 = vector.broadcast %413 : f32 to vector<2x64xf32>
    %415 = arith.mulf %414, %333 : vector<2x64xf32>
    %c22_65 = arith.constant 22 : index
    %416 = memref.load %arg2[%c22_65] : memref<65xf32, #tpu.memory_space<smem>>
    %417 = vector.broadcast %416 : f32 to vector<2x64xf32>
    %418 = arith.mulf %417, %334 : vector<2x64xf32>
    %c23_66 = arith.constant 23 : index
    %419 = memref.load %arg2[%c23_66] : memref<65xf32, #tpu.memory_space<smem>>
    %420 = vector.broadcast %419 : f32 to vector<2x64xf32>
    %421 = arith.mulf %420, %335 : vector<2x64xf32>
    %422 = arith.addf %400, %403 : vector<2x64xf32>
    %423 = arith.addf %406, %409 : vector<2x64xf32>
    %424 = arith.addf %412, %415 : vector<2x64xf32>
    %425 = arith.addf %418, %421 : vector<2x64xf32>
    %426 = arith.addf %422, %423 : vector<2x64xf32>
    %427 = arith.addf %424, %425 : vector<2x64xf32>
    %428 = arith.addf %426, %427 : vector<2x64xf32>
    %c24_67 = arith.constant 24 : index
    %429 = memref.load %arg2[%c24_67] : memref<65xf32, #tpu.memory_space<smem>>
    %430 = vector.broadcast %429 : f32 to vector<2x64xf32>
    %431 = arith.mulf %430, %328 : vector<2x64xf32>
    %c25_68 = arith.constant 25 : index
    %432 = memref.load %arg2[%c25_68] : memref<65xf32, #tpu.memory_space<smem>>
    %433 = vector.broadcast %432 : f32 to vector<2x64xf32>
    %434 = arith.mulf %433, %329 : vector<2x64xf32>
    %c26_69 = arith.constant 26 : index
    %435 = memref.load %arg2[%c26_69] : memref<65xf32, #tpu.memory_space<smem>>
    %436 = vector.broadcast %435 : f32 to vector<2x64xf32>
    %437 = arith.mulf %436, %330 : vector<2x64xf32>
    %c27_70 = arith.constant 27 : index
    %438 = memref.load %arg2[%c27_70] : memref<65xf32, #tpu.memory_space<smem>>
    %439 = vector.broadcast %438 : f32 to vector<2x64xf32>
    %440 = arith.mulf %439, %331 : vector<2x64xf32>
    %c28_71 = arith.constant 28 : index
    %441 = memref.load %arg2[%c28_71] : memref<65xf32, #tpu.memory_space<smem>>
    %442 = vector.broadcast %441 : f32 to vector<2x64xf32>
    %443 = arith.mulf %442, %332 : vector<2x64xf32>
    %c29_72 = arith.constant 29 : index
    %444 = memref.load %arg2[%c29_72] : memref<65xf32, #tpu.memory_space<smem>>
    %445 = vector.broadcast %444 : f32 to vector<2x64xf32>
    %446 = arith.mulf %445, %333 : vector<2x64xf32>
    %c30_73 = arith.constant 30 : index
    %447 = memref.load %arg2[%c30_73] : memref<65xf32, #tpu.memory_space<smem>>
    %448 = vector.broadcast %447 : f32 to vector<2x64xf32>
    %449 = arith.mulf %448, %334 : vector<2x64xf32>
    %c31_74 = arith.constant 31 : index
    %450 = memref.load %arg2[%c31_74] : memref<65xf32, #tpu.memory_space<smem>>
    %451 = vector.broadcast %450 : f32 to vector<2x64xf32>
    %452 = arith.mulf %451, %335 : vector<2x64xf32>
    %453 = arith.addf %431, %434 : vector<2x64xf32>
    %454 = arith.addf %437, %440 : vector<2x64xf32>
    %455 = arith.addf %443, %446 : vector<2x64xf32>
    %456 = arith.addf %449, %452 : vector<2x64xf32>
    %457 = arith.addf %453, %454 : vector<2x64xf32>
    %458 = arith.addf %455, %456 : vector<2x64xf32>
    %459 = arith.addf %457, %458 : vector<2x64xf32>
    %c32_75 = arith.constant 32 : index
    %460 = memref.load %arg2[%c32_75] : memref<65xf32, #tpu.memory_space<smem>>
    %461 = vector.broadcast %460 : f32 to vector<2x64xf32>
    %462 = arith.mulf %461, %328 : vector<2x64xf32>
    %c33_76 = arith.constant 33 : index
    %463 = memref.load %arg2[%c33_76] : memref<65xf32, #tpu.memory_space<smem>>
    %464 = vector.broadcast %463 : f32 to vector<2x64xf32>
    %465 = arith.mulf %464, %329 : vector<2x64xf32>
    %c34_77 = arith.constant 34 : index
    %466 = memref.load %arg2[%c34_77] : memref<65xf32, #tpu.memory_space<smem>>
    %467 = vector.broadcast %466 : f32 to vector<2x64xf32>
    %468 = arith.mulf %467, %330 : vector<2x64xf32>
    %c35_78 = arith.constant 35 : index
    %469 = memref.load %arg2[%c35_78] : memref<65xf32, #tpu.memory_space<smem>>
    %470 = vector.broadcast %469 : f32 to vector<2x64xf32>
    %471 = arith.mulf %470, %331 : vector<2x64xf32>
    %c36_79 = arith.constant 36 : index
    %472 = memref.load %arg2[%c36_79] : memref<65xf32, #tpu.memory_space<smem>>
    %473 = vector.broadcast %472 : f32 to vector<2x64xf32>
    %474 = arith.mulf %473, %332 : vector<2x64xf32>
    %c37_80 = arith.constant 37 : index
    %475 = memref.load %arg2[%c37_80] : memref<65xf32, #tpu.memory_space<smem>>
    %476 = vector.broadcast %475 : f32 to vector<2x64xf32>
    %477 = arith.mulf %476, %333 : vector<2x64xf32>
    %c38_81 = arith.constant 38 : index
    %478 = memref.load %arg2[%c38_81] : memref<65xf32, #tpu.memory_space<smem>>
    %479 = vector.broadcast %478 : f32 to vector<2x64xf32>
    %480 = arith.mulf %479, %334 : vector<2x64xf32>
    %c39_82 = arith.constant 39 : index
    %481 = memref.load %arg2[%c39_82] : memref<65xf32, #tpu.memory_space<smem>>
    %482 = vector.broadcast %481 : f32 to vector<2x64xf32>
    %483 = arith.mulf %482, %335 : vector<2x64xf32>
    %484 = arith.addf %462, %465 : vector<2x64xf32>
    %485 = arith.addf %468, %471 : vector<2x64xf32>
    %486 = arith.addf %474, %477 : vector<2x64xf32>
    %487 = arith.addf %480, %483 : vector<2x64xf32>
    %488 = arith.addf %484, %485 : vector<2x64xf32>
    %489 = arith.addf %486, %487 : vector<2x64xf32>
    %490 = arith.addf %488, %489 : vector<2x64xf32>
    %c40_83 = arith.constant 40 : index
    %491 = memref.load %arg2[%c40_83] : memref<65xf32, #tpu.memory_space<smem>>
    %492 = vector.broadcast %491 : f32 to vector<2x64xf32>
    %493 = arith.mulf %492, %328 : vector<2x64xf32>
    %c41_84 = arith.constant 41 : index
    %494 = memref.load %arg2[%c41_84] : memref<65xf32, #tpu.memory_space<smem>>
    %495 = vector.broadcast %494 : f32 to vector<2x64xf32>
    %496 = arith.mulf %495, %329 : vector<2x64xf32>
    %c42_85 = arith.constant 42 : index
    %497 = memref.load %arg2[%c42_85] : memref<65xf32, #tpu.memory_space<smem>>
    %498 = vector.broadcast %497 : f32 to vector<2x64xf32>
    %499 = arith.mulf %498, %330 : vector<2x64xf32>
    %c43_86 = arith.constant 43 : index
    %500 = memref.load %arg2[%c43_86] : memref<65xf32, #tpu.memory_space<smem>>
    %501 = vector.broadcast %500 : f32 to vector<2x64xf32>
    %502 = arith.mulf %501, %331 : vector<2x64xf32>
    %c44_87 = arith.constant 44 : index
    %503 = memref.load %arg2[%c44_87] : memref<65xf32, #tpu.memory_space<smem>>
    %504 = vector.broadcast %503 : f32 to vector<2x64xf32>
    %505 = arith.mulf %504, %332 : vector<2x64xf32>
    %c45_88 = arith.constant 45 : index
    %506 = memref.load %arg2[%c45_88] : memref<65xf32, #tpu.memory_space<smem>>
    %507 = vector.broadcast %506 : f32 to vector<2x64xf32>
    %508 = arith.mulf %507, %333 : vector<2x64xf32>
    %c46_89 = arith.constant 46 : index
    %509 = memref.load %arg2[%c46_89] : memref<65xf32, #tpu.memory_space<smem>>
    %510 = vector.broadcast %509 : f32 to vector<2x64xf32>
    %511 = arith.mulf %510, %334 : vector<2x64xf32>
    %c47_90 = arith.constant 47 : index
    %512 = memref.load %arg2[%c47_90] : memref<65xf32, #tpu.memory_space<smem>>
    %513 = vector.broadcast %512 : f32 to vector<2x64xf32>
    %514 = arith.mulf %513, %335 : vector<2x64xf32>
    %515 = arith.addf %493, %496 : vector<2x64xf32>
    %516 = arith.addf %499, %502 : vector<2x64xf32>
    %517 = arith.addf %505, %508 : vector<2x64xf32>
    %518 = arith.addf %511, %514 : vector<2x64xf32>
    %519 = arith.addf %515, %516 : vector<2x64xf32>
    %520 = arith.addf %517, %518 : vector<2x64xf32>
    %521 = arith.addf %519, %520 : vector<2x64xf32>
    %c48_91 = arith.constant 48 : index
    %522 = memref.load %arg2[%c48_91] : memref<65xf32, #tpu.memory_space<smem>>
    %523 = vector.broadcast %522 : f32 to vector<2x64xf32>
    %524 = arith.mulf %523, %328 : vector<2x64xf32>
    %c49_92 = arith.constant 49 : index
    %525 = memref.load %arg2[%c49_92] : memref<65xf32, #tpu.memory_space<smem>>
    %526 = vector.broadcast %525 : f32 to vector<2x64xf32>
    %527 = arith.mulf %526, %329 : vector<2x64xf32>
    %c50_93 = arith.constant 50 : index
    %528 = memref.load %arg2[%c50_93] : memref<65xf32, #tpu.memory_space<smem>>
    %529 = vector.broadcast %528 : f32 to vector<2x64xf32>
    %530 = arith.mulf %529, %330 : vector<2x64xf32>
    %c51_94 = arith.constant 51 : index
    %531 = memref.load %arg2[%c51_94] : memref<65xf32, #tpu.memory_space<smem>>
    %532 = vector.broadcast %531 : f32 to vector<2x64xf32>
    %533 = arith.mulf %532, %331 : vector<2x64xf32>
    %c52_95 = arith.constant 52 : index
    %534 = memref.load %arg2[%c52_95] : memref<65xf32, #tpu.memory_space<smem>>
    %535 = vector.broadcast %534 : f32 to vector<2x64xf32>
    %536 = arith.mulf %535, %332 : vector<2x64xf32>
    %c53_96 = arith.constant 53 : index
    %537 = memref.load %arg2[%c53_96] : memref<65xf32, #tpu.memory_space<smem>>
    %538 = vector.broadcast %537 : f32 to vector<2x64xf32>
    %539 = arith.mulf %538, %333 : vector<2x64xf32>
    %c54_97 = arith.constant 54 : index
    %540 = memref.load %arg2[%c54_97] : memref<65xf32, #tpu.memory_space<smem>>
    %541 = vector.broadcast %540 : f32 to vector<2x64xf32>
    %542 = arith.mulf %541, %334 : vector<2x64xf32>
    %c55_98 = arith.constant 55 : index
    %543 = memref.load %arg2[%c55_98] : memref<65xf32, #tpu.memory_space<smem>>
    %544 = vector.broadcast %543 : f32 to vector<2x64xf32>
    %545 = arith.mulf %544, %335 : vector<2x64xf32>
    %546 = arith.addf %524, %527 : vector<2x64xf32>
    %547 = arith.addf %530, %533 : vector<2x64xf32>
    %548 = arith.addf %536, %539 : vector<2x64xf32>
    %549 = arith.addf %542, %545 : vector<2x64xf32>
    %550 = arith.addf %546, %547 : vector<2x64xf32>
    %551 = arith.addf %548, %549 : vector<2x64xf32>
    %552 = arith.addf %550, %551 : vector<2x64xf32>
    %c56_99 = arith.constant 56 : index
    %553 = memref.load %arg2[%c56_99] : memref<65xf32, #tpu.memory_space<smem>>
    %554 = vector.broadcast %553 : f32 to vector<2x64xf32>
    %555 = arith.mulf %554, %328 : vector<2x64xf32>
    %c57_100 = arith.constant 57 : index
    %556 = memref.load %arg2[%c57_100] : memref<65xf32, #tpu.memory_space<smem>>
    %557 = vector.broadcast %556 : f32 to vector<2x64xf32>
    %558 = arith.mulf %557, %329 : vector<2x64xf32>
    %c58_101 = arith.constant 58 : index
    %559 = memref.load %arg2[%c58_101] : memref<65xf32, #tpu.memory_space<smem>>
    %560 = vector.broadcast %559 : f32 to vector<2x64xf32>
    %561 = arith.mulf %560, %330 : vector<2x64xf32>
    %c59_102 = arith.constant 59 : index
    %562 = memref.load %arg2[%c59_102] : memref<65xf32, #tpu.memory_space<smem>>
    %563 = vector.broadcast %562 : f32 to vector<2x64xf32>
    %564 = arith.mulf %563, %331 : vector<2x64xf32>
    %c60_103 = arith.constant 60 : index
    %565 = memref.load %arg2[%c60_103] : memref<65xf32, #tpu.memory_space<smem>>
    %566 = vector.broadcast %565 : f32 to vector<2x64xf32>
    %567 = arith.mulf %566, %332 : vector<2x64xf32>
    %c61_104 = arith.constant 61 : index
    %568 = memref.load %arg2[%c61_104] : memref<65xf32, #tpu.memory_space<smem>>
    %569 = vector.broadcast %568 : f32 to vector<2x64xf32>
    %570 = arith.mulf %569, %333 : vector<2x64xf32>
    %c62_105 = arith.constant 62 : index
    %571 = memref.load %arg2[%c62_105] : memref<65xf32, #tpu.memory_space<smem>>
    %572 = vector.broadcast %571 : f32 to vector<2x64xf32>
    %573 = arith.mulf %572, %334 : vector<2x64xf32>
    %c63_106 = arith.constant 63 : index
    %574 = memref.load %arg2[%c63_106] : memref<65xf32, #tpu.memory_space<smem>>
    %575 = vector.broadcast %574 : f32 to vector<2x64xf32>
    %576 = arith.mulf %575, %335 : vector<2x64xf32>
    %577 = arith.addf %555, %558 : vector<2x64xf32>
    %578 = arith.addf %561, %564 : vector<2x64xf32>
    %579 = arith.addf %567, %570 : vector<2x64xf32>
    %580 = arith.addf %573, %576 : vector<2x64xf32>
    %581 = arith.addf %577, %578 : vector<2x64xf32>
    %582 = arith.addf %579, %580 : vector<2x64xf32>
    %583 = arith.addf %581, %582 : vector<2x64xf32>
    %584 = tpu.concatenate %366, %397, %428, %459, %490, %521, %552, %583 in 0 : vector<2x64xf32>, vector<2x64xf32>, vector<2x64xf32>, vector<2x64xf32>, vector<2x64xf32>, vector<2x64xf32>, vector<2x64xf32>, vector<2x64xf32> -> vector<16x64xf32>
    %585 = vector.broadcast %58 : vector<1x64xf32> to vector<16x64xf32>
    %586 = arith.addf %584, %585 : vector<16x64xf32>
    %587 = arith.addf %586, %53 : vector<16x64xf32>
    %cst_107 = arith.constant 0.000000e+00 : f32
    %588 = vector.broadcast %cst_107 : f32 to vector<16x64xf32>
    %589 = arith.cmpf oge, %587, %588 : vector<16x64xf32>
    %590 = vector.broadcast %0 : f32 to vector<16x64xf32>
    %591 = arith.mulf %590, %587 : vector<16x64xf32>
    %592 = arith.select %589, %587, %591 : vector<16x64xi1>, vector<16x64xf32>
    %cst_108 = arith.constant dense<0.000000e+00> : vector<16x32xf32>
    %593 = tpu.matmul %592, %56, %cst_108 {dimension_numbers = #tpu.dot_dimension_numbers<[1], [0], [0], [1], [0, 0, 1, 1], [], []>} : vector<16x64xf32>, vector<64x32xf32>, vector<16x32xf32> -> vector<16x32xf32>
    %594 = vector.extract_strided_slice %593 {offsets = [0, 0], sizes = [2, 32], strides = [1, 1]} : vector<16x32xf32> to vector<2x32xf32>
    %595 = vector.extract_strided_slice %593 {offsets = [2, 0], sizes = [2, 32], strides = [1, 1]} : vector<16x32xf32> to vector<2x32xf32>
    %596 = vector.extract_strided_slice %593 {offsets = [4, 0], sizes = [2, 32], strides = [1, 1]} : vector<16x32xf32> to vector<2x32xf32>
    %597 = vector.extract_strided_slice %593 {offsets = [6, 0], sizes = [2, 32], strides = [1, 1]} : vector<16x32xf32> to vector<2x32xf32>
    %598 = vector.extract_strided_slice %593 {offsets = [8, 0], sizes = [2, 32], strides = [1, 1]} : vector<16x32xf32> to vector<2x32xf32>
    %599 = vector.extract_strided_slice %593 {offsets = [10, 0], sizes = [2, 32], strides = [1, 1]} : vector<16x32xf32> to vector<2x32xf32>
    %600 = vector.extract_strided_slice %593 {offsets = [12, 0], sizes = [2, 32], strides = [1, 1]} : vector<16x32xf32> to vector<2x32xf32>
    %601 = vector.extract_strided_slice %593 {offsets = [14, 0], sizes = [2, 32], strides = [1, 1]} : vector<16x32xf32> to vector<2x32xf32>
    %c0_109 = arith.constant 0 : index
    %602 = memref.load %arg2[%c0_109] : memref<65xf32, #tpu.memory_space<smem>>
    %603 = vector.broadcast %602 : f32 to vector<2x32xf32>
    %604 = arith.mulf %603, %594 : vector<2x32xf32>
    %c1_110 = arith.constant 1 : index
    %605 = memref.load %arg2[%c1_110] : memref<65xf32, #tpu.memory_space<smem>>
    %606 = vector.broadcast %605 : f32 to vector<2x32xf32>
    %607 = arith.mulf %606, %595 : vector<2x32xf32>
    %c2_111 = arith.constant 2 : index
    %608 = memref.load %arg2[%c2_111] : memref<65xf32, #tpu.memory_space<smem>>
    %609 = vector.broadcast %608 : f32 to vector<2x32xf32>
    %610 = arith.mulf %609, %596 : vector<2x32xf32>
    %c3_112 = arith.constant 3 : index
    %611 = memref.load %arg2[%c3_112] : memref<65xf32, #tpu.memory_space<smem>>
    %612 = vector.broadcast %611 : f32 to vector<2x32xf32>
    %613 = arith.mulf %612, %597 : vector<2x32xf32>
    %c4_113 = arith.constant 4 : index
    %614 = memref.load %arg2[%c4_113] : memref<65xf32, #tpu.memory_space<smem>>
    %615 = vector.broadcast %614 : f32 to vector<2x32xf32>
    %616 = arith.mulf %615, %598 : vector<2x32xf32>
    %c5_114 = arith.constant 5 : index
    %617 = memref.load %arg2[%c5_114] : memref<65xf32, #tpu.memory_space<smem>>
    %618 = vector.broadcast %617 : f32 to vector<2x32xf32>
    %619 = arith.mulf %618, %599 : vector<2x32xf32>
    %c6_115 = arith.constant 6 : index
    %620 = memref.load %arg2[%c6_115] : memref<65xf32, #tpu.memory_space<smem>>
    %621 = vector.broadcast %620 : f32 to vector<2x32xf32>
    %622 = arith.mulf %621, %600 : vector<2x32xf32>
    %c7_116 = arith.constant 7 : index
    %623 = memref.load %arg2[%c7_116] : memref<65xf32, #tpu.memory_space<smem>>
    %624 = vector.broadcast %623 : f32 to vector<2x32xf32>
    %625 = arith.mulf %624, %601 : vector<2x32xf32>
    %626 = arith.addf %604, %607 : vector<2x32xf32>
    %627 = arith.addf %610, %613 : vector<2x32xf32>
    %628 = arith.addf %616, %619 : vector<2x32xf32>
    %629 = arith.addf %622, %625 : vector<2x32xf32>
    %630 = arith.addf %626, %627 : vector<2x32xf32>
    %631 = arith.addf %628, %629 : vector<2x32xf32>
    %632 = arith.addf %630, %631 : vector<2x32xf32>
    %c8_117 = arith.constant 8 : index
    %633 = memref.load %arg2[%c8_117] : memref<65xf32, #tpu.memory_space<smem>>
    %634 = vector.broadcast %633 : f32 to vector<2x32xf32>
    %635 = arith.mulf %634, %594 : vector<2x32xf32>
    %c9_118 = arith.constant 9 : index
    %636 = memref.load %arg2[%c9_118] : memref<65xf32, #tpu.memory_space<smem>>
    %637 = vector.broadcast %636 : f32 to vector<2x32xf32>
    %638 = arith.mulf %637, %595 : vector<2x32xf32>
    %c10_119 = arith.constant 10 : index
    %639 = memref.load %arg2[%c10_119] : memref<65xf32, #tpu.memory_space<smem>>
    %640 = vector.broadcast %639 : f32 to vector<2x32xf32>
    %641 = arith.mulf %640, %596 : vector<2x32xf32>
    %c11_120 = arith.constant 11 : index
    %642 = memref.load %arg2[%c11_120] : memref<65xf32, #tpu.memory_space<smem>>
    %643 = vector.broadcast %642 : f32 to vector<2x32xf32>
    %644 = arith.mulf %643, %597 : vector<2x32xf32>
    %c12_121 = arith.constant 12 : index
    %645 = memref.load %arg2[%c12_121] : memref<65xf32, #tpu.memory_space<smem>>
    %646 = vector.broadcast %645 : f32 to vector<2x32xf32>
    %647 = arith.mulf %646, %598 : vector<2x32xf32>
    %c13_122 = arith.constant 13 : index
    %648 = memref.load %arg2[%c13_122] : memref<65xf32, #tpu.memory_space<smem>>
    %649 = vector.broadcast %648 : f32 to vector<2x32xf32>
    %650 = arith.mulf %649, %599 : vector<2x32xf32>
    %c14_123 = arith.constant 14 : index
    %651 = memref.load %arg2[%c14_123] : memref<65xf32, #tpu.memory_space<smem>>
    %652 = vector.broadcast %651 : f32 to vector<2x32xf32>
    %653 = arith.mulf %652, %600 : vector<2x32xf32>
    %c15_124 = arith.constant 15 : index
    %654 = memref.load %arg2[%c15_124] : memref<65xf32, #tpu.memory_space<smem>>
    %655 = vector.broadcast %654 : f32 to vector<2x32xf32>
    %656 = arith.mulf %655, %601 : vector<2x32xf32>
    %657 = arith.addf %635, %638 : vector<2x32xf32>
    %658 = arith.addf %641, %644 : vector<2x32xf32>
    %659 = arith.addf %647, %650 : vector<2x32xf32>
    %660 = arith.addf %653, %656 : vector<2x32xf32>
    %661 = arith.addf %657, %658 : vector<2x32xf32>
    %662 = arith.addf %659, %660 : vector<2x32xf32>
    %663 = arith.addf %661, %662 : vector<2x32xf32>
    %c16_125 = arith.constant 16 : index
    %664 = memref.load %arg2[%c16_125] : memref<65xf32, #tpu.memory_space<smem>>
    %665 = vector.broadcast %664 : f32 to vector<2x32xf32>
    %666 = arith.mulf %665, %594 : vector<2x32xf32>
    %c17_126 = arith.constant 17 : index
    %667 = memref.load %arg2[%c17_126] : memref<65xf32, #tpu.memory_space<smem>>
    %668 = vector.broadcast %667 : f32 to vector<2x32xf32>
    %669 = arith.mulf %668, %595 : vector<2x32xf32>
    %c18_127 = arith.constant 18 : index
    %670 = memref.load %arg2[%c18_127] : memref<65xf32, #tpu.memory_space<smem>>
    %671 = vector.broadcast %670 : f32 to vector<2x32xf32>
    %672 = arith.mulf %671, %596 : vector<2x32xf32>
    %c19_128 = arith.constant 19 : index
    %673 = memref.load %arg2[%c19_128] : memref<65xf32, #tpu.memory_space<smem>>
    %674 = vector.broadcast %673 : f32 to vector<2x32xf32>
    %675 = arith.mulf %674, %597 : vector<2x32xf32>
    %c20_129 = arith.constant 20 : index
    %676 = memref.load %arg2[%c20_129] : memref<65xf32, #tpu.memory_space<smem>>
    %677 = vector.broadcast %676 : f32 to vector<2x32xf32>
    %678 = arith.mulf %677, %598 : vector<2x32xf32>
    %c21_130 = arith.constant 21 : index
    %679 = memref.load %arg2[%c21_130] : memref<65xf32, #tpu.memory_space<smem>>
    %680 = vector.broadcast %679 : f32 to vector<2x32xf32>
    %681 = arith.mulf %680, %599 : vector<2x32xf32>
    %c22_131 = arith.constant 22 : index
    %682 = memref.load %arg2[%c22_131] : memref<65xf32, #tpu.memory_space<smem>>
    %683 = vector.broadcast %682 : f32 to vector<2x32xf32>
    %684 = arith.mulf %683, %600 : vector<2x32xf32>
    %c23_132 = arith.constant 23 : index
    %685 = memref.load %arg2[%c23_132] : memref<65xf32, #tpu.memory_space<smem>>
    %686 = vector.broadcast %685 : f32 to vector<2x32xf32>
    %687 = arith.mulf %686, %601 : vector<2x32xf32>
    %688 = arith.addf %666, %669 : vector<2x32xf32>
    %689 = arith.addf %672, %675 : vector<2x32xf32>
    %690 = arith.addf %678, %681 : vector<2x32xf32>
    %691 = arith.addf %684, %687 : vector<2x32xf32>
    %692 = arith.addf %688, %689 : vector<2x32xf32>
    %693 = arith.addf %690, %691 : vector<2x32xf32>
    %694 = arith.addf %692, %693 : vector<2x32xf32>
    %c24_133 = arith.constant 24 : index
    %695 = memref.load %arg2[%c24_133] : memref<65xf32, #tpu.memory_space<smem>>
    %696 = vector.broadcast %695 : f32 to vector<2x32xf32>
    %697 = arith.mulf %696, %594 : vector<2x32xf32>
    %c25_134 = arith.constant 25 : index
    %698 = memref.load %arg2[%c25_134] : memref<65xf32, #tpu.memory_space<smem>>
    %699 = vector.broadcast %698 : f32 to vector<2x32xf32>
    %700 = arith.mulf %699, %595 : vector<2x32xf32>
    %c26_135 = arith.constant 26 : index
    %701 = memref.load %arg2[%c26_135] : memref<65xf32, #tpu.memory_space<smem>>
    %702 = vector.broadcast %701 : f32 to vector<2x32xf32>
    %703 = arith.mulf %702, %596 : vector<2x32xf32>
    %c27_136 = arith.constant 27 : index
    %704 = memref.load %arg2[%c27_136] : memref<65xf32, #tpu.memory_space<smem>>
    %705 = vector.broadcast %704 : f32 to vector<2x32xf32>
    %706 = arith.mulf %705, %597 : vector<2x32xf32>
    %c28_137 = arith.constant 28 : index
    %707 = memref.load %arg2[%c28_137] : memref<65xf32, #tpu.memory_space<smem>>
    %708 = vector.broadcast %707 : f32 to vector<2x32xf32>
    %709 = arith.mulf %708, %598 : vector<2x32xf32>
    %c29_138 = arith.constant 29 : index
    %710 = memref.load %arg2[%c29_138] : memref<65xf32, #tpu.memory_space<smem>>
    %711 = vector.broadcast %710 : f32 to vector<2x32xf32>
    %712 = arith.mulf %711, %599 : vector<2x32xf32>
    %c30_139 = arith.constant 30 : index
    %713 = memref.load %arg2[%c30_139] : memref<65xf32, #tpu.memory_space<smem>>
    %714 = vector.broadcast %713 : f32 to vector<2x32xf32>
    %715 = arith.mulf %714, %600 : vector<2x32xf32>
    %c31_140 = arith.constant 31 : index
    %716 = memref.load %arg2[%c31_140] : memref<65xf32, #tpu.memory_space<smem>>
    %717 = vector.broadcast %716 : f32 to vector<2x32xf32>
    %718 = arith.mulf %717, %601 : vector<2x32xf32>
    %719 = arith.addf %697, %700 : vector<2x32xf32>
    %720 = arith.addf %703, %706 : vector<2x32xf32>
    %721 = arith.addf %709, %712 : vector<2x32xf32>
    %722 = arith.addf %715, %718 : vector<2x32xf32>
    %723 = arith.addf %719, %720 : vector<2x32xf32>
    %724 = arith.addf %721, %722 : vector<2x32xf32>
    %725 = arith.addf %723, %724 : vector<2x32xf32>
    %c32_141 = arith.constant 32 : index
    %726 = memref.load %arg2[%c32_141] : memref<65xf32, #tpu.memory_space<smem>>
    %727 = vector.broadcast %726 : f32 to vector<2x32xf32>
    %728 = arith.mulf %727, %594 : vector<2x32xf32>
    %c33_142 = arith.constant 33 : index
    %729 = memref.load %arg2[%c33_142] : memref<65xf32, #tpu.memory_space<smem>>
    %730 = vector.broadcast %729 : f32 to vector<2x32xf32>
    %731 = arith.mulf %730, %595 : vector<2x32xf32>
    %c34_143 = arith.constant 34 : index
    %732 = memref.load %arg2[%c34_143] : memref<65xf32, #tpu.memory_space<smem>>
    %733 = vector.broadcast %732 : f32 to vector<2x32xf32>
    %734 = arith.mulf %733, %596 : vector<2x32xf32>
    %c35_144 = arith.constant 35 : index
    %735 = memref.load %arg2[%c35_144] : memref<65xf32, #tpu.memory_space<smem>>
    %736 = vector.broadcast %735 : f32 to vector<2x32xf32>
    %737 = arith.mulf %736, %597 : vector<2x32xf32>
    %c36_145 = arith.constant 36 : index
    %738 = memref.load %arg2[%c36_145] : memref<65xf32, #tpu.memory_space<smem>>
    %739 = vector.broadcast %738 : f32 to vector<2x32xf32>
    %740 = arith.mulf %739, %598 : vector<2x32xf32>
    %c37_146 = arith.constant 37 : index
    %741 = memref.load %arg2[%c37_146] : memref<65xf32, #tpu.memory_space<smem>>
    %742 = vector.broadcast %741 : f32 to vector<2x32xf32>
    %743 = arith.mulf %742, %599 : vector<2x32xf32>
    %c38_147 = arith.constant 38 : index
    %744 = memref.load %arg2[%c38_147] : memref<65xf32, #tpu.memory_space<smem>>
    %745 = vector.broadcast %744 : f32 to vector<2x32xf32>
    %746 = arith.mulf %745, %600 : vector<2x32xf32>
    %c39_148 = arith.constant 39 : index
    %747 = memref.load %arg2[%c39_148] : memref<65xf32, #tpu.memory_space<smem>>
    %748 = vector.broadcast %747 : f32 to vector<2x32xf32>
    %749 = arith.mulf %748, %601 : vector<2x32xf32>
    %750 = arith.addf %728, %731 : vector<2x32xf32>
    %751 = arith.addf %734, %737 : vector<2x32xf32>
    %752 = arith.addf %740, %743 : vector<2x32xf32>
    %753 = arith.addf %746, %749 : vector<2x32xf32>
    %754 = arith.addf %750, %751 : vector<2x32xf32>
    %755 = arith.addf %752, %753 : vector<2x32xf32>
    %756 = arith.addf %754, %755 : vector<2x32xf32>
    %c40_149 = arith.constant 40 : index
    %757 = memref.load %arg2[%c40_149] : memref<65xf32, #tpu.memory_space<smem>>
    %758 = vector.broadcast %757 : f32 to vector<2x32xf32>
    %759 = arith.mulf %758, %594 : vector<2x32xf32>
    %c41_150 = arith.constant 41 : index
    %760 = memref.load %arg2[%c41_150] : memref<65xf32, #tpu.memory_space<smem>>
    %761 = vector.broadcast %760 : f32 to vector<2x32xf32>
    %762 = arith.mulf %761, %595 : vector<2x32xf32>
    %c42_151 = arith.constant 42 : index
    %763 = memref.load %arg2[%c42_151] : memref<65xf32, #tpu.memory_space<smem>>
    %764 = vector.broadcast %763 : f32 to vector<2x32xf32>
    %765 = arith.mulf %764, %596 : vector<2x32xf32>
    %c43_152 = arith.constant 43 : index
    %766 = memref.load %arg2[%c43_152] : memref<65xf32, #tpu.memory_space<smem>>
    %767 = vector.broadcast %766 : f32 to vector<2x32xf32>
    %768 = arith.mulf %767, %597 : vector<2x32xf32>
    %c44_153 = arith.constant 44 : index
    %769 = memref.load %arg2[%c44_153] : memref<65xf32, #tpu.memory_space<smem>>
    %770 = vector.broadcast %769 : f32 to vector<2x32xf32>
    %771 = arith.mulf %770, %598 : vector<2x32xf32>
    %c45_154 = arith.constant 45 : index
    %772 = memref.load %arg2[%c45_154] : memref<65xf32, #tpu.memory_space<smem>>
    %773 = vector.broadcast %772 : f32 to vector<2x32xf32>
    %774 = arith.mulf %773, %599 : vector<2x32xf32>
    %c46_155 = arith.constant 46 : index
    %775 = memref.load %arg2[%c46_155] : memref<65xf32, #tpu.memory_space<smem>>
    %776 = vector.broadcast %775 : f32 to vector<2x32xf32>
    %777 = arith.mulf %776, %600 : vector<2x32xf32>
    %c47_156 = arith.constant 47 : index
    %778 = memref.load %arg2[%c47_156] : memref<65xf32, #tpu.memory_space<smem>>
    %779 = vector.broadcast %778 : f32 to vector<2x32xf32>
    %780 = arith.mulf %779, %601 : vector<2x32xf32>
    %781 = arith.addf %759, %762 : vector<2x32xf32>
    %782 = arith.addf %765, %768 : vector<2x32xf32>
    %783 = arith.addf %771, %774 : vector<2x32xf32>
    %784 = arith.addf %777, %780 : vector<2x32xf32>
    %785 = arith.addf %781, %782 : vector<2x32xf32>
    %786 = arith.addf %783, %784 : vector<2x32xf32>
    %787 = arith.addf %785, %786 : vector<2x32xf32>
    %c48_157 = arith.constant 48 : index
    %788 = memref.load %arg2[%c48_157] : memref<65xf32, #tpu.memory_space<smem>>
    %789 = vector.broadcast %788 : f32 to vector<2x32xf32>
    %790 = arith.mulf %789, %594 : vector<2x32xf32>
    %c49_158 = arith.constant 49 : index
    %791 = memref.load %arg2[%c49_158] : memref<65xf32, #tpu.memory_space<smem>>
    %792 = vector.broadcast %791 : f32 to vector<2x32xf32>
    %793 = arith.mulf %792, %595 : vector<2x32xf32>
    %c50_159 = arith.constant 50 : index
    %794 = memref.load %arg2[%c50_159] : memref<65xf32, #tpu.memory_space<smem>>
    %795 = vector.broadcast %794 : f32 to vector<2x32xf32>
    %796 = arith.mulf %795, %596 : vector<2x32xf32>
    %c51_160 = arith.constant 51 : index
    %797 = memref.load %arg2[%c51_160] : memref<65xf32, #tpu.memory_space<smem>>
    %798 = vector.broadcast %797 : f32 to vector<2x32xf32>
    %799 = arith.mulf %798, %597 : vector<2x32xf32>
    %c52_161 = arith.constant 52 : index
    %800 = memref.load %arg2[%c52_161] : memref<65xf32, #tpu.memory_space<smem>>
    %801 = vector.broadcast %800 : f32 to vector<2x32xf32>
    %802 = arith.mulf %801, %598 : vector<2x32xf32>
    %c53_162 = arith.constant 53 : index
    %803 = memref.load %arg2[%c53_162] : memref<65xf32, #tpu.memory_space<smem>>
    %804 = vector.broadcast %803 : f32 to vector<2x32xf32>
    %805 = arith.mulf %804, %599 : vector<2x32xf32>
    %c54_163 = arith.constant 54 : index
    %806 = memref.load %arg2[%c54_163] : memref<65xf32, #tpu.memory_space<smem>>
    %807 = vector.broadcast %806 : f32 to vector<2x32xf32>
    %808 = arith.mulf %807, %600 : vector<2x32xf32>
    %c55_164 = arith.constant 55 : index
    %809 = memref.load %arg2[%c55_164] : memref<65xf32, #tpu.memory_space<smem>>
    %810 = vector.broadcast %809 : f32 to vector<2x32xf32>
    %811 = arith.mulf %810, %601 : vector<2x32xf32>
    %812 = arith.addf %790, %793 : vector<2x32xf32>
    %813 = arith.addf %796, %799 : vector<2x32xf32>
    %814 = arith.addf %802, %805 : vector<2x32xf32>
    %815 = arith.addf %808, %811 : vector<2x32xf32>
    %816 = arith.addf %812, %813 : vector<2x32xf32>
    %817 = arith.addf %814, %815 : vector<2x32xf32>
    %818 = arith.addf %816, %817 : vector<2x32xf32>
    %c56_165 = arith.constant 56 : index
    %819 = memref.load %arg2[%c56_165] : memref<65xf32, #tpu.memory_space<smem>>
    %820 = vector.broadcast %819 : f32 to vector<2x32xf32>
    %821 = arith.mulf %820, %594 : vector<2x32xf32>
    %c57_166 = arith.constant 57 : index
    %822 = memref.load %arg2[%c57_166] : memref<65xf32, #tpu.memory_space<smem>>
    %823 = vector.broadcast %822 : f32 to vector<2x32xf32>
    %824 = arith.mulf %823, %595 : vector<2x32xf32>
    %c58_167 = arith.constant 58 : index
    %825 = memref.load %arg2[%c58_167] : memref<65xf32, #tpu.memory_space<smem>>
    %826 = vector.broadcast %825 : f32 to vector<2x32xf32>
    %827 = arith.mulf %826, %596 : vector<2x32xf32>
    %c59_168 = arith.constant 59 : index
    %828 = memref.load %arg2[%c59_168] : memref<65xf32, #tpu.memory_space<smem>>
    %829 = vector.broadcast %828 : f32 to vector<2x32xf32>
    %830 = arith.mulf %829, %597 : vector<2x32xf32>
    %c60_169 = arith.constant 60 : index
    %831 = memref.load %arg2[%c60_169] : memref<65xf32, #tpu.memory_space<smem>>
    %832 = vector.broadcast %831 : f32 to vector<2x32xf32>
    %833 = arith.mulf %832, %598 : vector<2x32xf32>
    %c61_170 = arith.constant 61 : index
    %834 = memref.load %arg2[%c61_170] : memref<65xf32, #tpu.memory_space<smem>>
    %835 = vector.broadcast %834 : f32 to vector<2x32xf32>
    %836 = arith.mulf %835, %599 : vector<2x32xf32>
    %c62_171 = arith.constant 62 : index
    %837 = memref.load %arg2[%c62_171] : memref<65xf32, #tpu.memory_space<smem>>
    %838 = vector.broadcast %837 : f32 to vector<2x32xf32>
    %839 = arith.mulf %838, %600 : vector<2x32xf32>
    %c63_172 = arith.constant 63 : index
    %840 = memref.load %arg2[%c63_172] : memref<65xf32, #tpu.memory_space<smem>>
    %841 = vector.broadcast %840 : f32 to vector<2x32xf32>
    %842 = arith.mulf %841, %601 : vector<2x32xf32>
    %843 = arith.addf %821, %824 : vector<2x32xf32>
    %844 = arith.addf %827, %830 : vector<2x32xf32>
    %845 = arith.addf %833, %836 : vector<2x32xf32>
    %846 = arith.addf %839, %842 : vector<2x32xf32>
    %847 = arith.addf %843, %844 : vector<2x32xf32>
    %848 = arith.addf %845, %846 : vector<2x32xf32>
    %849 = arith.addf %847, %848 : vector<2x32xf32>
    %850 = tpu.concatenate %632, %663, %694, %725, %756, %787, %818, %849 in 0 : vector<2x32xf32>, vector<2x32xf32>, vector<2x32xf32>, vector<2x32xf32>, vector<2x32xf32>, vector<2x32xf32>, vector<2x32xf32>, vector<2x32xf32> -> vector<16x32xf32>
    %851 = vector.broadcast %59 : vector<1x32xf32> to vector<16x32xf32>
    %852 = arith.addf %850, %851 : vector<16x32xf32>
    %853 = arith.addf %852, %52 : vector<16x32xf32>
    %cst_173 = arith.constant 0.000000e+00 : f32
    %854 = vector.broadcast %cst_173 : f32 to vector<16x32xf32>
    %855 = arith.cmpf oge, %853, %854 : vector<16x32xf32>
    %856 = vector.broadcast %0 : f32 to vector<16x32xf32>
    %857 = arith.mulf %856, %853 : vector<16x32xf32>
    %858 = arith.select %855, %853, %857 : vector<16x32xi1>, vector<16x32xf32>
    %c336 = arith.constant 336 : index
    %c0_174 = arith.constant 0 : index
    %859 = vector.load %arg1[%c336, %c0_174] : memref<592x128xf32, #tpu.memory_space<vmem>>, vector<32x28xf32>
    %860 = vector.extract_strided_slice %858 {offsets = [0, 0], sizes = [2, 32], strides = [1, 1]} : vector<16x32xf32> to vector<2x32xf32>
    %cst_175 = arith.constant dense<0.000000e+00> : vector<2x28xf32>
    %861 = tpu.matmul %860, %859, %cst_175 {dimension_numbers = #tpu.dot_dimension_numbers<[1], [0], [0], [1], [0, 0, 1, 1], [], []>} : vector<2x32xf32>, vector<32x28xf32>, vector<2x28xf32> -> vector<2x28xf32>
    %c368 = arith.constant 368 : index
    %c0_176 = arith.constant 0 : index
    %862 = vector.load %arg1[%c368, %c0_176] : memref<592x128xf32, #tpu.memory_space<vmem>>, vector<32x28xf32>
    %863 = vector.extract_strided_slice %858 {offsets = [2, 0], sizes = [2, 32], strides = [1, 1]} : vector<16x32xf32> to vector<2x32xf32>
    %cst_177 = arith.constant dense<0.000000e+00> : vector<2x28xf32>
    %864 = tpu.matmul %863, %862, %cst_177 {dimension_numbers = #tpu.dot_dimension_numbers<[1], [0], [0], [1], [0, 0, 1, 1], [], []>} : vector<2x32xf32>, vector<32x28xf32>, vector<2x28xf32> -> vector<2x28xf32>
    %c400 = arith.constant 400 : index
    %c0_178 = arith.constant 0 : index
    %865 = vector.load %arg1[%c400, %c0_178] : memref<592x128xf32, #tpu.memory_space<vmem>>, vector<32x28xf32>
    %866 = vector.extract_strided_slice %858 {offsets = [4, 0], sizes = [2, 32], strides = [1, 1]} : vector<16x32xf32> to vector<2x32xf32>
    %cst_179 = arith.constant dense<0.000000e+00> : vector<2x28xf32>
    %867 = tpu.matmul %866, %865, %cst_179 {dimension_numbers = #tpu.dot_dimension_numbers<[1], [0], [0], [1], [0, 0, 1, 1], [], []>} : vector<2x32xf32>, vector<32x28xf32>, vector<2x28xf32> -> vector<2x28xf32>
    %c432 = arith.constant 432 : index
    %c0_180 = arith.constant 0 : index
    %868 = vector.load %arg1[%c432, %c0_180] : memref<592x128xf32, #tpu.memory_space<vmem>>, vector<32x28xf32>
    %869 = vector.extract_strided_slice %858 {offsets = [6, 0], sizes = [2, 32], strides = [1, 1]} : vector<16x32xf32> to vector<2x32xf32>
    %cst_181 = arith.constant dense<0.000000e+00> : vector<2x28xf32>
    %870 = tpu.matmul %869, %868, %cst_181 {dimension_numbers = #tpu.dot_dimension_numbers<[1], [0], [0], [1], [0, 0, 1, 1], [], []>} : vector<2x32xf32>, vector<32x28xf32>, vector<2x28xf32> -> vector<2x28xf32>
    %c464 = arith.constant 464 : index
    %c0_182 = arith.constant 0 : index
    %871 = vector.load %arg1[%c464, %c0_182] : memref<592x128xf32, #tpu.memory_space<vmem>>, vector<32x28xf32>
    %872 = vector.extract_strided_slice %858 {offsets = [8, 0], sizes = [2, 32], strides = [1, 1]} : vector<16x32xf32> to vector<2x32xf32>
    %cst_183 = arith.constant dense<0.000000e+00> : vector<2x28xf32>
    %873 = tpu.matmul %872, %871, %cst_183 {dimension_numbers = #tpu.dot_dimension_numbers<[1], [0], [0], [1], [0, 0, 1, 1], [], []>} : vector<2x32xf32>, vector<32x28xf32>, vector<2x28xf32> -> vector<2x28xf32>
    %c496 = arith.constant 496 : index
    %c0_184 = arith.constant 0 : index
    %874 = vector.load %arg1[%c496, %c0_184] : memref<592x128xf32, #tpu.memory_space<vmem>>, vector<32x28xf32>
    %875 = vector.extract_strided_slice %858 {offsets = [10, 0], sizes = [2, 32], strides = [1, 1]} : vector<16x32xf32> to vector<2x32xf32>
    %cst_185 = arith.constant dense<0.000000e+00> : vector<2x28xf32>
    %876 = tpu.matmul %875, %874, %cst_185 {dimension_numbers = #tpu.dot_dimension_numbers<[1], [0], [0], [1], [0, 0, 1, 1], [], []>} : vector<2x32xf32>, vector<32x28xf32>, vector<2x28xf32> -> vector<2x28xf32>
    %c528 = arith.constant 528 : index
    %c0_186 = arith.constant 0 : index
    %877 = vector.load %arg1[%c528, %c0_186] : memref<592x128xf32, #tpu.memory_space<vmem>>, vector<32x28xf32>
    %878 = vector.extract_strided_slice %858 {offsets = [12, 0], sizes = [2, 32], strides = [1, 1]} : vector<16x32xf32> to vector<2x32xf32>
    %cst_187 = arith.constant dense<0.000000e+00> : vector<2x28xf32>
    %879 = tpu.matmul %878, %877, %cst_187 {dimension_numbers = #tpu.dot_dimension_numbers<[1], [0], [0], [1], [0, 0, 1, 1], [], []>} : vector<2x32xf32>, vector<32x28xf32>, vector<2x28xf32> -> vector<2x28xf32>
    %c560 = arith.constant 560 : index
    %c0_188 = arith.constant 0 : index
    %880 = vector.load %arg1[%c560, %c0_188] : memref<592x128xf32, #tpu.memory_space<vmem>>, vector<32x28xf32>
    %881 = vector.extract_strided_slice %858 {offsets = [14, 0], sizes = [2, 32], strides = [1, 1]} : vector<16x32xf32> to vector<2x32xf32>
    %cst_189 = arith.constant dense<0.000000e+00> : vector<2x28xf32>
    %882 = tpu.matmul %881, %880, %cst_189 {dimension_numbers = #tpu.dot_dimension_numbers<[1], [0], [0], [1], [0, 0, 1, 1], [], []>} : vector<2x32xf32>, vector<32x28xf32>, vector<2x28xf32> -> vector<2x28xf32>
    %883 = arith.addf %861, %864 : vector<2x28xf32>
    %884 = arith.addf %867, %870 : vector<2x28xf32>
    %885 = arith.addf %873, %876 : vector<2x28xf32>
    %886 = arith.addf %879, %882 : vector<2x28xf32>
    %887 = arith.addf %883, %884 : vector<2x28xf32>
    %888 = arith.addf %885, %886 : vector<2x28xf32>
    %889 = arith.addf %887, %888 : vector<2x28xf32>
    %890 = vector.broadcast %60 : vector<1x28xf32> to vector<2x28xf32>
    %891 = arith.addf %889, %890 : vector<2x28xf32>
    %c0_190 = arith.constant 0 : index
    %c0_191 = arith.constant 0 : index
    %892 = vector.load %arg3[%c0_190, %c0_191] : memref<2x28xf32, #tpu.memory_space<vmem>>, vector<2x28xf32>
    tpu.vector_store %arg3[%c0_190, %c0_191], %891 {strides = array<i32>} : memref<2x28xf32, #tpu.memory_space<vmem>>, vector<2x28xf32>,
    return
  }
}

</mosaic_0001>

<llo_original>
// kernel: forward.1
$region0: #{forward.1}
  #allocation0 [shape = 'u32[]', space=smem, size = 0x4, offset = 0x4, fixed_abs, tag = 'smem constant byte address 0x4 - core index']
  #allocation1 [shape = 'u32[144,128]{1,0:T(1,128)}', space=vmem, size = 0x12000, scoped, tag = 'internal scratch']
  %s0 = inlined_call_operand.vmem [shape: f32[2,256], index: 0, kind: input, shape index: {}]
  %s1 = inlined_call_operand.hbm [shape: f32[592,128], index: 1, kind: input, shape index: {}]
  %s2 = inlined_call_operand.vmem [shape: f32[65], index: 2, kind: input, shape index: {}]
  %s3 = inlined_call_operand.hbm [shape: f32[2,28], index: 3, kind: output, shape index: {}]
  %s4 = sld [smem:[#allocation0]]
  $region30: #{forward.1} parent=0
    _
  %s6 = ssub.s32 1, %s4
  %s7 = scalar_select 0, %s6, %s4
  $region1: #{forward.1} parent=0
    #allocation2 [shape = 'u8[303104]{0}', space=vmem, size = 0x4a000, scoped, tag = 'input window, operand 1, single buffered']
    #allocation3 [shape = 's32[1]{0}', space=sflag, size = 0x4, scoped, tag = 'scoped memory for forward.1']
    #allocation4 [shape = 's32[1]{0}', space=sflag, size = 0x4, scoped, tag = 'scoped memory for forward.1']
    #allocation5 [shape = 's32[1]{0}', space=sflag, size = 0x4, scoped, tag = 'scoped memory for forward.1']
    #allocation6 [shape = 'u8[512]{0}', space=smem, size = 0x200, scoped, tag = 'input window, operand 2, single buffered']
    #allocation7 [shape = 'u8[1024]{0}', space=vmem, size = 0x400, scoped, tag = 'output window, operand 0, single buffered']
    %8 = vsyncpa [#allocation3], 0
    %9 = vsyncpa [#allocation5], 0
    %10 = vsyncpa [#allocation4], 0
    // Predicated region
    $region2: #{forward.1} parent=1 // pred_check
      _
    $region3: #{forward.1} parent=1 // pred_check_branch
      %12 = sbr.rel (0) target = $region5
    $region4: #{forward.1} parent=1 // pred_region
      _
    $region5: #{forward.1} parent=1 // pred_fallthru
      _
    // Predicated region
    $region6: #{forward.1} parent=1 // pred_check
      _
    $region7: #{forward.1} parent=1 // pred_check_branch
      %14 = sbr.rel (0) target = $region9
    $region8: #{forward.1} parent=1 // pred_region
      %s16 = ssub.s32 9472, 9472
      %17 = vsyncadd [#allocation3], %s16
      %s18 = sshll.u32 [#allocation2], 4
      %s19 = int_to_ptr.vmem [resolvable:$true] %s18
      %24 = dma.hbm_to_vmem [thread:$0]  %s1, 9472, %s19, [#allocation3], 128, 128, 8
    $region9: #{forward.1} parent=1 // pred_fallthru
      _
    // Predicated region
    $region10: #{forward.1} parent=1 // pred_check
      _
    $region11: #{forward.1} parent=1 // pred_check_branch
      %26 = sbr.rel (0) target = $region13
    $region12: #{forward.1} parent=1 // pred_region
      %s28 = ssub.s32 16, 16
      %29 = vsyncadd [#allocation5], %s28
      %s31 = sshll.u32 %s2, 4
      %s32 = int_to_ptr.vmem [resolvable:$true] %s31
      %34 = dma.vmem_to_smem %s32, 16, [#allocation6], [#allocation5]
    $region13: #{forward.1} parent=1 // pred_fallthru
      _
    // Predicated region
    $region14: #{forward.1} parent=1 // pred_check
      _
    $region15: #{forward.1} parent=1 // pred_check_branch
      %36 = sbr.rel (0) target = $region17
    $region16: #{forward.1} parent=1 // pred_region
      %37 = dma.done [#allocation3], 9472
    $region17: #{forward.1} parent=1 // pred_fallthru
      _
    // Predicated region
    $region18: #{forward.1} parent=1 // pred_check
      _
    $region19: #{forward.1} parent=1 // pred_check_branch
      %39 = sbr.rel (0) target = $region21
    $region20: #{forward.1} parent=1 // pred_region
      %40 = dma.done [#allocation5], 16
    $region21: #{forward.1} parent=1 // pred_fallthru
      _
    %41 = sfence
    %s42 = sld [smem:[#allocation6 + $0x40]]
    %v43 = vld [vmem:[%s0] sm:$0x3]
    %v44 = vld [vmem:[%s0 + $0x2] sm:$0x3]
    %v45 = vld [vmem:[#allocation2] sm:$0xff]
    %v46 = vld [vmem:[#allocation2 + $0x8] sm:$0xff]
    %v47 = vld [vmem:[#allocation2 + $0x10] sm:$0xff]
    %vm48 = vcmask 195584
    %v50 = vsel %vm48, %v43, 0
    %52 = vmatprep.subr.mxu0 0.0
    %53 = vmatpush1.msra.mxu0 %v45
    %54 = vmatprep.subr.mxu0 0.0
    %55 = vmatpush1.msra.mxu0 %v46
    %56 = vmatprep.subr.mxu0 0.0
    %57 = vmatpush1.msra.mxu0 %v47
    %58 = vmatprep.subr.mxu0 0.0
    %59 = vmatpush1.msra.mxu0 0.0
    %60 = vmatprep.subr.mxu0 0.0
    %61 = vmatpush1.msra.mxu0 0.0
    %62 = vmatprep.subr.mxu0 0.0
    %63 = vmatpush1.msra.mxu0 0.0
    %64 = vmatprep.subr.mxu0 0.0
    %65 = vmatpush1.msra.mxu0 0.0
    %66 = vmatprep.subr.mxu0 0.0
    %67 = vmatpush1.msra.mxu0 0.0
    %68 = vmatprep.subr.mxu0 0.0
    %69 = vmatpush1.msra.mxu0 0.0
    %70 = vmatprep.subr.mxu0 0.0
    %71 = vmatpush1.msra.mxu0 0.0
    %72 = vmatprep.subr.mxu0 0.0
    %73 = vmatpush1.msra.mxu0 0.0
    %74 = vmatprep.subr.mxu0 0.0
    %75 = vmatpush1.msra.mxu0 0.0
    %76 = vmatprep.subr.mxu0 0.0
    %77 = vmatpush1.msra.mxu0 0.0
    %78 = vmatprep.subr.mxu0 0.0
    %79 = vmatpush1.msra.mxu0 0.0
    %80 = vmatprep.subr.mxu0 0.0
    %81 = vmatpush1.msra.mxu0 0.0
    %82 = vmatprep.subr.mxu0 0.0
    %83 = vmatpush1.msra.mxu0 0.0
    %84 = vmatprep.subr.mxu0 0.0
    %85 = vmatpush1.msra.mxu0 0.0
    %86 = vmatprep.subr.mxu0 0.0
    %87 = vmatpush1.msra.mxu0 0.0
    %88 = vmatprep.subr.mxu0 0.0
    %89 = vmatpush1.msra.mxu0 0.0
    %90 = vmatprep.subr.mxu0 0.0
    %91 = vmatpush1.msra.mxu0 0.0
    %92 = vmatprep.subr.mxu0 0.0
    %93 = vmatpush1.msra.mxu0 0.0
    %94 = vmatprep.subr.mxu0 0.0
    %95 = vmatpush1.msra.mxu0 0.0
    %96 = vmatprep.subr.mxu0 0.0
    %97 = vmatpush1.msra.mxu0 0.0
    %98 = vmatprep.subr.mxu0 0.0
    %99 = vmatpush1.msra.mxu0 0.0
    %100 = vmatprep.subr.mxu0 0.0
    %101 = vmatpush1.msra.mxu0 0.0
    %102 = vmatprep.subr.mxu0 0.0
    %103 = vmatpush1.msra.mxu0 0.0
    %104 = vmatprep.subr.mxu0 0.0
    %105 = vmatpush1.msra.mxu0 0.0
    %106 = vmatprep.subr.mxu0 0.0
    %107 = vmatpush1.msra.mxu0 0.0
    %108 = vmatprep.subr.mxu0 0.0
    %109 = vmatpush1.msra.mxu0 0.0
    %110 = vmatprep.subr.mxu0 0.0
    %111 = vmatpush1.msra.mxu0 0.0
    %112 = vmatprep.subr.mxu0 0.0
    %113 = vmatpush1.msra.mxu0 0.0
    %114 = vmatprep.subr.mxu0 0.0
    %115 = vmatpush1.msra.mxu0 0.0
    %116 = vmatprep.mubr.f32.mxu0 0.0
    %117 = vmatmul.mubr.f32.gmra.mrb[0].mxu0 %v50
    %v118 = vpop.f32.mrb[0].mxu0
    %v119 = vadd.f32 0.0, %v118
    %v120 = vpop.f32.mrb[0].mxu0
    %121 = vdwg.mxu0
    %vm122 = vcmp.ge.f32.partialorder %v119, 0.0
    %v123 = vmul.f32 %v119, 0.1
    %v124 = vsel %vm122, %v119, %v123
    %v125 = vld [vmem:[#allocation2 + $0x18] sm:$0xff]
    %v126 = vld [vmem:[#allocation2 + $0x20] sm:$0xff]
    %v127 = vld [vmem:[#allocation2 + $0x28] sm:$0xff]
    %128 = vmatprep.subr.mxu0 0.0
    %129 = vmatpush1.msra.mxu0 %v125
    %130 = vmatprep.subr.mxu0 0.0
    %131 = vmatpush1.msra.mxu0 %v126
    %132 = vmatprep.subr.mxu0 0.0
    %133 = vmatpush1.msra.mxu0 %v127
    %134 = vmatprep.subr.mxu0 0.0
    %135 = vmatpush1.msra.mxu0 0.0
    %136 = vmatprep.subr.mxu0 0.0
    %137 = vmatpush1.msra.mxu0 0.0
    %138 = vmatprep.subr.mxu0 0.0
    %139 = vmatpush1.msra.mxu0 0.0
    %140 = vmatprep.subr.mxu0 0.0
    %141 = vmatpush1.msra.mxu0 0.0
    %142 = vmatprep.subr.mxu0 0.0
    %143 = vmatpush1.msra.mxu0 0.0
    %144 = vmatprep.subr.mxu0 0.0
    %145 = vmatpush1.msra.mxu0 0.0
    %146 = vmatprep.subr.mxu0 0.0
    %147 = vmatpush1.msra.mxu0 0.0
    %148 = vmatprep.subr.mxu0 0.0
    %149 = vmatpush1.msra.mxu0 0.0
    %150 = vmatprep.subr.mxu0 0.0
    %151 = vmatpush1.msra.mxu0 0.0
    %152 = vmatprep.subr.mxu0 0.0
    %153 = vmatpush1.msra.mxu0 0.0
    %154 = vmatprep.subr.mxu0 0.0
    %155 = vmatpush1.msra.mxu0 0.0
    %156 = vmatprep.subr.mxu0 0.0
    %157 = vmatpush1.msra.mxu0 0.0
    %158 = vmatprep.subr.mxu0 0.0
    %159 = vmatpush1.msra.mxu0 0.0
    %160 = vmatprep.subr.mxu0 0.0
    %161 = vmatpush1.msra.mxu0 0.0
    %162 = vmatprep.subr.mxu0 0.0
    %163 = vmatpush1.msra.mxu0 0.0
    %164 = vmatprep.subr.mxu0 0.0
    %165 = vmatpush1.msra.mxu0 0.0
    %166 = vmatprep.subr.mxu0 0.0
    %167 = vmatpush1.msra.mxu0 0.0
    %168 = vmatprep.subr.mxu0 0.0
    %169 = vmatpush1.msra.mxu0 0.0
    %170 = vmatprep.subr.mxu0 0.0
    %171 = vmatpush1.msra.mxu0 0.0
    %172 = vmatprep.subr.mxu0 0.0
    %173 = vmatpush1.msra.mxu0 0.0
    %174 = vmatprep.subr.mxu0 0.0
    %175 = vmatpush1.msra.mxu0 0.0
    %176 = vmatprep.subr.mxu0 0.0
    %177 = vmatpush1.msra.mxu0 0.0
    %178 = vmatprep.subr.mxu0 0.0
    %179 = vmatpush1.msra.mxu0 0.0
    %180 = vmatprep.subr.mxu0 0.0
    %181 = vmatpush1.msra.mxu0 0.0
    %182 = vmatprep.subr.mxu0 0.0
    %183 = vmatpush1.msra.mxu0 0.0
    %184 = vmatprep.subr.mxu0 0.0
    %185 = vmatpush1.msra.mxu0 0.0
    %186 = vmatprep.subr.mxu0 0.0
    %187 = vmatpush1.msra.mxu0 0.0
    %188 = vmatprep.subr.mxu0 0.0
    %189 = vmatpush1.msra.mxu0 0.0
    %190 = vmatprep.subr.mxu0 0.0
    %191 = vmatpush1.msra.mxu0 0.0
    %192 = vmatprep.mubr.f32.mxu0 0.0
    %193 = vmatmul.mubr.f32.gmra.mrb[0].mxu0 %v50
    %v194 = vpop.f32.mrb[0].mxu0
    %v195 = vadd.f32 0.0, %v194
    %v196 = vpop.f32.mrb[0].mxu0
    %197 = vdwg.mxu0
    %vm198 = vcmp.ge.f32.partialorder %v195, 0.0
    %v199 = vmul.f32 %v195, 0.1
    %v200 = vsel %vm198, %v195, %v199
    %v201 = vld [vmem:[#allocation2 + $0x30] sm:$0xff]
    %v202 = vld [vmem:[#allocation2 + $0x38] sm:$0xff]
    %v203 = vld [vmem:[#allocation2 + $0x40] sm:$0xff]
    %204 = vmatprep.subr.mxu0 0.0
    %205 = vmatpush1.msra.mxu0 %v201
    %206 = vmatprep.subr.mxu0 0.0
    %207 = vmatpush1.msra.mxu0 %v202
    %208 = vmatprep.subr.mxu0 0.0
    %209 = vmatpush1.msra.mxu0 %v203
    %210 = vmatprep.subr.mxu0 0.0
    %211 = vmatpush1.msra.mxu0 0.0
    %212 = vmatprep.subr.mxu0 0.0
    %213 = vmatpush1.msra.mxu0 0.0
    %214 = vmatprep.subr.mxu0 0.0
    %215 = vmatpush1.msra.mxu0 0.0
    %216 = vmatprep.subr.mxu0 0.0
    %217 = vmatpush1.msra.mxu0 0.0
    %218 = vmatprep.subr.mxu0 0.0
    %219 = vmatpush1.msra.mxu0 0.0
    %220 = vmatprep.subr.mxu0 0.0
    %221 = vmatpush1.msra.mxu0 0.0
    %222 = vmatprep.subr.mxu0 0.0
    %223 = vmatpush1.msra.mxu0 0.0
    %224 = vmatprep.subr.mxu0 0.0
    %225 = vmatpush1.msra.mxu0 0.0
    %226 = vmatprep.subr.mxu0 0.0
    %227 = vmatpush1.msra.mxu0 0.0
    %228 = vmatprep.subr.mxu0 0.0
    %229 = vmatpush1.msra.mxu0 0.0
    %230 = vmatprep.subr.mxu0 0.0
    %231 = vmatpush1.msra.mxu0 0.0
    %232 = vmatprep.subr.mxu0 0.0
    %233 = vmatpush1.msra.mxu0 0.0
    %234 = vmatprep.subr.mxu0 0.0
    %235 = vmatpush1.msra.mxu0 0.0
    %236 = vmatprep.subr.mxu0 0.0
    %237 = vmatpush1.msra.mxu0 0.0
    %238 = vmatprep.subr.mxu0 0.0
    %239 = vmatpush1.msra.mxu0 0.0
    %240 = vmatprep.subr.mxu0 0.0
    %241 = vmatpush1.msra.mxu0 0.0
    %242 = vmatprep.subr.mxu0 0.0
    %243 = vmatpush1.msra.mxu0 0.0
    %244 = vmatprep.subr.mxu0 0.0
    %245 = vmatpush1.msra.mxu0 0.0
    %246 = vmatprep.subr.mxu0 0.0
    %247 = vmatpush1.msra.mxu0 0.0
    %248 = vmatprep.subr.mxu0 0.0
    %249 = vmatpush1.msra.mxu0 0.0
    %250 = vmatprep.subr.mxu0 0.0
    %251 = vmatpush1.msra.mxu0 0.0
    %252 = vmatprep.subr.mxu0 0.0
    %253 = vmatpush1.msra.mxu0 0.0
    %254 = vmatprep.subr.mxu0 0.0
    %255 = vmatpush1.msra.mxu0 0.0
    %256 = vmatprep.subr.mxu0 0.0
    %257 = vmatpush1.msra.mxu0 0.0
    %258 = vmatprep.subr.mxu0 0.0
    %259 = vmatpush1.msra.mxu0 0.0
    %260 = vmatprep.subr.mxu0 0.0
    %261 = vmatpush1.msra.mxu0 0.0
    %262 = vmatprep.subr.mxu0 0.0
    %263 = vmatpush1.msra.mxu0 0.0
    %264 = vmatprep.subr.mxu0 0.0
    %265 = vmatpush1.msra.mxu0 0.0
    %266 = vmatprep.subr.mxu0 0.0
    %267 = vmatpush1.msra.mxu0 0.0
    %268 = vmatprep.mubr.f32.mxu0 0.0
    %269 = vmatmul.mubr.f32.gmra.mrb[0].mxu0 %v50
    %v270 = vpop.f32.mrb[0].mxu0
    %v271 = vadd.f32 0.0, %v270
    %v272 = vpop.f32.mrb[0].mxu0
    %273 = vdwg.mxu0
    %vm274 = vcmp.ge.f32.partialorder %v271, 0.0
    %v275 = vmul.f32 %v271, 0.1
    %v276 = vsel %vm274, %v271, %v275
    %v277 = vld [vmem:[#allocation2 + $0x48] sm:$0xff]
    %v278 = vld [vmem:[#allocation2 + $0x50] sm:$0xff]
    %v279 = vld [vmem:[#allocation2 + $0x58] sm:$0xff]
    %280 = vmatprep.subr.mxu0 0.0
    %281 = vmatpush1.msra.mxu0 %v277
    %282 = vmatprep.subr.mxu0 0.0
    %283 = vmatpush1.msra.mxu0 %v278
    %284 = vmatprep.subr.mxu0 0.0
    %285 = vmatpush1.msra.mxu0 %v279
    %286 = vmatprep.subr.mxu0 0.0
    %287 = vmatpush1.msra.mxu0 0.0
    %288 = vmatprep.subr.mxu0 0.0
    %289 = vmatpush1.msra.mxu0 0.0
    %290 = vmatprep.subr.mxu0 0.0
    %291 = vmatpush1.msra.mxu0 0.0
    %292 = vmatprep.subr.mxu0 0.0
    %293 = vmatpush1.msra.mxu0 0.0
    %294 = vmatprep.subr.mxu0 0.0
    %295 = vmatpush1.msra.mxu0 0.0
    %296 = vmatprep.subr.mxu0 0.0
    %297 = vmatpush1.msra.mxu0 0.0
    %298 = vmatprep.subr.mxu0 0.0
    %299 = vmatpush1.msra.mxu0 0.0
    %300 = vmatprep.subr.mxu0 0.0
    %301 = vmatpush1.msra.mxu0 0.0
    %302 = vmatprep.subr.mxu0 0.0
    %303 = vmatpush1.msra.mxu0 0.0
    %304 = vmatprep.subr.mxu0 0.0
    %305 = vmatpush1.msra.mxu0 0.0
    %306 = vmatprep.subr.mxu0 0.0
    %307 = vmatpush1.msra.mxu0 0.0
    %308 = vmatprep.subr.mxu0 0.0
    %309 = vmatpush1.msra.mxu0 0.0
    %310 = vmatprep.subr.mxu0 0.0
    %311 = vmatpush1.msra.mxu0 0.0
    %312 = vmatprep.subr.mxu0 0.0
    %313 = vmatpush1.msra.mxu0 0.0
    %314 = vmatprep.subr.mxu0 0.0
    %315 = vmatpush1.msra.mxu0 0.0
    %316 = vmatprep.subr.mxu0 0.0
    %317 = vmatpush1.msra.mxu0 0.0
    %318 = vmatprep.subr.mxu0 0.0
    %319 = vmatpush1.msra.mxu0 0.0
    %320 = vmatprep.subr.mxu0 0.0
    %321 = vmatpush1.msra.mxu0 0.0
    %322 = vmatprep.subr.mxu0 0.0
    %323 = vmatpush1.msra.mxu0 0.0
    %324 = vmatprep.subr.mxu0 0.0
    %325 = vmatpush1.msra.mxu0 0.0
    %326 = vmatprep.subr.mxu0 0.0
    %327 = vmatpush1.msra.mxu0 0.0
    %328 = vmatprep.subr.mxu0 0.0
    %329 = vmatpush1.msra.mxu0 0.0
    %330 = vmatprep.subr.mxu0 0.0
    %331 = vmatpush1.msra.mxu0 0.0
    %332 = vmatprep.subr.mxu0 0.0
    %333 = vmatpush1.msra.mxu0 0.0
    %334 = vmatprep.subr.mxu0 0.0
    %335 = vmatpush1.msra.mxu0 0.0
    %336 = vmatprep.subr.mxu0 0.0
    %337 = vmatpush1.msra.mxu0 0.0
    %338 = vmatprep.subr.mxu0 0.0
    %339 = vmatpush1.msra.mxu0 0.0
    %340 = vmatprep.subr.mxu0 0.0
    %341 = vmatpush1.msra.mxu0 0.0
    %342 = vmatprep.subr.mxu0 0.0
    %343 = vmatpush1.msra.mxu0 0.0
    %344 = vmatprep.mubr.f32.mxu0 0.0
    %345 = vmatmul.mubr.f32.gmra.mrb[0].mxu0 %v50
    %v346 = vpop.f32.mrb[0].mxu0
    %v347 = vadd.f32 0.0, %v346
    %v348 = vpop.f32.mrb[0].mxu0
    %349 = vdwg.mxu0
    %vm350 = vcmp.ge.f32.partialorder %v347, 0.0
    %v351 = vmul.f32 %v347, 0.1
    %v352 = vsel %vm350, %v347, %v351
    %v353 = vld [vmem:[#allocation2 + $0x60] sm:$0xff]
    %v354 = vld [vmem:[#allocation2 + $0x68] sm:$0xff]
    %v355 = vld [vmem:[#allocation2 + $0x70] sm:$0xff]
    %356 = vmatprep.subr.mxu0 0.0
    %357 = vmatpush1.msra.mxu0 %v353
    %358 = vmatprep.subr.mxu0 0.0
    %359 = vmatpush1.msra.mxu0 %v354
    %360 = vmatprep.subr.mxu0 0.0
    %361 = vmatpush1.msra.mxu0 %v355
    %362 = vmatprep.subr.mxu0 0.0
    %363 = vmatpush1.msra.mxu0 0.0
    %364 = vmatprep.subr.mxu0 0.0
    %365 = vmatpush1.msra.mxu0 0.0
    %366 = vmatprep.subr.mxu0 0.0
    %367 = vmatpush1.msra.mxu0 0.0
    %368 = vmatprep.subr.mxu0 0.0
    %369 = vmatpush1.msra.mxu0 0.0
    %370 = vmatprep.subr.mxu0 0.0
    %371 = vmatpush1.msra.mxu0 0.0
    %372 = vmatprep.subr.mxu0 0.0
    %373 = vmatpush1.msra.mxu0 0.0
    %374 = vmatprep.subr.mxu0 0.0
    %375 = vmatpush1.msra.mxu0 0.0
    %376 = vmatprep.subr.mxu0 0.0
    %377 = vmatpush1.msra.mxu0 0.0
    %378 = vmatprep.subr.mxu0 0.0
    %379 = vmatpush1.msra.mxu0 0.0
    %380 = vmatprep.subr.mxu0 0.0
    %381 = vmatpush1.msra.mxu0 0.0
    %382 = vmatprep.subr.mxu0 0.0
    %383 = vmatpush1.msra.mxu0 0.0
    %384 = vmatprep.subr.mxu0 0.0
    %385 = vmatpush1.msra.mxu0 0.0
    %386 = vmatprep.subr.mxu0 0.0
    %387 = vmatpush1.msra.mxu0 0.0
    %388 = vmatprep.subr.mxu0 0.0
    %389 = vmatpush1.msra.mxu0 0.0
    %390 = vmatprep.subr.mxu0 0.0
    %391 = vmatpush1.msra.mxu0 0.0
    %392 = vmatprep.subr.mxu0 0.0
    %393 = vmatpush1.msra.mxu0 0.0
    %394 = vmatprep.subr.mxu0 0.0
    %395 = vmatpush1.msra.mxu0 0.0
    %396 = vmatprep.subr.mxu0 0.0
    %397 = vmatpush1.msra.mxu0 0.0
    %398 = vmatprep.subr.mxu0 0.0
    %399 = vmatpush1.msra.mxu0 0.0
    %400 = vmatprep.subr.mxu0 0.0
    %401 = vmatpush1.msra.mxu0 0.0
    %402 = vmatprep.subr.mxu0 0.0
    %403 = vmatpush1.msra.mxu0 0.0
    %404 = vmatprep.subr.mxu0 0.0
    %405 = vmatpush1.msra.mxu0 0.0
    %406 = vmatprep.subr.mxu0 0.0
    %407 = vmatpush1.msra.mxu0 0.0
    %408 = vmatprep.subr.mxu0 0.0
    %409 = vmatpush1.msra.mxu0 0.0
    %410 = vmatprep.subr.mxu0 0.0
    %411 = vmatpush1.msra.mxu0 0.0
    %412 = vmatprep.subr.mxu0 0.0
    %413 = vmatpush1.msra.mxu0 0.0
    %414 = vmatprep.subr.mxu0 0.0
    %415 = vmatpush1.msra.mxu0 0.0
    %416 = vmatprep.subr.mxu0 0.0
    %417 = vmatpush1.msra.mxu0 0.0
    %418 = vmatprep.subr.mxu0 0.0
    %419 = vmatpush1.msra.mxu0 0.0
    %420 = vmatprep.mubr.f32.mxu0 0.0
    %421 = vmatmul.mubr.f32.gmra.mrb[0].mxu0 %v50
    %v422 = vpop.f32.mrb[0].mxu0
    %v423 = vadd.f32 0.0, %v422
    %v424 = vpop.f32.mrb[0].mxu0
    %425 = vdwg.mxu0
    %vm426 = vcmp.ge.f32.partialorder %v423, 0.0
    %v427 = vmul.f32 %v423, 0.1
    %v428 = vsel %vm426, %v423, %v427
    %v429 = vld [vmem:[#allocation2 + $0x78] sm:$0xff]
    %v430 = vld [vmem:[#allocation2 + $0x80] sm:$0xff]
    %v431 = vld [vmem:[#allocation2 + $0x88] sm:$0xff]
    %432 = vmatprep.subr.mxu0 0.0
    %433 = vmatpush1.msra.mxu0 %v429
    %434 = vmatprep.subr.mxu0 0.0
    %435 = vmatpush1.msra.mxu0 %v430
    %436 = vmatprep.subr.mxu0 0.0
    %437 = vmatpush1.msra.mxu0 %v431
    %438 = vmatprep.subr.mxu0 0.0
    %439 = vmatpush1.msra.mxu0 0.0
    %440 = vmatprep.subr.mxu0 0.0
    %441 = vmatpush1.msra.mxu0 0.0
    %442 = vmatprep.subr.mxu0 0.0
    %443 = vmatpush1.msra.mxu0 0.0
    %444 = vmatprep.subr.mxu0 0.0
    %445 = vmatpush1.msra.mxu0 0.0
    %446 = vmatprep.subr.mxu0 0.0
    %447 = vmatpush1.msra.mxu0 0.0
    %448 = vmatprep.subr.mxu0 0.0
    %449 = vmatpush1.msra.mxu0 0.0
    %450 = vmatprep.subr.mxu0 0.0
    %451 = vmatpush1.msra.mxu0 0.0
    %452 = vmatprep.subr.mxu0 0.0
    %453 = vmatpush1.msra.mxu0 0.0
    %454 = vmatprep.subr.mxu0 0.0
    %455 = vmatpush1.msra.mxu0 0.0
    %456 = vmatprep.subr.mxu0 0.0
    %457 = vmatpush1.msra.mxu0 0.0
    %458 = vmatprep.subr.mxu0 0.0
    %459 = vmatpush1.msra.mxu0 0.0
    %460 = vmatprep.subr.mxu0 0.0
    %461 = vmatpush1.msra.mxu0 0.0
    %462 = vmatprep.subr.mxu0 0.0
    %463 = vmatpush1.msra.mxu0 0.0
    %464 = vmatprep.subr.mxu0 0.0
    %465 = vmatpush1.msra.mxu0 0.0
    %466 = vmatprep.subr.mxu0 0.0
    %467 = vmatpush1.msra.mxu0 0.0
    %468 = vmatprep.subr.mxu0 0.0
    %469 = vmatpush1.msra.mxu0 0.0
    %470 = vmatprep.subr.mxu0 0.0
    %471 = vmatpush1.msra.mxu0 0.0
    %472 = vmatprep.subr.mxu0 0.0
    %473 = vmatpush1.msra.mxu0 0.0
    %474 = vmatprep.subr.mxu0 0.0
    %475 = vmatpush1.msra.mxu0 0.0
    %476 = vmatprep.subr.mxu0 0.0
    %477 = vmatpush1.msra.mxu0 0.0
    %478 = vmatprep.subr.mxu0 0.0
    %479 = vmatpush1.msra.mxu0 0.0
    %480 = vmatprep.subr.mxu0 0.0
    %481 = vmatpush1.msra.mxu0 0.0
    %482 = vmatprep.subr.mxu0 0.0
    %483 = vmatpush1.msra.mxu0 0.0
    %484 = vmatprep.subr.mxu0 0.0
    %485 = vmatpush1.msra.mxu0 0.0
    %486 = vmatprep.subr.mxu0 0.0
    %487 = vmatpush1.msra.mxu0 0.0
    %488 = vmatprep.subr.mxu0 0.0
    %489 = vmatpush1.msra.mxu0 0.0
    %490 = vmatprep.subr.mxu0 0.0
    %491 = vmatpush1.msra.mxu0 0.0
    %492 = vmatprep.subr.mxu0 0.0
    %493 = vmatpush1.msra.mxu0 0.0
    %494 = vmatprep.subr.mxu0 0.0
    %495 = vmatpush1.msra.mxu0 0.0
    %496 = vmatprep.mubr.f32.mxu0 0.0
    %497 = vmatmul.mubr.f32.gmra.mrb[0].mxu0 %v50
    %v498 = vpop.f32.mrb[0].mxu0
    %v499 = vadd.f32 0.0, %v498
    %v500 = vpop.f32.mrb[0].mxu0
    %501 = vdwg.mxu0
    %vm502 = vcmp.ge.f32.partialorder %v499, 0.0
    %v503 = vmul.f32 %v499, 0.1
    %v504 = vsel %vm502, %v499, %v503
    %v505 = vld [vmem:[#allocation2 + $0x90] sm:$0xff]
    %v506 = vld [vmem:[#allocation2 + $0x98] sm:$0xff]
    %v507 = vld [vmem:[#allocation2 + $0xa0] sm:$0xff]
    %508 = vmatprep.subr.mxu0 0.0
    %509 = vmatpush1.msra.mxu0 %v505
    %510 = vmatprep.subr.mxu0 0.0
    %511 = vmatpush1.msra.mxu0 %v506
    %512 = vmatprep.subr.mxu0 0.0
    %513 = vmatpush1.msra.mxu0 %v507
    %514 = vmatprep.subr.mxu0 0.0
    %515 = vmatpush1.msra.mxu0 0.0
    %516 = vmatprep.subr.mxu0 0.0
    %517 = vmatpush1.msra.mxu0 0.0
    %518 = vmatprep.subr.mxu0 0.0
    %519 = vmatpush1.msra.mxu0 0.0
    %520 = vmatprep.subr.mxu0 0.0
    %521 = vmatpush1.msra.mxu0 0.0
    %522 = vmatprep.subr.mxu0 0.0
    %523 = vmatpush1.msra.mxu0 0.0
    %524 = vmatprep.subr.mxu0 0.0
    %525 = vmatpush1.msra.mxu0 0.0
    %526 = vmatprep.subr.mxu0 0.0
    %527 = vmatpush1.msra.mxu0 0.0
    %528 = vmatprep.subr.mxu0 0.0
    %529 = vmatpush1.msra.mxu0 0.0
    %530 = vmatprep.subr.mxu0 0.0
    %531 = vmatpush1.msra.mxu0 0.0
    %532 = vmatprep.subr.mxu0 0.0
    %533 = vmatpush1.msra.mxu0 0.0
    %534 = vmatprep.subr.mxu0 0.0
    %535 = vmatpush1.msra.mxu0 0.0
    %536 = vmatprep.subr.mxu0 0.0
    %537 = vmatpush1.msra.mxu0 0.0
    %538 = vmatprep.subr.mxu0 0.0
    %539 = vmatpush1.msra.mxu0 0.0
    %540 = vmatprep.subr.mxu0 0.0
    %541 = vmatpush1.msra.mxu0 0.0
    %542 = vmatprep.subr.mxu0 0.0
    %543 = vmatpush1.msra.mxu0 0.0
    %544 = vmatprep.subr.mxu0 0.0
    %545 = vmatpush1.msra.mxu0 0.0
    %546 = vmatprep.subr.mxu0 0.0
    %547 = vmatpush1.msra.mxu0 0.0
    %548 = vmatprep.subr.mxu0 0.0
    %549 = vmatpush1.msra.mxu0 0.0
    %550 = vmatprep.subr.mxu0 0.0
    %551 = vmatpush1.msra.mxu0 0.0
    %552 = vmatprep.subr.mxu0 0.0
    %553 = vmatpush1.msra.mxu0 0.0
    %554 = vmatprep.subr.mxu0 0.0
    %555 = vmatpush1.msra.mxu0 0.0
    %556 = vmatprep.subr.mxu0 0.0
    %557 = vmatpush1.msra.mxu0 0.0
    %558 = vmatprep.subr.mxu0 0.0
    %559 = vmatpush1.msra.mxu0 0.0
    %560 = vmatprep.subr.mxu0 0.0
    %561 = vmatpush1.msra.mxu0 0.0
    %562 = vmatprep.subr.mxu0 0.0
    %563 = vmatpush1.msra.mxu0 0.0
    %564 = vmatprep.subr.mxu0 0.0
    %565 = vmatpush1.msra.mxu0 0.0
    %566 = vmatprep.subr.mxu0 0.0
    %567 = vmatpush1.msra.mxu0 0.0
    %568 = vmatprep.subr.mxu0 0.0
    %569 = vmatpush1.msra.mxu0 0.0
    %570 = vmatprep.subr.mxu0 0.0
    %571 = vmatpush1.msra.mxu0 0.0
    %572 = vmatprep.mubr.f32.mxu0 0.0
    %573 = vmatmul.mubr.f32.gmra.mrb[0].mxu0 %v50
    %v574 = vpop.f32.mrb[0].mxu0
    %v575 = vadd.f32 0.0, %v574
    %v576 = vpop.f32.mrb[0].mxu0
    %577 = vdwg.mxu0
    %vm578 = vcmp.ge.f32.partialorder %v575, 0.0
    %v579 = vmul.f32 %v575, 0.1
    %v580 = vsel %vm578, %v575, %v579
    %v582 = vrot.slane %v200, 6
    %v585 = vrot.slane %v276, 4
    %v588 = vrot.slane %v352, 2
    %v591 = vrot.slane %v504, 6
    %v594 = vrot.slane %v580, 4
    %v597 = vcombine.low %v44, %v44
    %v599 = vunpack.c.l.s4 1983009808
    %v600 = vunpack.c.0.s8 %v599
    %v601 = vlaneseq
    %v602 = vshrl.u32 %v601, 7
    %v603 = vsub.s32 %v600, %v602
    %v604 = vrot.slane %v597, %v603
    %v605 = vcombine.low %v604, %v604
    %vm607 = vcmask 1041408
    %v608 = vsel %vm607, %v124, %v582
    %vm609 = vcmask 1043456
    %v610 = vsel %vm609, %v608, %v585
    %vm611 = vcmask 1045504
    %v612 = vsel %vm611, %v610, %v588
    %v613 = vsel %vm607, %v428, %v591
    %v614 = vsel %vm609, %v613, %v594
    %v615 = vsel %vm611, %v614, %v605
    %618 = vrot.lane.b32.xlu0 %v612, 32
    %v619 = vpop.permute.xlu0 %618
    %620 = vrot.lane.b32.xlu0 %v615, 32
    %v621 = vpop.permute.xlu0 %620
    %vm624 = vcmask 261120
    %v625 = vsel %vm624, %v612, %v619
    %v626 = vsel %vm624, %v615, %v621
    %v627 = vld [vmem:[#allocation2 + $0xa8] sm:$0xff]
    %v628 = vld [vmem:[#allocation2 + $0xb0] sm:$0xff]
    %v629 = vld [vmem:[#allocation2 + $0xb8] sm:$0xff]
    %v630 = vld [vmem:[#allocation2 + $0xc0] sm:$0xff]
    %v631 = vld [vmem:[#allocation2 + $0xc8] sm:$0xff]
    %v632 = vld [vmem:[#allocation2 + $0xd0] sm:$0xff]
    %v633 = vld [vmem:[#allocation2 + $0xd8] sm:$0xff]
    %v634 = vld [vmem:[#allocation2 + $0xe0] sm:$0xff]
    %v635 = vld [vmem:[#allocation2 + $0xe8] sm:$0xff]
    %v636 = vld [vmem:[#allocation2 + $0xf0] sm:$0xff]
    %v637 = vld [vmem:[#allocation2 + $0xf8] sm:$0xff]
    %v638 = vld [vmem:[#allocation2 + $0x100] sm:$0xff]
    %v639 = vld [vmem:[#allocation2 + $0x108] sm:$0xff]
    %v640 = vld [vmem:[#allocation2 + $0x110] sm:$0xff]
    %v641 = vld [vmem:[#allocation2 + $0x118] sm:$0xff]
    %v642 = vld [vmem:[#allocation2 + $0x120] sm:$0xff]
    %v643 = vld [vmem:[#allocation2 + $0x128] sm:$0xff]
    %v644 = vld [vmem:[#allocation2 + $0x130] sm:$0xff]
    %v645 = vld [vmem:[#allocation2 + $0x138] sm:$0xff]
    %v646 = vld [vmem:[#allocation2 + $0x140] sm:$0xff]
    %v647 = vld [vmem:[#allocation2 + $0x148] sm:$0x1]
    %v648 = vld [vmem:[#allocation2 + $0x149] sm:$0x1]
    %v649 = vld [vmem:[#allocation2 + $0x14a] sm:$0x1]
    %v650 = vld [vmem:[#allocation2 + $0x14b] sm:$0x1]
    %v651 = vsel %vm624, %v612, 0
    %v653 = vsel %vm624, %v615, 0
    %655 = vmatprep.subr.mxu0 0.0
    %656 = vmatpush1.msra.mxu0 %v627
    %657 = vmatprep.subr.mxu0 0.0
    %658 = vmatpush1.msra.mxu0 %v628
    %659 = vmatprep.subr.mxu0 0.0
    %660 = vmatpush1.msra.mxu0 %v629
    %661 = vmatprep.subr.mxu0 0.0
    %662 = vmatpush1.msra.mxu0 %v630
    %663 = vmatprep.subr.mxu0 0.0
    %664 = vmatpush1.msra.mxu0 0.0
    %665 = vmatprep.subr.mxu0 0.0
    %666 = vmatpush1.msra.mxu0 0.0
    %667 = vmatprep.subr.mxu0 0.0
    %668 = vmatpush1.msra.mxu0 0.0
    %669 = vmatprep.subr.mxu0 0.0
    %670 = vmatpush1.msra.mxu0 0.0
    %671 = vmatprep.subr.mxu0 0.0
    %672 = vmatpush1.msra.mxu0 0.0
    %673 = vmatprep.subr.mxu0 0.0
    %674 = vmatpush1.msra.mxu0 0.0
    %675 = vmatprep.subr.mxu0 0.0
    %676 = vmatpush1.msra.mxu0 0.0
    %677 = vmatprep.subr.mxu0 0.0
    %678 = vmatpush1.msra.mxu0 0.0
    %679 = vmatprep.subr.mxu0 0.0
    %680 = vmatpush1.msra.mxu0 0.0
    %681 = vmatprep.subr.mxu0 0.0
    %682 = vmatpush1.msra.mxu0 0.0
    %683 = vmatprep.subr.mxu0 0.0
    %684 = vmatpush1.msra.mxu0 0.0
    %685 = vmatprep.subr.mxu0 0.0
    %686 = vmatpush1.msra.mxu0 0.0
    %687 = vmatprep.subr.mxu0 0.0
    %688 = vmatpush1.msra.mxu0 0.0
    %689 = vmatprep.subr.mxu0 0.0
    %690 = vmatpush1.msra.mxu0 0.0
    %691 = vmatprep.subr.mxu0 0.0
    %692 = vmatpush1.msra.mxu0 0.0
    %693 = vmatprep.subr.mxu0 0.0
    %694 = vmatpush1.msra.mxu0 0.0
    %695 = vmatprep.subr.mxu0 0.0
    %696 = vmatpush1.msra.mxu0 0.0
    %697 = vmatprep.subr.mxu0 0.0
    %698 = vmatpush1.msra.mxu0 0.0
    %699 = vmatprep.subr.mxu0 0.0
    %700 = vmatpush1.msra.mxu0 0.0
    %701 = vmatprep.subr.mxu0 0.0
    %702 = vmatpush1.msra.mxu0 0.0
    %703 = vmatprep.subr.mxu0 0.0
    %704 = vmatpush1.msra.mxu0 0.0
    %705 = vmatprep.subr.mxu0 0.0
    %706 = vmatpush1.msra.mxu0 0.0
    %707 = vmatprep.subr.mxu0 0.0
    %708 = vmatpush1.msra.mxu0 0.0
    %709 = vmatprep.subr.mxu0 0.0
    %710 = vmatpush1.msra.mxu0 0.0
    %711 = vmatprep.subr.mxu0 0.0
    %712 = vmatpush1.msra.mxu0 0.0
    %713 = vmatprep.subr.mxu0 0.0
    %714 = vmatpush1.msra.mxu0 0.0
    %715 = vmatprep.subr.mxu0 0.0
    %716 = vmatpush1.msra.mxu0 0.0
    %717 = vmatprep.subr.mxu0 0.0
    %718 = vmatpush1.msra.mxu0 0.0
    %719 = vmatprep.mubr.f32.mxu0 0.0
    %720 = vmatmul.mubr.f32.gmra.mrb[0].mxu0 %v651
    %v721 = vpop.f32.mrb[0].mxu0
    %v722 = vadd.f32 0.0, %v721
    %v723 = vpop.f32.mrb[0].mxu0
    %724 = vmatprep.mubr.f32.mxu0 0.0
    %725 = vmatmul.mubr.f32.gmra.mrb[0].mxu0 %v653
    %v726 = vpop.f32.mrb[0].mxu0
    %v727 = vadd.f32 0.0, %v726
    %v728 = vpop.f32.mrb[0].mxu0
    %729 = vdwg.mxu0
    %s730 = sld [smem:[#allocation6]]
    %v731 = vstv %s730
    %v732 = vmul.f32 %v731, %v722
    %s733 = sld [smem:[#allocation6 + $0x1]]
    %v734 = vstv %s733
    %v735 = vmul.f32 %v734, %v722
    %s736 = sld [smem:[#allocation6 + $0x2]]
    %v737 = vstv %s736
    %v738 = vmul.f32 %v737, %v722
    %s739 = sld [smem:[#allocation6 + $0x3]]
    %v740 = vstv %s739
    %v741 = vmul.f32 %v740, %v722
    %s742 = sld [smem:[#allocation6 + $0x4]]
    %v743 = vstv %s742
    %v744 = vmul.f32 %v743, %v727
    %s745 = sld [smem:[#allocation6 + $0x5]]
    %v746 = vstv %s745
    %v747 = vmul.f32 %v746, %v727
    %s748 = sld [smem:[#allocation6 + $0x6]]
    %v749 = vstv %s748
    %v750 = vmul.f32 %v749, %v727
    %s751 = sld [smem:[#allocation6 + $0x7]]
    %v752 = vstv %s751
    %v753 = vmul.f32 %v752, %v727
    %v755 = vrot.slane %v735, 2
    %v757 = vadd.f32 %v732, %v755
    %v759 = vrot.slane %v741, 2
    %v761 = vadd.f32 %v738, %v759
    %v763 = vrot.slane %v747, 2
    %v765 = vadd.f32 %v744, %v763
    %v767 = vrot.slane %v753, 2
    %v769 = vadd.f32 %v750, %v767
    %v771 = vrot.slane %v761, 4
    %v773 = vadd.f32 %v757, %v771
    %v775 = vrot.slane %v769, 4
    %v777 = vadd.f32 %v765, %v775
    %v778 = vadd.f32 %v773, %v777
    %s779 = sld [smem:[#allocation6 + $0x8]]
    %v780 = vstv %s779
    %v781 = vmul.f32 %v780, %v722
    %s782 = sld [smem:[#allocation6 + $0x9]]
    %v783 = vstv %s782
    %v784 = vmul.f32 %v783, %v722
    %s785 = sld [smem:[#allocation6 + $0xa]]
    %v786 = vstv %s785
    %v787 = vmul.f32 %v786, %v722
    %s788 = sld [smem:[#allocation6 + $0xb]]
    %v789 = vstv %s788
    %v790 = vmul.f32 %v789, %v722
    %s791 = sld [smem:[#allocation6 + $0xc]]
    %v792 = vstv %s791
    %v793 = vmul.f32 %v792, %v727
    %s794 = sld [smem:[#allocation6 + $0xd]]
    %v795 = vstv %s794
    %v796 = vmul.f32 %v795, %v727
    %s797 = sld [smem:[#allocation6 + $0xe]]
    %v798 = vstv %s797
    %v799 = vmul.f32 %v798, %v727
    %s800 = sld [smem:[#allocation6 + $0xf]]
    %v801 = vstv %s800
    %v802 = vmul.f32 %v801, %v727
    %v804 = vrot.slane %v784, 2
    %v806 = vadd.f32 %v781, %v804
    %v808 = vrot.slane %v790, 2
    %v810 = vadd.f32 %v787, %v808
    %v812 = vrot.slane %v796, 2
    %v814 = vadd.f32 %v793, %v812
    %v816 = vrot.slane %v802, 2
    %v818 = vadd.f32 %v799, %v816
    %v820 = vrot.slane %v810, 4
    %v822 = vadd.f32 %v806, %v820
    %v824 = vrot.slane %v818, 4
    %v826 = vadd.f32 %v814, %v824
    %v827 = vadd.f32 %v822, %v826
    %s828 = sld [smem:[#allocation6 + $0x10]]
    %v829 = vstv %s828
    %v830 = vmul.f32 %v829, %v722
    %s831 = sld [smem:[#allocation6 + $0x11]]
    %v832 = vstv %s831
    %v833 = vmul.f32 %v832, %v722
    %s834 = sld [smem:[#allocation6 + $0x12]]
    %v835 = vstv %s834
    %v836 = vmul.f32 %v835, %v722
    %s837 = sld [smem:[#allocation6 + $0x13]]
    %v838 = vstv %s837
    %v839 = vmul.f32 %v838, %v722
    %s840 = sld [smem:[#allocation6 + $0x14]]
    %v841 = vstv %s840
    %v842 = vmul.f32 %v841, %v727
    %s843 = sld [smem:[#allocation6 + $0x15]]
    %v844 = vstv %s843
    %v845 = vmul.f32 %v844, %v727
    %s846 = sld [smem:[#allocation6 + $0x16]]
    %v847 = vstv %s846
    %v848 = vmul.f32 %v847, %v727
    %s849 = sld [smem:[#allocation6 + $0x17]]
    %v850 = vstv %s849
    %v851 = vmul.f32 %v850, %v727
    %v853 = vrot.slane %v833, 2
    %v855 = vadd.f32 %v830, %v853
    %v857 = vrot.slane %v839, 2
    %v859 = vadd.f32 %v836, %v857
    %v861 = vrot.slane %v845, 2
    %v863 = vadd.f32 %v842, %v861
    %v865 = vrot.slane %v851, 2
    %v867 = vadd.f32 %v848, %v865
    %v869 = vrot.slane %v859, 4
    %v871 = vadd.f32 %v855, %v869
    %v873 = vrot.slane %v867, 4
    %v875 = vadd.f32 %v863, %v873
    %v876 = vadd.f32 %v871, %v875
    %s877 = sld [smem:[#allocation6 + $0x18]]
    %v878 = vstv %s877
    %v879 = vmul.f32 %v878, %v722
    %s880 = sld [smem:[#allocation6 + $0x19]]
    %v881 = vstv %s880
    %v882 = vmul.f32 %v881, %v722
    %s883 = sld [smem:[#allocation6 + $0x1a]]
    %v884 = vstv %s883
    %v885 = vmul.f32 %v884, %v722
    %s886 = sld [smem:[#allocation6 + $0x1b]]
    %v887 = vstv %s886
    %v888 = vmul.f32 %v887, %v722
    %s889 = sld [smem:[#allocation6 + $0x1c]]
    %v890 = vstv %s889
    %v891 = vmul.f32 %v890, %v727
    %s892 = sld [smem:[#allocation6 + $0x1d]]
    %v893 = vstv %s892
    %v894 = vmul.f32 %v893, %v727
    %s895 = sld [smem:[#allocation6 + $0x1e]]
    %v896 = vstv %s895
    %v897 = vmul.f32 %v896, %v727
    %s898 = sld [smem:[#allocation6 + $0x1f]]
    %v899 = vstv %s898
    %v900 = vmul.f32 %v899, %v727
    %v902 = vrot.slane %v882, 2
    %v904 = vadd.f32 %v879, %v902
    %v906 = vrot.slane %v888, 2
    %v908 = vadd.f32 %v885, %v906
    %v910 = vrot.slane %v894, 2
    %v912 = vadd.f32 %v891, %v910
    %v914 = vrot.slane %v900, 2
    %v916 = vadd.f32 %v897, %v914
    %v918 = vrot.slane %v908, 4
    %v920 = vadd.f32 %v904, %v918
    %v922 = vrot.slane %v916, 4
    %v924 = vadd.f32 %v912, %v922
    %v925 = vadd.f32 %v920, %v924
    %s926 = sld [smem:[#allocation6 + $0x20]]
    %v927 = vstv %s926
    %v928 = vmul.f32 %v927, %v722
    %s929 = sld [smem:[#allocation6 + $0x21]]
    %v930 = vstv %s929
    %v931 = vmul.f32 %v930, %v722
    %s932 = sld [smem:[#allocation6 + $0x22]]
    %v933 = vstv %s932
    %v934 = vmul.f32 %v933, %v722
    %s935 = sld [smem:[#allocation6 + $0x23]]
    %v936 = vstv %s935
    %v937 = vmul.f32 %v936, %v722
    %s938 = sld [smem:[#allocation6 + $0x24]]
    %v939 = vstv %s938
    %v940 = vmul.f32 %v939, %v727
    %s941 = sld [smem:[#allocation6 + $0x25]]
    %v942 = vstv %s941
    %v943 = vmul.f32 %v942, %v727
    %s944 = sld [smem:[#allocation6 + $0x26]]
    %v945 = vstv %s944
    %v946 = vmul.f32 %v945, %v727
    %s947 = sld [smem:[#allocation6 + $0x27]]
    %v948 = vstv %s947
    %v949 = vmul.f32 %v948, %v727
    %v951 = vrot.slane %v931, 2
    %v953 = vadd.f32 %v928, %v951
    %v955 = vrot.slane %v937, 2
    %v957 = vadd.f32 %v934, %v955
    %v959 = vrot.slane %v943, 2
    %v961 = vadd.f32 %v940, %v959
    %v963 = vrot.slane %v949, 2
    %v965 = vadd.f32 %v946, %v963
    %v967 = vrot.slane %v957, 4
    %v969 = vadd.f32 %v953, %v967
    %v971 = vrot.slane %v965, 4
    %v973 = vadd.f32 %v961, %v971
    %v974 = vadd.f32 %v969, %v973
    %s975 = sld [smem:[#allocation6 + $0x28]]
    %v976 = vstv %s975
    %v977 = vmul.f32 %v976, %v722
    %s978 = sld [smem:[#allocation6 + $0x29]]
    %v979 = vstv %s978
    %v980 = vmul.f32 %v979, %v722
    %s981 = sld [smem:[#allocation6 + $0x2a]]
    %v982 = vstv %s981
    %v983 = vmul.f32 %v982, %v722
    %s984 = sld [smem:[#allocation6 + $0x2b]]
    %v985 = vstv %s984
    %v986 = vmul.f32 %v985, %v722
    %s987 = sld [smem:[#allocation6 + $0x2c]]
    %v988 = vstv %s987
    %v989 = vmul.f32 %v988, %v727
    %s990 = sld [smem:[#allocation6 + $0x2d]]
    %v991 = vstv %s990
    %v992 = vmul.f32 %v991, %v727
    %s993 = sld [smem:[#allocation6 + $0x2e]]
    %v994 = vstv %s993
    %v995 = vmul.f32 %v994, %v727
    %s996 = sld [smem:[#allocation6 + $0x2f]]
    %v997 = vstv %s996
    %v998 = vmul.f32 %v997, %v727
    %v1000 = vrot.slane %v980, 2
    %v1002 = vadd.f32 %v977, %v1000
    %v1004 = vrot.slane %v986, 2
    %v1006 = vadd.f32 %v983, %v1004
    %v1008 = vrot.slane %v992, 2
    %v1010 = vadd.f32 %v989, %v1008
    %v1012 = vrot.slane %v998, 2
    %v1014 = vadd.f32 %v995, %v1012
    %v1016 = vrot.slane %v1006, 4
    %v1018 = vadd.f32 %v1002, %v1016
    %v1020 = vrot.slane %v1014, 4
    %v1022 = vadd.f32 %v1010, %v1020
    %v1023 = vadd.f32 %v1018, %v1022
    %s1024 = sld [smem:[#allocation6 + $0x30]]
    %v1025 = vstv %s1024
    %v1026 = vmul.f32 %v1025, %v722
    %s1027 = sld [smem:[#allocation6 + $0x31]]
    %v1028 = vstv %s1027
    %v1029 = vmul.f32 %v1028, %v722
    %s1030 = sld [smem:[#allocation6 + $0x32]]
    %v1031 = vstv %s1030
    %v1032 = vmul.f32 %v1031, %v722
    %s1033 = sld [smem:[#allocation6 + $0x33]]
    %v1034 = vstv %s1033
    %v1035 = vmul.f32 %v1034, %v722
    %s1036 = sld [smem:[#allocation6 + $0x34]]
    %v1037 = vstv %s1036
    %v1038 = vmul.f32 %v1037, %v727
    %s1039 = sld [smem:[#allocation6 + $0x35]]
    %v1040 = vstv %s1039
    %v1041 = vmul.f32 %v1040, %v727
    %s1042 = sld [smem:[#allocation6 + $0x36]]
    %v1043 = vstv %s1042
    %v1044 = vmul.f32 %v1043, %v727
    %s1045 = sld [smem:[#allocation6 + $0x37]]
    %v1046 = vstv %s1045
    %v1047 = vmul.f32 %v1046, %v727
    %v1049 = vrot.slane %v1029, 2
    %v1051 = vadd.f32 %v1026, %v1049
    %v1053 = vrot.slane %v1035, 2
    %v1055 = vadd.f32 %v1032, %v1053
    %v1057 = vrot.slane %v1041, 2
    %v1059 = vadd.f32 %v1038, %v1057
    %v1061 = vrot.slane %v1047, 2
    %v1063 = vadd.f32 %v1044, %v1061
    %v1065 = vrot.slane %v1055, 4
    %v1067 = vadd.f32 %v1051, %v1065
    %v1069 = vrot.slane %v1063, 4
    %v1071 = vadd.f32 %v1059, %v1069
    %v1072 = vadd.f32 %v1067, %v1071
    %s1073 = sld [smem:[#allocation6 + $0x38]]
    %v1074 = vstv %s1073
    %v1075 = vmul.f32 %v1074, %v722
    %s1076 = sld [smem:[#allocation6 + $0x39]]
    %v1077 = vstv %s1076
    %v1078 = vmul.f32 %v1077, %v722
    %s1079 = sld [smem:[#allocation6 + $0x3a]]
    %v1080 = vstv %s1079
    %v1081 = vmul.f32 %v1080, %v722
    %s1082 = sld [smem:[#allocation6 + $0x3b]]
    %v1083 = vstv %s1082
    %v1084 = vmul.f32 %v1083, %v722
    %s1085 = sld [smem:[#allocation6 + $0x3c]]
    %v1086 = vstv %s1085
    %v1087 = vmul.f32 %v1086, %v727
    %s1088 = sld [smem:[#allocation6 + $0x3d]]
    %v1089 = vstv %s1088
    %v1090 = vmul.f32 %v1089, %v727
    %s1091 = sld [smem:[#allocation6 + $0x3e]]
    %v1092 = vstv %s1091
    %v1093 = vmul.f32 %v1092, %v727
    %s1094 = sld [smem:[#allocation6 + $0x3f]]
    %v1095 = vstv %s1094
    %v1096 = vmul.f32 %v1095, %v727
    %v1098 = vrot.slane %v1078, 2
    %v1100 = vadd.f32 %v1075, %v1098
    %v1102 = vrot.slane %v1084, 2
    %v1104 = vadd.f32 %v1081, %v1102
    %v1106 = vrot.slane %v1090, 2
    %v1108 = vadd.f32 %v1087, %v1106
    %v1110 = vrot.slane %v1096, 2
    %v1112 = vadd.f32 %v1093, %v1110
    %v1114 = vrot.slane %v1104, 4
    %v1116 = vadd.f32 %v1100, %v1114
    %v1118 = vrot.slane %v1112, 4
    %v1120 = vadd.f32 %v1108, %v1118
    %v1121 = vadd.f32 %v1116, %v1120
    %v1123 = vrot.slane %v827, 6
    %v1126 = vrot.slane %v876, 4
    %v1129 = vrot.slane %v925, 2
    %v1132 = vrot.slane %v1023, 6
    %v1135 = vrot.slane %v1072, 4
    %v1138 = vrot.slane %v1121, 2
    %v1140 = vsel %vm607, %v778, %v1123
    %v1141 = vsel %vm609, %v1140, %v1126
    %v1142 = vsel %vm611, %v1141, %v1129
    %v1143 = vsel %vm607, %v974, %v1132
    %v1144 = vsel %vm609, %v1143, %v1135
    %v1145 = vsel %vm611, %v1144, %v1138
    %v1146 = vlaneseq
    %v1147 = vshrl.u32 %v1146, 7
    %v1148 = vsub.s32 0, %v1147
    %v1149 = vrot.slane %v647, %v1148
    %v1150 = vadd.f32 %v1142, %v1149
    %v1151 = vadd.f32 %v1145, %v1149
    %v1152 = vadd.f32 %v1150, %v625
    %v1153 = vadd.f32 %v1151, %v626
    %vm1154 = vcmp.ge.f32.partialorder %v1152, 0.0
    %vm1155 = vcmp.ge.f32.partialorder %v1153, 0.0
    %v1156 = vstv %s42
    %v1157 = vmul.f32 %v1156, %v1152
    %v1158 = vmul.f32 %v1156, %v1153
    %v1159 = vsel %vm1154, %v1152, %v1157
    %v1160 = vsel %vm1155, %v1153, %v1158
    %vm1161 = vcmask 523264
    %v1163 = vsel %vm1161, %v1159, 0
    %v1166 = vsel %vm1161, %v1160, 0
    %1168 = vmatprep.subr.mxu0 0.0
    %1169 = vmatpush1.msra.mxu0 %v631
    %1170 = vmatprep.subr.mxu0 0.0
    %1171 = vmatpush1.msra.mxu0 %v632
    %1172 = vmatprep.subr.mxu0 0.0
    %1173 = vmatpush1.msra.mxu0 %v633
    %1174 = vmatprep.subr.mxu0 0.0
    %1175 = vmatpush1.msra.mxu0 %v634
    %1176 = vmatprep.subr.mxu0 0.0
    %1177 = vmatpush1.msra.mxu0 %v635
    %1178 = vmatprep.subr.mxu0 0.0
    %1179 = vmatpush1.msra.mxu0 %v636
    %1180 = vmatprep.subr.mxu0 0.0
    %1181 = vmatpush1.msra.mxu0 %v637
    %1182 = vmatprep.subr.mxu0 0.0
    %1183 = vmatpush1.msra.mxu0 %v638
    %1184 = vmatprep.subr.mxu0 0.0
    %1185 = vmatpush1.msra.mxu0 0.0
    %1186 = vmatprep.subr.mxu0 0.0
    %1187 = vmatpush1.msra.mxu0 0.0
    %1188 = vmatprep.subr.mxu0 0.0
    %1189 = vmatpush1.msra.mxu0 0.0
    %1190 = vmatprep.subr.mxu0 0.0
    %1191 = vmatpush1.msra.mxu0 0.0
    %1192 = vmatprep.subr.mxu0 0.0
    %1193 = vmatpush1.msra.mxu0 0.0
    %1194 = vmatprep.subr.mxu0 0.0
    %1195 = vmatpush1.msra.mxu0 0.0
    %1196 = vmatprep.subr.mxu0 0.0
    %1197 = vmatpush1.msra.mxu0 0.0
    %1198 = vmatprep.subr.mxu0 0.0
    %1199 = vmatpush1.msra.mxu0 0.0
    %1200 = vmatprep.subr.mxu0 0.0
    %1201 = vmatpush1.msra.mxu0 0.0
    %1202 = vmatprep.subr.mxu0 0.0
    %1203 = vmatpush1.msra.mxu0 0.0
    %1204 = vmatprep.subr.mxu0 0.0
    %1205 = vmatpush1.msra.mxu0 0.0
    %1206 = vmatprep.subr.mxu0 0.0
    %1207 = vmatpush1.msra.mxu0 0.0
    %1208 = vmatprep.subr.mxu0 0.0
    %1209 = vmatpush1.msra.mxu0 0.0
    %1210 = vmatprep.subr.mxu0 0.0
    %1211 = vmatpush1.msra.mxu0 0.0
    %1212 = vmatprep.subr.mxu0 0.0
    %1213 = vmatpush1.msra.mxu0 0.0
    %1214 = vmatprep.subr.mxu0 0.0
    %1215 = vmatpush1.msra.mxu0 0.0
    %1216 = vmatprep.subr.mxu0 0.0
    %1217 = vmatpush1.msra.mxu0 0.0
    %1218 = vmatprep.subr.mxu0 0.0
    %1219 = vmatpush1.msra.mxu0 0.0
    %1220 = vmatprep.subr.mxu0 0.0
    %1221 = vmatpush1.msra.mxu0 0.0
    %1222 = vmatprep.subr.mxu0 0.0
    %1223 = vmatpush1.msra.mxu0 0.0
    %1224 = vmatprep.subr.mxu0 0.0
    %1225 = vmatpush1.msra.mxu0 0.0
    %1226 = vmatprep.subr.mxu0 0.0
    %1227 = vmatpush1.msra.mxu0 0.0
    %1228 = vmatprep.subr.mxu0 0.0
    %1229 = vmatpush1.msra.mxu0 0.0
    %1230 = vmatprep.subr.mxu0 0.0
    %1231 = vmatpush1.msra.mxu0 0.0
    %1232 = vmatprep.mubr.f32.mxu0 0.0
    %1233 = vmatmul.mubr.f32.gmra.mrb[0].mxu0 %v1163
    %v1234 = vpop.f32.mrb[0].mxu0
    %v1235 = vadd.f32 0.0, %v1234
    %v1236 = vpop.f32.mrb[0].mxu0
    %1237 = vmatprep.mubr.f32.mxu0 0.0
    %1238 = vmatmul.mubr.f32.gmra.mrb[0].mxu0 %v1166
    %v1239 = vpop.f32.mrb[0].mxu0
    %v1240 = vadd.f32 0.0, %v1239
    %v1241 = vpop.f32.mrb[0].mxu0
    %1242 = vdwg.mxu0
    %v1243 = vmul.f32 %v731, %v1235
    %v1244 = vmul.f32 %v734, %v1235
    %v1245 = vmul.f32 %v737, %v1235
    %v1246 = vmul.f32 %v740, %v1235
    %v1247 = vmul.f32 %v743, %v1240
    %v1248 = vmul.f32 %v746, %v1240
    %v1249 = vmul.f32 %v749, %v1240
    %v1250 = vmul.f32 %v752, %v1240
    %v1252 = vrot.slane %v1244, 2
    %v1254 = vadd.f32 %v1243, %v1252
    %v1256 = vrot.slane %v1246, 2
    %v1258 = vadd.f32 %v1245, %v1256
    %v1260 = vrot.slane %v1248, 2
    %v1262 = vadd.f32 %v1247, %v1260
    %v1264 = vrot.slane %v1250, 2
    %v1266 = vadd.f32 %v1249, %v1264
    %v1268 = vrot.slane %v1258, 4
    %v1270 = vadd.f32 %v1254, %v1268
    %v1272 = vrot.slane %v1266, 4
    %v1274 = vadd.f32 %v1262, %v1272
    %v1275 = vadd.f32 %v1270, %v1274
    %v1276 = vmul.f32 %v780, %v1235
    %v1277 = vmul.f32 %v783, %v1235
    %v1278 = vmul.f32 %v786, %v1235
    %v1279 = vmul.f32 %v789, %v1235
    %v1280 = vmul.f32 %v792, %v1240
    %v1281 = vmul.f32 %v795, %v1240
    %v1282 = vmul.f32 %v798, %v1240
    %v1283 = vmul.f32 %v801, %v1240
    %v1285 = vrot.slane %v1277, 2
    %v1287 = vadd.f32 %v1276, %v1285
    %v1289 = vrot.slane %v1279, 2
    %v1291 = vadd.f32 %v1278, %v1289
    %v1293 = vrot.slane %v1281, 2
    %v1295 = vadd.f32 %v1280, %v1293
    %v1297 = vrot.slane %v1283, 2
    %v1299 = vadd.f32 %v1282, %v1297
    %v1301 = vrot.slane %v1291, 4
    %v1303 = vadd.f32 %v1287, %v1301
    %v1305 = vrot.slane %v1299, 4
    %v1307 = vadd.f32 %v1295, %v1305
    %v1308 = vadd.f32 %v1303, %v1307
    %v1309 = vmul.f32 %v829, %v1235
    %v1310 = vmul.f32 %v832, %v1235
    %v1311 = vmul.f32 %v835, %v1235
    %v1312 = vmul.f32 %v838, %v1235
    %v1313 = vmul.f32 %v841, %v1240
    %v1314 = vmul.f32 %v844, %v1240
    %v1315 = vmul.f32 %v847, %v1240
    %v1316 = vmul.f32 %v850, %v1240
    %v1318 = vrot.slane %v1310, 2
    %v1320 = vadd.f32 %v1309, %v1318
    %v1322 = vrot.slane %v1312, 2
    %v1324 = vadd.f32 %v1311, %v1322
    %v1326 = vrot.slane %v1314, 2
    %v1328 = vadd.f32 %v1313, %v1326
    %v1330 = vrot.slane %v1316, 2
    %v1332 = vadd.f32 %v1315, %v1330
    %v1334 = vrot.slane %v1324, 4
    %v1336 = vadd.f32 %v1320, %v1334
    %v1338 = vrot.slane %v1332, 4
    %v1340 = vadd.f32 %v1328, %v1338
    %v1341 = vadd.f32 %v1336, %v1340
    %v1342 = vmul.f32 %v878, %v1235
    %v1343 = vmul.f32 %v881, %v1235
    %v1344 = vmul.f32 %v884, %v1235
    %v1345 = vmul.f32 %v887, %v1235
    %v1346 = vmul.f32 %v890, %v1240
    %v1347 = vmul.f32 %v893, %v1240
    %v1348 = vmul.f32 %v896, %v1240
    %v1349 = vmul.f32 %v899, %v1240
    %v1351 = vrot.slane %v1343, 2
    %v1353 = vadd.f32 %v1342, %v1351
    %v1355 = vrot.slane %v1345, 2
    %v1357 = vadd.f32 %v1344, %v1355
    %v1359 = vrot.slane %v1347, 2
    %v1361 = vadd.f32 %v1346, %v1359
    %v1363 = vrot.slane %v1349, 2
    %v1365 = vadd.f32 %v1348, %v1363
    %v1367 = vrot.slane %v1357, 4
    %v1369 = vadd.f32 %v1353, %v1367
    %v1371 = vrot.slane %v1365, 4
    %v1373 = vadd.f32 %v1361, %v1371
    %v1374 = vadd.f32 %v1369, %v1373
    %v1375 = vmul.f32 %v927, %v1235
    %v1376 = vmul.f32 %v930, %v1235
    %v1377 = vmul.f32 %v933, %v1235
    %v1378 = vmul.f32 %v936, %v1235
    %v1379 = vmul.f32 %v939, %v1240
    %v1380 = vmul.f32 %v942, %v1240
    %v1381 = vmul.f32 %v945, %v1240
    %v1382 = vmul.f32 %v948, %v1240
    %v1384 = vrot.slane %v1376, 2
    %v1386 = vadd.f32 %v1375, %v1384
    %v1388 = vrot.slane %v1378, 2
    %v1390 = vadd.f32 %v1377, %v1388
    %v1392 = vrot.slane %v1380, 2
    %v1394 = vadd.f32 %v1379, %v1392
    %v1396 = vrot.slane %v1382, 2
    %v1398 = vadd.f32 %v1381, %v1396
    %v1400 = vrot.slane %v1390, 4
    %v1402 = vadd.f32 %v1386, %v1400
    %v1404 = vrot.slane %v1398, 4
    %v1406 = vadd.f32 %v1394, %v1404
    %v1407 = vadd.f32 %v1402, %v1406
    %v1408 = vmul.f32 %v976, %v1235
    %v1409 = vmul.f32 %v979, %v1235
    %v1410 = vmul.f32 %v982, %v1235
    %v1411 = vmul.f32 %v985, %v1235
    %v1412 = vmul.f32 %v988, %v1240
    %v1413 = vmul.f32 %v991, %v1240
    %v1414 = vmul.f32 %v994, %v1240
    %v1415 = vmul.f32 %v997, %v1240
    %v1417 = vrot.slane %v1409, 2
    %v1419 = vadd.f32 %v1408, %v1417
    %v1421 = vrot.slane %v1411, 2
    %v1423 = vadd.f32 %v1410, %v1421
    %v1425 = vrot.slane %v1413, 2
    %v1427 = vadd.f32 %v1412, %v1425
    %v1429 = vrot.slane %v1415, 2
    %v1431 = vadd.f32 %v1414, %v1429
    %v1433 = vrot.slane %v1423, 4
    %v1435 = vadd.f32 %v1419, %v1433
    %v1437 = vrot.slane %v1431, 4
    %v1439 = vadd.f32 %v1427, %v1437
    %v1440 = vadd.f32 %v1435, %v1439
    %v1441 = vmul.f32 %v1025, %v1235
    %v1442 = vmul.f32 %v1028, %v1235
    %v1443 = vmul.f32 %v1031, %v1235
    %v1444 = vmul.f32 %v1034, %v1235
    %v1445 = vmul.f32 %v1037, %v1240
    %v1446 = vmul.f32 %v1040, %v1240
    %v1447 = vmul.f32 %v1043, %v1240
    %v1448 = vmul.f32 %v1046, %v1240
    %v1450 = vrot.slane %v1442, 2
    %v1452 = vadd.f32 %v1441, %v1450
    %v1454 = vrot.slane %v1444, 2
    %v1456 = vadd.f32 %v1443, %v1454
    %v1458 = vrot.slane %v1446, 2
    %v1460 = vadd.f32 %v1445, %v1458
    %v1462 = vrot.slane %v1448, 2
    %v1464 = vadd.f32 %v1447, %v1462
    %v1466 = vrot.slane %v1456, 4
    %v1468 = vadd.f32 %v1452, %v1466
    %v1470 = vrot.slane %v1464, 4
    %v1472 = vadd.f32 %v1460, %v1470
    %v1473 = vadd.f32 %v1468, %v1472
    %v1474 = vmul.f32 %v1074, %v1235
    %v1475 = vmul.f32 %v1077, %v1235
    %v1476 = vmul.f32 %v1080, %v1235
    %v1477 = vmul.f32 %v1083, %v1235
    %v1478 = vmul.f32 %v1086, %v1240
    %v1479 = vmul.f32 %v1089, %v1240
    %v1480 = vmul.f32 %v1092, %v1240
    %v1481 = vmul.f32 %v1095, %v1240
    %v1483 = vrot.slane %v1475, 2
    %v1485 = vadd.f32 %v1474, %v1483
    %v1487 = vrot.slane %v1477, 2
    %v1489 = vadd.f32 %v1476, %v1487
    %v1491 = vrot.slane %v1479, 2
    %v1493 = vadd.f32 %v1478, %v1491
    %v1495 = vrot.slane %v1481, 2
    %v1497 = vadd.f32 %v1480, %v1495
    %v1499 = vrot.slane %v1489, 4
    %v1501 = vadd.f32 %v1485, %v1499
    %v1503 = vrot.slane %v1497, 4
    %v1505 = vadd.f32 %v1493, %v1503
    %v1506 = vadd.f32 %v1501, %v1505
    %v1508 = vrot.slane %v1308, 6
    %v1511 = vrot.slane %v1341, 4
    %v1514 = vrot.slane %v1374, 2
    %v1517 = vrot.slane %v1440, 6
    %v1520 = vrot.slane %v1473, 4
    %v1523 = vrot.slane %v1506, 2
    %v1525 = vsel %vm607, %v1275, %v1508
    %v1526 = vsel %vm609, %v1525, %v1511
    %v1527 = vsel %vm611, %v1526, %v1514
    %v1528 = vsel %vm607, %v1407, %v1517
    %v1529 = vsel %vm609, %v1528, %v1520
    %v1530 = vsel %vm611, %v1529, %v1523
    %v1531 = vlaneseq
    %v1532 = vshrl.u32 %v1531, 7
    %v1533 = vsub.s32 0, %v1532
    %v1534 = vrot.slane %v648, %v1533
    %v1535 = vadd.f32 %v1527, %v1534
    %v1536 = vadd.f32 %v1530, %v1534
    %v1537 = vadd.f32 %v1535, %v625
    %v1538 = vadd.f32 %v1536, %v626
    %vm1539 = vcmp.ge.f32.partialorder %v1537, 0.0
    %vm1540 = vcmp.ge.f32.partialorder %v1538, 0.0
    %v1541 = vmul.f32 %v1156, %v1537
    %v1542 = vmul.f32 %v1156, %v1538
    %v1543 = vsel %vm1539, %v1537, %v1541
    %v1544 = vsel %vm1540, %v1538, %v1542
    %v1546 = vsel %vm1161, %v1543, 0
    %v1549 = vsel %vm1161, %v1544, 0
    %1551 = vmatprep.subr.mxu0 0.0
    %1552 = vmatpush1.msra.mxu0 %v639
    %1553 = vmatprep.subr.mxu0 0.0
    %1554 = vmatpush1.msra.mxu0 %v640
    %1555 = vmatprep.subr.mxu0 0.0
    %1556 = vmatpush1.msra.mxu0 %v641
    %1557 = vmatprep.subr.mxu0 0.0
    %1558 = vmatpush1.msra.mxu0 %v642
    %1559 = vmatprep.subr.mxu0 0.0
    %1560 = vmatpush1.msra.mxu0 %v643
    %1561 = vmatprep.subr.mxu0 0.0
    %1562 = vmatpush1.msra.mxu0 %v644
    %1563 = vmatprep.subr.mxu0 0.0
    %1564 = vmatpush1.msra.mxu0 %v645
    %1565 = vmatprep.subr.mxu0 0.0
    %1566 = vmatpush1.msra.mxu0 %v646
    %1567 = vmatprep.subr.mxu0 0.0
    %1568 = vmatpush1.msra.mxu0 0.0
    %1569 = vmatprep.subr.mxu0 0.0
    %1570 = vmatpush1.msra.mxu0 0.0
    %1571 = vmatprep.subr.mxu0 0.0
    %1572 = vmatpush1.msra.mxu0 0.0
    %1573 = vmatprep.subr.mxu0 0.0
    %1574 = vmatpush1.msra.mxu0 0.0
    %1575 = vmatprep.subr.mxu0 0.0
    %1576 = vmatpush1.msra.mxu0 0.0
    %1577 = vmatprep.subr.mxu0 0.0
    %1578 = vmatpush1.msra.mxu0 0.0
    %1579 = vmatprep.subr.mxu0 0.0
    %1580 = vmatpush1.msra.mxu0 0.0
    %1581 = vmatprep.subr.mxu0 0.0
    %1582 = vmatpush1.msra.mxu0 0.0
    %1583 = vmatprep.subr.mxu0 0.0
    %1584 = vmatpush1.msra.mxu0 0.0
    %1585 = vmatprep.subr.mxu0 0.0
    %1586 = vmatpush1.msra.mxu0 0.0
    %1587 = vmatprep.subr.mxu0 0.0
    %1588 = vmatpush1.msra.mxu0 0.0
    %1589 = vmatprep.subr.mxu0 0.0
    %1590 = vmatpush1.msra.mxu0 0.0
    %1591 = vmatprep.subr.mxu0 0.0
    %1592 = vmatpush1.msra.mxu0 0.0
    %1593 = vmatprep.subr.mxu0 0.0
    %1594 = vmatpush1.msra.mxu0 0.0
    %1595 = vmatprep.subr.mxu0 0.0
    %1596 = vmatpush1.msra.mxu0 0.0
    %1597 = vmatprep.subr.mxu0 0.0
    %1598 = vmatpush1.msra.mxu0 0.0
    %1599 = vmatprep.subr.mxu0 0.0
    %1600 = vmatpush1.msra.mxu0 0.0
    %1601 = vmatprep.subr.mxu0 0.0
    %1602 = vmatpush1.msra.mxu0 0.0
    %1603 = vmatprep.subr.mxu0 0.0
    %1604 = vmatpush1.msra.mxu0 0.0
    %1605 = vmatprep.subr.mxu0 0.0
    %1606 = vmatpush1.msra.mxu0 0.0
    %1607 = vmatprep.subr.mxu0 0.0
    %1608 = vmatpush1.msra.mxu0 0.0
    %1609 = vmatprep.subr.mxu0 0.0
    %1610 = vmatpush1.msra.mxu0 0.0
    %1611 = vmatprep.subr.mxu0 0.0
    %1612 = vmatpush1.msra.mxu0 0.0
    %1613 = vmatprep.subr.mxu0 0.0
    %1614 = vmatpush1.msra.mxu0 0.0
    %1615 = vmatprep.mubr.f32.mxu0 0.0
    %1616 = vmatmul.mubr.f32.gmra.mrb[0].mxu0 %v1546
    %v1617 = vpop.f32.mrb[0].mxu0
    %v1618 = vadd.f32 0.0, %v1617
    %v1619 = vpop.f32.mrb[0].mxu0
    %1620 = vmatprep.mubr.f32.mxu0 0.0
    %1621 = vmatmul.mubr.f32.gmra.mrb[0].mxu0 %v1549
    %v1622 = vpop.f32.mrb[0].mxu0
    %v1623 = vadd.f32 0.0, %v1622
    %v1624 = vpop.f32.mrb[0].mxu0
    %1625 = vdwg.mxu0
    %v1626 = vmul.f32 %v731, %v1618
    %v1627 = vmul.f32 %v734, %v1618
    %v1628 = vmul.f32 %v737, %v1618
    %v1629 = vmul.f32 %v740, %v1618
    %v1630 = vmul.f32 %v743, %v1623
    %v1631 = vmul.f32 %v746, %v1623
    %v1632 = vmul.f32 %v749, %v1623
    %v1633 = vmul.f32 %v752, %v1623
    %v1635 = vrot.slane %v1627, 2
    %v1637 = vadd.f32 %v1626, %v1635
    %v1639 = vrot.slane %v1629, 2
    %v1641 = vadd.f32 %v1628, %v1639
    %v1643 = vrot.slane %v1631, 2
    %v1645 = vadd.f32 %v1630, %v1643
    %v1647 = vrot.slane %v1633, 2
    %v1649 = vadd.f32 %v1632, %v1647
    %v1651 = vrot.slane %v1641, 4
    %v1653 = vadd.f32 %v1637, %v1651
    %v1655 = vrot.slane %v1649, 4
    %v1657 = vadd.f32 %v1645, %v1655
    %v1658 = vadd.f32 %v1653, %v1657
    %v1659 = vmul.f32 %v780, %v1618
    %v1660 = vmul.f32 %v783, %v1618
    %v1661 = vmul.f32 %v786, %v1618
    %v1662 = vmul.f32 %v789, %v1618
    %v1663 = vmul.f32 %v792, %v1623
    %v1664 = vmul.f32 %v795, %v1623
    %v1665 = vmul.f32 %v798, %v1623
    %v1666 = vmul.f32 %v801, %v1623
    %v1668 = vrot.slane %v1660, 2
    %v1670 = vadd.f32 %v1659, %v1668
    %v1672 = vrot.slane %v1662, 2
    %v1674 = vadd.f32 %v1661, %v1672
    %v1676 = vrot.slane %v1664, 2
    %v1678 = vadd.f32 %v1663, %v1676
    %v1680 = vrot.slane %v1666, 2
    %v1682 = vadd.f32 %v1665, %v1680
    %v1684 = vrot.slane %v1674, 4
    %v1686 = vadd.f32 %v1670, %v1684
    %v1688 = vrot.slane %v1682, 4
    %v1690 = vadd.f32 %v1678, %v1688
    %v1691 = vadd.f32 %v1686, %v1690
    %v1692 = vmul.f32 %v829, %v1618
    %v1693 = vmul.f32 %v832, %v1618
    %v1694 = vmul.f32 %v835, %v1618
    %v1695 = vmul.f32 %v838, %v1618
    %v1696 = vmul.f32 %v841, %v1623
    %v1697 = vmul.f32 %v844, %v1623
    %v1698 = vmul.f32 %v847, %v1623
    %v1699 = vmul.f32 %v850, %v1623
    %v1701 = vrot.slane %v1693, 2
    %v1703 = vadd.f32 %v1692, %v1701
    %v1705 = vrot.slane %v1695, 2
    %v1707 = vadd.f32 %v1694, %v1705
    %v1709 = vrot.slane %v1697, 2
    %v1711 = vadd.f32 %v1696, %v1709
    %v1713 = vrot.slane %v1699, 2
    %v1715 = vadd.f32 %v1698, %v1713
    %v1717 = vrot.slane %v1707, 4
    %v1719 = vadd.f32 %v1703, %v1717
    %v1721 = vrot.slane %v1715, 4
    %v1723 = vadd.f32 %v1711, %v1721
    %v1724 = vadd.f32 %v1719, %v1723
    %v1725 = vmul.f32 %v878, %v1618
    %v1726 = vmul.f32 %v881, %v1618
    %v1727 = vmul.f32 %v884, %v1618
    %v1728 = vmul.f32 %v887, %v1618
    %v1729 = vmul.f32 %v890, %v1623
    %v1730 = vmul.f32 %v893, %v1623
    %v1731 = vmul.f32 %v896, %v1623
    %v1732 = vmul.f32 %v899, %v1623
    %v1734 = vrot.slane %v1726, 2
    %v1736 = vadd.f32 %v1725, %v1734
    %v1738 = vrot.slane %v1728, 2
    %v1740 = vadd.f32 %v1727, %v1738
    %v1742 = vrot.slane %v1730, 2
    %v1744 = vadd.f32 %v1729, %v1742
    %v1746 = vrot.slane %v1732, 2
    %v1748 = vadd.f32 %v1731, %v1746
    %v1750 = vrot.slane %v1740, 4
    %v1752 = vadd.f32 %v1736, %v1750
    %v1754 = vrot.slane %v1748, 4
    %v1756 = vadd.f32 %v1744, %v1754
    %v1757 = vadd.f32 %v1752, %v1756
    %v1758 = vmul.f32 %v927, %v1618
    %v1759 = vmul.f32 %v930, %v1618
    %v1760 = vmul.f32 %v933, %v1618
    %v1761 = vmul.f32 %v936, %v1618
    %v1762 = vmul.f32 %v939, %v1623
    %v1763 = vmul.f32 %v942, %v1623
    %v1764 = vmul.f32 %v945, %v1623
    %v1765 = vmul.f32 %v948, %v1623
    %v1767 = vrot.slane %v1759, 2
    %v1769 = vadd.f32 %v1758, %v1767
    %v1771 = vrot.slane %v1761, 2
    %v1773 = vadd.f32 %v1760, %v1771
    %v1775 = vrot.slane %v1763, 2
    %v1777 = vadd.f32 %v1762, %v1775
    %v1779 = vrot.slane %v1765, 2
    %v1781 = vadd.f32 %v1764, %v1779
    %v1783 = vrot.slane %v1773, 4
    %v1785 = vadd.f32 %v1769, %v1783
    %v1787 = vrot.slane %v1781, 4
    %v1789 = vadd.f32 %v1777, %v1787
    %v1790 = vadd.f32 %v1785, %v1789
    %v1791 = vmul.f32 %v976, %v1618
    %v1792 = vmul.f32 %v979, %v1618
    %v1793 = vmul.f32 %v982, %v1618
    %v1794 = vmul.f32 %v985, %v1618
    %v1795 = vmul.f32 %v988, %v1623
    %v1796 = vmul.f32 %v991, %v1623
    %v1797 = vmul.f32 %v994, %v1623
    %v1798 = vmul.f32 %v997, %v1623
    %v1800 = vrot.slane %v1792, 2
    %v1802 = vadd.f32 %v1791, %v1800
    %v1804 = vrot.slane %v1794, 2
    %v1806 = vadd.f32 %v1793, %v1804
    %v1808 = vrot.slane %v1796, 2
    %v1810 = vadd.f32 %v1795, %v1808
    %v1812 = vrot.slane %v1798, 2
    %v1814 = vadd.f32 %v1797, %v1812
    %v1816 = vrot.slane %v1806, 4
    %v1818 = vadd.f32 %v1802, %v1816
    %v1820 = vrot.slane %v1814, 4
    %v1822 = vadd.f32 %v1810, %v1820
    %v1823 = vadd.f32 %v1818, %v1822
    %v1824 = vmul.f32 %v1025, %v1618
    %v1825 = vmul.f32 %v1028, %v1618
    %v1826 = vmul.f32 %v1031, %v1618
    %v1827 = vmul.f32 %v1034, %v1618
    %v1828 = vmul.f32 %v1037, %v1623
    %v1829 = vmul.f32 %v1040, %v1623
    %v1830 = vmul.f32 %v1043, %v1623
    %v1831 = vmul.f32 %v1046, %v1623
    %v1833 = vrot.slane %v1825, 2
    %v1835 = vadd.f32 %v1824, %v1833
    %v1837 = vrot.slane %v1827, 2
    %v1839 = vadd.f32 %v1826, %v1837
    %v1841 = vrot.slane %v1829, 2
    %v1843 = vadd.f32 %v1828, %v1841
    %v1845 = vrot.slane %v1831, 2
    %v1847 = vadd.f32 %v1830, %v1845
    %v1849 = vrot.slane %v1839, 4
    %v1851 = vadd.f32 %v1835, %v1849
    %v1853 = vrot.slane %v1847, 4
    %v1855 = vadd.f32 %v1843, %v1853
    %v1856 = vadd.f32 %v1851, %v1855
    %v1857 = vmul.f32 %v1074, %v1618
    %v1858 = vmul.f32 %v1077, %v1618
    %v1859 = vmul.f32 %v1080, %v1618
    %v1860 = vmul.f32 %v1083, %v1618
    %v1861 = vmul.f32 %v1086, %v1623
    %v1862 = vmul.f32 %v1089, %v1623
    %v1863 = vmul.f32 %v1092, %v1623
    %v1864 = vmul.f32 %v1095, %v1623
    %v1866 = vrot.slane %v1858, 2
    %v1868 = vadd.f32 %v1857, %v1866
    %v1870 = vrot.slane %v1860, 2
    %v1872 = vadd.f32 %v1859, %v1870
    %v1874 = vrot.slane %v1862, 2
    %v1876 = vadd.f32 %v1861, %v1874
    %v1878 = vrot.slane %v1864, 2
    %v1880 = vadd.f32 %v1863, %v1878
    %v1882 = vrot.slane %v1872, 4
    %v1884 = vadd.f32 %v1868, %v1882
    %v1886 = vrot.slane %v1880, 4
    %v1888 = vadd.f32 %v1876, %v1886
    %v1889 = vadd.f32 %v1884, %v1888
    %v1891 = vrot.slane %v1691, 6
    %v1894 = vrot.slane %v1724, 4
    %v1897 = vrot.slane %v1757, 2
    %v1900 = vrot.slane %v1823, 6
    %v1903 = vrot.slane %v1856, 4
    %v1906 = vrot.slane %v1889, 2
    %v1908 = vsel %vm607, %v1658, %v1891
    %v1909 = vsel %vm609, %v1908, %v1894
    %v1910 = vsel %vm611, %v1909, %v1897
    %v1911 = vsel %vm607, %v1790, %v1900
    %v1912 = vsel %vm609, %v1911, %v1903
    %v1913 = vsel %vm611, %v1912, %v1906
    %v1914 = vlaneseq
    %v1915 = vshrl.u32 %v1914, 7
    %v1916 = vsub.s32 0, %v1915
    %v1917 = vrot.slane %v649, %v1916
    %v1918 = vadd.f32 %v1910, %v1917
    %v1919 = vadd.f32 %v1913, %v1917
    %v1920 = vadd.f32 %v1918, %v612
    %v1921 = vadd.f32 %v1919, %v615
    %vm1922 = vcmp.ge.f32.partialorder %v1920, 0.0
    %vm1923 = vcmp.ge.f32.partialorder %v1921, 0.0
    %v1924 = vmul.f32 %v1156, %v1920
    %v1925 = vmul.f32 %v1156, %v1921
    %v1926 = vsel %vm1922, %v1920, %v1924
    %v1927 = vsel %vm1923, %v1921, %v1925
    %v1928 = vld [vmem:[#allocation2 + $0x150] sm:$0xff]
    %v1929 = vld [vmem:[#allocation2 + $0x158] sm:$0xff]
    %v1930 = vld [vmem:[#allocation2 + $0x160] sm:$0xff]
    %v1931 = vld [vmem:[#allocation2 + $0x168] sm:$0xff]
    %v1932 = vld [vmem:[#allocation2 + $0x170] sm:$0xff]
    %v1933 = vld [vmem:[#allocation2 + $0x178] sm:$0xff]
    %v1934 = vld [vmem:[#allocation2 + $0x180] sm:$0xff]
    %v1935 = vld [vmem:[#allocation2 + $0x188] sm:$0xff]
    %v1937 = vrot.slane %v1926, 2
    %v1938 = vsel %vm624, %v1937, 0
    %1940 = vmatprep.subr.mxu0 0.0
    %1941 = vmatpush1.msra.mxu0 %v1932
    %1942 = vmatprep.subr.mxu0 0.0
    %1943 = vmatpush1.msra.mxu0 %v1933
    %1944 = vmatprep.subr.mxu0 0.0
    %1945 = vmatpush1.msra.mxu0 %v1934
    %1946 = vmatprep.subr.mxu0 0.0
    %1947 = vmatpush1.msra.mxu0 %v1935
    %1948 = vmatprep.subr.mxu0 0.0
    %1949 = vmatpush1.msra.mxu0 0.0
    %1950 = vmatprep.subr.mxu0 0.0
    %1951 = vmatpush1.msra.mxu0 0.0
    %1952 = vmatprep.subr.mxu0 0.0
    %1953 = vmatpush1.msra.mxu0 0.0
    %1954 = vmatprep.subr.mxu0 0.0
    %1955 = vmatpush1.msra.mxu0 0.0
    %1956 = vmatprep.subr.mxu0 0.0
    %1957 = vmatpush1.msra.mxu0 0.0
    %1958 = vmatprep.subr.mxu0 0.0
    %1959 = vmatpush1.msra.mxu0 0.0
    %1960 = vmatprep.subr.mxu0 0.0
    %1961 = vmatpush1.msra.mxu0 0.0
    %1962 = vmatprep.subr.mxu0 0.0
    %1963 = vmatpush1.msra.mxu0 0.0
    %1964 = vmatprep.subr.mxu0 0.0
    %1965 = vmatpush1.msra.mxu0 0.0
    %1966 = vmatprep.subr.mxu0 0.0
    %1967 = vmatpush1.msra.mxu0 0.0
    %1968 = vmatprep.subr.mxu0 0.0
    %1969 = vmatpush1.msra.mxu0 0.0
    %1970 = vmatprep.subr.mxu0 0.0
    %1971 = vmatpush1.msra.mxu0 0.0
    %1972 = vmatprep.subr.mxu0 0.0
    %1973 = vmatpush1.msra.mxu0 0.0
    %1974 = vmatprep.subr.mxu0 0.0
    %1975 = vmatpush1.msra.mxu0 0.0
    %1976 = vmatprep.subr.mxu0 0.0
    %1977 = vmatpush1.msra.mxu0 0.0
    %1978 = vmatprep.subr.mxu0 0.0
    %1979 = vmatpush1.msra.mxu0 0.0
    %1980 = vmatprep.subr.mxu0 0.0
    %1981 = vmatpush1.msra.mxu0 0.0
    %1982 = vmatprep.subr.mxu0 0.0
    %1983 = vmatpush1.msra.mxu0 0.0
    %1984 = vmatprep.subr.mxu0 0.0
    %1985 = vmatpush1.msra.mxu0 0.0
    %1986 = vmatprep.subr.mxu0 0.0
    %1987 = vmatpush1.msra.mxu0 0.0
    %1988 = vmatprep.subr.mxu0 0.0
    %1989 = vmatpush1.msra.mxu0 0.0
    %1990 = vmatprep.subr.mxu0 0.0
    %1991 = vmatpush1.msra.mxu0 0.0
    %1992 = vmatprep.subr.mxu0 0.0
    %1993 = vmatpush1.msra.mxu0 0.0
    %1994 = vmatprep.subr.mxu0 0.0
    %1995 = vmatpush1.msra.mxu0 0.0
    %1996 = vmatprep.subr.mxu0 0.0
    %1997 = vmatpush1.msra.mxu0 0.0
    %1998 = vmatprep.subr.mxu0 0.0
    %1999 = vmatpush1.msra.mxu0 0.0
    %2000 = vmatprep.subr.mxu0 0.0
    %2001 = vmatpush1.msra.mxu0 0.0
    %2002 = vmatprep.subr.mxu0 0.0
    %2003 = vmatpush1.msra.mxu0 0.0
    %2004 = vmatprep.mubr.f32.mxu0 0.0
    %2005 = vmatmul.mubr.f32.gmra.mrb[0].mxu0 %v1938
    %v2006 = vpop.f32.mrb[0].mxu0
    %v2007 = vadd.f32 0.0, %v2006
    %v2008 = vpop.f32.mrb[0].mxu0
    %2009 = vdwg.mxu0
    %v2010 = vld [vmem:[#allocation2 + $0x190] sm:$0xff]
    %v2011 = vld [vmem:[#allocation2 + $0x198] sm:$0xff]
    %v2012 = vld [vmem:[#allocation2 + $0x1a0] sm:$0xff]
    %v2013 = vld [vmem:[#allocation2 + $0x1a8] sm:$0xff]
    %v2014 = vld [vmem:[#allocation2 + $0x1b0] sm:$0xff]
    %v2015 = vld [vmem:[#allocation2 + $0x1b8] sm:$0xff]
    %v2016 = vld [vmem:[#allocation2 + $0x1c0] sm:$0xff]
    %v2017 = vld [vmem:[#allocation2 + $0x1c8] sm:$0xff]
    %v2018 = vrot.slane %v1926, 6
    %v2019 = vsel %vm624, %v2018, 0
    %2021 = vmatprep.subr.mxu0 0.0
    %2022 = vmatpush1.msra.mxu0 %v2014
    %2023 = vmatprep.subr.mxu0 0.0
    %2024 = vmatpush1.msra.mxu0 %v2015
    %2025 = vmatprep.subr.mxu0 0.0
    %2026 = vmatpush1.msra.mxu0 %v2016
    %2027 = vmatprep.subr.mxu0 0.0
    %2028 = vmatpush1.msra.mxu0 %v2017
    %2029 = vmatprep.subr.mxu0 0.0
    %2030 = vmatpush1.msra.mxu0 0.0
    %2031 = vmatprep.subr.mxu0 0.0
    %2032 = vmatpush1.msra.mxu0 0.0
    %2033 = vmatprep.subr.mxu0 0.0
    %2034 = vmatpush1.msra.mxu0 0.0
    %2035 = vmatprep.subr.mxu0 0.0
    %2036 = vmatpush1.msra.mxu0 0.0
    %2037 = vmatprep.subr.mxu0 0.0
    %2038 = vmatpush1.msra.mxu0 0.0
    %2039 = vmatprep.subr.mxu0 0.0
    %2040 = vmatpush1.msra.mxu0 0.0
    %2041 = vmatprep.subr.mxu0 0.0
    %2042 = vmatpush1.msra.mxu0 0.0
    %2043 = vmatprep.subr.mxu0 0.0
    %2044 = vmatpush1.msra.mxu0 0.0
    %2045 = vmatprep.subr.mxu0 0.0
    %2046 = vmatpush1.msra.mxu0 0.0
    %2047 = vmatprep.subr.mxu0 0.0
    %2048 = vmatpush1.msra.mxu0 0.0
    %2049 = vmatprep.subr.mxu0 0.0
    %2050 = vmatpush1.msra.mxu0 0.0
    %2051 = vmatprep.subr.mxu0 0.0
    %2052 = vmatpush1.msra.mxu0 0.0
    %2053 = vmatprep.subr.mxu0 0.0
    %2054 = vmatpush1.msra.mxu0 0.0
    %2055 = vmatprep.subr.mxu0 0.0
    %2056 = vmatpush1.msra.mxu0 0.0
    %2057 = vmatprep.subr.mxu0 0.0
    %2058 = vmatpush1.msra.mxu0 0.0
    %2059 = vmatprep.subr.mxu0 0.0
    %2060 = vmatpush1.msra.mxu0 0.0
    %2061 = vmatprep.subr.mxu0 0.0
    %2062 = vmatpush1.msra.mxu0 0.0
    %2063 = vmatprep.subr.mxu0 0.0
    %2064 = vmatpush1.msra.mxu0 0.0
    %2065 = vmatprep.subr.mxu0 0.0
    %2066 = vmatpush1.msra.mxu0 0.0
    %2067 = vmatprep.subr.mxu0 0.0
    %2068 = vmatpush1.msra.mxu0 0.0
    %2069 = vmatprep.subr.mxu0 0.0
    %2070 = vmatpush1.msra.mxu0 0.0
    %2071 = vmatprep.subr.mxu0 0.0
    %2072 = vmatpush1.msra.mxu0 0.0
    %2073 = vmatprep.subr.mxu0 0.0
    %2074 = vmatpush1.msra.mxu0 0.0
    %2075 = vmatprep.subr.mxu0 0.0
    %2076 = vmatpush1.msra.mxu0 0.0
    %2077 = vmatprep.subr.mxu0 0.0
    %2078 = vmatpush1.msra.mxu0 0.0
    %2079 = vmatprep.subr.mxu0 0.0
    %2080 = vmatpush1.msra.mxu0 0.0
    %2081 = vmatprep.subr.mxu0 0.0
    %2082 = vmatpush1.msra.mxu0 0.0
    %2083 = vmatprep.subr.mxu0 0.0
    %2084 = vmatpush1.msra.mxu0 0.0
    %2085 = vmatprep.mubr.f32.mxu0 0.0
    %2086 = vmatmul.mubr.f32.gmra.mrb[0].mxu0 %v2019
    %v2087 = vpop.f32.mrb[0].mxu0
    %v2088 = vadd.f32 0.0, %v2087
    %v2089 = vpop.f32.mrb[0].mxu0
    %2090 = vdwg.mxu0
    %v2091 = vld [vmem:[#allocation2 + $0x1d0] sm:$0xff]
    %v2092 = vld [vmem:[#allocation2 + $0x1d8] sm:$0xff]
    %v2093 = vld [vmem:[#allocation2 + $0x1e0] sm:$0xff]
    %v2094 = vld [vmem:[#allocation2 + $0x1e8] sm:$0xff]
    %v2095 = vld [vmem:[#allocation2 + $0x1f0] sm:$0xff]
    %v2096 = vld [vmem:[#allocation2 + $0x1f8] sm:$0xff]
    %v2097 = vld [vmem:[#allocation2 + $0x200] sm:$0xff]
    %v2098 = vld [vmem:[#allocation2 + $0x208] sm:$0xff]
    %v2100 = vrot.slane %v1927, 2
    %v2101 = vsel %vm624, %v2100, 0
    %2103 = vmatprep.subr.mxu0 0.0
    %2104 = vmatpush1.msra.mxu0 %v2095
    %2105 = vmatprep.subr.mxu0 0.0
    %2106 = vmatpush1.msra.mxu0 %v2096
    %2107 = vmatprep.subr.mxu0 0.0
    %2108 = vmatpush1.msra.mxu0 %v2097
    %2109 = vmatprep.subr.mxu0 0.0
    %2110 = vmatpush1.msra.mxu0 %v2098
    %2111 = vmatprep.subr.mxu0 0.0
    %2112 = vmatpush1.msra.mxu0 0.0
    %2113 = vmatprep.subr.mxu0 0.0
    %2114 = vmatpush1.msra.mxu0 0.0
    %2115 = vmatprep.subr.mxu0 0.0
    %2116 = vmatpush1.msra.mxu0 0.0
    %2117 = vmatprep.subr.mxu0 0.0
    %2118 = vmatpush1.msra.mxu0 0.0
    %2119 = vmatprep.subr.mxu0 0.0
    %2120 = vmatpush1.msra.mxu0 0.0
    %2121 = vmatprep.subr.mxu0 0.0
    %2122 = vmatpush1.msra.mxu0 0.0
    %2123 = vmatprep.subr.mxu0 0.0
    %2124 = vmatpush1.msra.mxu0 0.0
    %2125 = vmatprep.subr.mxu0 0.0
    %2126 = vmatpush1.msra.mxu0 0.0
    %2127 = vmatprep.subr.mxu0 0.0
    %2128 = vmatpush1.msra.mxu0 0.0
    %2129 = vmatprep.subr.mxu0 0.0
    %2130 = vmatpush1.msra.mxu0 0.0
    %2131 = vmatprep.subr.mxu0 0.0
    %2132 = vmatpush1.msra.mxu0 0.0
    %2133 = vmatprep.subr.mxu0 0.0
    %2134 = vmatpush1.msra.mxu0 0.0
    %2135 = vmatprep.subr.mxu0 0.0
    %2136 = vmatpush1.msra.mxu0 0.0
    %2137 = vmatprep.subr.mxu0 0.0
    %2138 = vmatpush1.msra.mxu0 0.0
    %2139 = vmatprep.subr.mxu0 0.0
    %2140 = vmatpush1.msra.mxu0 0.0
    %2141 = vmatprep.subr.mxu0 0.0
    %2142 = vmatpush1.msra.mxu0 0.0
    %2143 = vmatprep.subr.mxu0 0.0
    %2144 = vmatpush1.msra.mxu0 0.0
    %2145 = vmatprep.subr.mxu0 0.0
    %2146 = vmatpush1.msra.mxu0 0.0
    %2147 = vmatprep.subr.mxu0 0.0
    %2148 = vmatpush1.msra.mxu0 0.0
    %2149 = vmatprep.subr.mxu0 0.0
    %2150 = vmatpush1.msra.mxu0 0.0
    %2151 = vmatprep.subr.mxu0 0.0
    %2152 = vmatpush1.msra.mxu0 0.0
    %2153 = vmatprep.subr.mxu0 0.0
    %2154 = vmatpush1.msra.mxu0 0.0
    %2155 = vmatprep.subr.mxu0 0.0
    %2156 = vmatpush1.msra.mxu0 0.0
    %2157 = vmatprep.subr.mxu0 0.0
    %2158 = vmatpush1.msra.mxu0 0.0
    %2159 = vmatprep.subr.mxu0 0.0
    %2160 = vmatpush1.msra.mxu0 0.0
    %2161 = vmatprep.subr.mxu0 0.0
    %2162 = vmatpush1.msra.mxu0 0.0
    %2163 = vmatprep.subr.mxu0 0.0
    %2164 = vmatpush1.msra.mxu0 0.0
    %2165 = vmatprep.subr.mxu0 0.0
    %2166 = vmatpush1.msra.mxu0 0.0
    %2167 = vmatprep.mubr.f32.mxu0 0.0
    %2168 = vmatmul.mubr.f32.gmra.mrb[0].mxu0 %v2101
    %v2169 = vpop.f32.mrb[0].mxu0
    %v2170 = vadd.f32 0.0, %v2169
    %v2171 = vpop.f32.mrb[0].mxu0
    %2172 = vdwg.mxu0
    %v2173 = vld [vmem:[#allocation2 + $0x210] sm:$0xff]
    %v2174 = vld [vmem:[#allocation2 + $0x218] sm:$0xff]
    %v2175 = vld [vmem:[#allocation2 + $0x220] sm:$0xff]
    %v2176 = vld [vmem:[#allocation2 + $0x228] sm:$0xff]
    %v2177 = vld [vmem:[#allocation2 + $0x230] sm:$0xff]
    %v2178 = vld [vmem:[#allocation2 + $0x238] sm:$0xff]
    %v2179 = vld [vmem:[#allocation2 + $0x240] sm:$0xff]
    %v2180 = vld [vmem:[#allocation2 + $0x248] sm:$0xff]
    %v2181 = vrot.slane %v1927, 6
    %v2182 = vsel %vm624, %v2181, 0
    %2184 = vmatprep.subr.mxu0 0.0
    %2185 = vmatpush1.msra.mxu0 %v2177
    %2186 = vmatprep.subr.mxu0 0.0
    %2187 = vmatpush1.msra.mxu0 %v2178
    %2188 = vmatprep.subr.mxu0 0.0
    %2189 = vmatpush1.msra.mxu0 %v2179
    %2190 = vmatprep.subr.mxu0 0.0
    %2191 = vmatpush1.msra.mxu0 %v2180
    %2192 = vmatprep.subr.mxu0 0.0
    %2193 = vmatpush1.msra.mxu0 0.0
    %2194 = vmatprep.subr.mxu0 0.0
    %2195 = vmatpush1.msra.mxu0 0.0
    %2196 = vmatprep.subr.mxu0 0.0
    %2197 = vmatpush1.msra.mxu0 0.0
    %2198 = vmatprep.subr.mxu0 0.0
    %2199 = vmatpush1.msra.mxu0 0.0
    %2200 = vmatprep.subr.mxu0 0.0
    %2201 = vmatpush1.msra.mxu0 0.0
    %2202 = vmatprep.subr.mxu0 0.0
    %2203 = vmatpush1.msra.mxu0 0.0
    %2204 = vmatprep.subr.mxu0 0.0
    %2205 = vmatpush1.msra.mxu0 0.0
    %2206 = vmatprep.subr.mxu0 0.0
    %2207 = vmatpush1.msra.mxu0 0.0
    %2208 = vmatprep.subr.mxu0 0.0
    %2209 = vmatpush1.msra.mxu0 0.0
    %2210 = vmatprep.subr.mxu0 0.0
    %2211 = vmatpush1.msra.mxu0 0.0
    %2212 = vmatprep.subr.mxu0 0.0
    %2213 = vmatpush1.msra.mxu0 0.0
    %2214 = vmatprep.subr.mxu0 0.0
    %2215 = vmatpush1.msra.mxu0 0.0
    %2216 = vmatprep.subr.mxu0 0.0
    %2217 = vmatpush1.msra.mxu0 0.0
    %2218 = vmatprep.subr.mxu0 0.0
    %2219 = vmatpush1.msra.mxu0 0.0
    %2220 = vmatprep.subr.mxu0 0.0
    %2221 = vmatpush1.msra.mxu0 0.0
    %2222 = vmatprep.subr.mxu0 0.0
    %2223 = vmatpush1.msra.mxu0 0.0
    %2224 = vmatprep.subr.mxu0 0.0
    %2225 = vmatpush1.msra.mxu0 0.0
    %2226 = vmatprep.subr.mxu0 0.0
    %2227 = vmatpush1.msra.mxu0 0.0
    %2228 = vmatprep.subr.mxu0 0.0
    %2229 = vmatpush1.msra.mxu0 0.0
    %2230 = vmatprep.subr.mxu0 0.0
    %2231 = vmatpush1.msra.mxu0 0.0
    %2232 = vmatprep.subr.mxu0 0.0
    %2233 = vmatpush1.msra.mxu0 0.0
    %2234 = vmatprep.subr.mxu0 0.0
    %2235 = vmatpush1.msra.mxu0 0.0
    %2236 = vmatprep.subr.mxu0 0.0
    %2237 = vmatpush1.msra.mxu0 0.0
    %2238 = vmatprep.subr.mxu0 0.0
    %2239 = vmatpush1.msra.mxu0 0.0
    %2240 = vmatprep.subr.mxu0 0.0
    %2241 = vmatpush1.msra.mxu0 0.0
    %2242 = vmatprep.subr.mxu0 0.0
    %2243 = vmatpush1.msra.mxu0 0.0
    %2244 = vmatprep.subr.mxu0 0.0
    %2245 = vmatpush1.msra.mxu0 0.0
    %2246 = vmatprep.subr.mxu0 0.0
    %2247 = vmatpush1.msra.mxu0 0.0
    %2248 = vmatprep.mubr.f32.mxu0 0.0
    %2249 = vmatmul.mubr.f32.gmra.mrb[0].mxu0 %v2182
    %v2250 = vpop.f32.mrb[0].mxu0
    %v2251 = vadd.f32 0.0, %v2250
    %v2252 = vpop.f32.mrb[0].mxu0
    %2253 = vdwg.mxu0
    %v2254 = vsel %vm624, %v1926, 0
    %2256 = vmatprep.subr.mxu0 0.0
    %2257 = vmatpush1.msra.mxu0 %v1928
    %2258 = vmatprep.subr.mxu0 0.0
    %2259 = vmatpush1.msra.mxu0 %v1929
    %2260 = vmatprep.subr.mxu0 0.0
    %2261 = vmatpush1.msra.mxu0 %v1930
    %2262 = vmatprep.subr.mxu0 0.0
    %2263 = vmatpush1.msra.mxu0 %v1931
    %2264 = vmatprep.subr.mxu0 0.0
    %2265 = vmatpush1.msra.mxu0 0.0
    %2266 = vmatprep.subr.mxu0 0.0
    %2267 = vmatpush1.msra.mxu0 0.0
    %2268 = vmatprep.subr.mxu0 0.0
    %2269 = vmatpush1.msra.mxu0 0.0
    %2270 = vmatprep.subr.mxu0 0.0
    %2271 = vmatpush1.msra.mxu0 0.0
    %2272 = vmatprep.subr.mxu0 0.0
    %2273 = vmatpush1.msra.mxu0 0.0
    %2274 = vmatprep.subr.mxu0 0.0
    %2275 = vmatpush1.msra.mxu0 0.0
    %2276 = vmatprep.subr.mxu0 0.0
    %2277 = vmatpush1.msra.mxu0 0.0
    %2278 = vmatprep.subr.mxu0 0.0
    %2279 = vmatpush1.msra.mxu0 0.0
    %2280 = vmatprep.subr.mxu0 0.0
    %2281 = vmatpush1.msra.mxu0 0.0
    %2282 = vmatprep.subr.mxu0 0.0
    %2283 = vmatpush1.msra.mxu0 0.0
    %2284 = vmatprep.subr.mxu0 0.0
    %2285 = vmatpush1.msra.mxu0 0.0
    %2286 = vmatprep.subr.mxu0 0.0
    %2287 = vmatpush1.msra.mxu0 0.0
    %2288 = vmatprep.subr.mxu0 0.0
    %2289 = vmatpush1.msra.mxu0 0.0
    %2290 = vmatprep.subr.mxu0 0.0
    %2291 = vmatpush1.msra.mxu0 0.0
    %2292 = vmatprep.subr.mxu0 0.0
    %2293 = vmatpush1.msra.mxu0 0.0
    %2294 = vmatprep.subr.mxu0 0.0
    %2295 = vmatpush1.msra.mxu0 0.0
    %2296 = vmatprep.subr.mxu0 0.0
    %2297 = vmatpush1.msra.mxu0 0.0
    %2298 = vmatprep.subr.mxu0 0.0
    %2299 = vmatpush1.msra.mxu0 0.0
    %2300 = vmatprep.subr.mxu0 0.0
    %2301 = vmatpush1.msra.mxu0 0.0
    %2302 = vmatprep.subr.mxu0 0.0
    %2303 = vmatpush1.msra.mxu0 0.0
    %2304 = vmatprep.subr.mxu0 0.0
    %2305 = vmatpush1.msra.mxu0 0.0
    %2306 = vmatprep.subr.mxu0 0.0
    %2307 = vmatpush1.msra.mxu0 0.0
    %2308 = vmatprep.subr.mxu0 0.0
    %2309 = vmatpush1.msra.mxu0 0.0
    %2310 = vmatprep.subr.mxu0 0.0
    %2311 = vmatpush1.msra.mxu0 0.0
    %2312 = vmatprep.subr.mxu0 0.0
    %2313 = vmatpush1.msra.mxu0 0.0
    %2314 = vmatprep.subr.mxu0 0.0
    %2315 = vmatpush1.msra.mxu0 0.0
    %2316 = vmatprep.subr.mxu0 0.0
    %2317 = vmatpush1.msra.mxu0 0.0
    %2318 = vmatprep.subr.mxu0 0.0
    %2319 = vmatpush1.msra.mxu0 0.0
    %2320 = vmatprep.mubr.f32.mxu0 0.0
    %2321 = vmatmul.mubr.f32.gmra.mrb[0].mxu0 %v2254
    %v2322 = vpop.f32.mrb[0].mxu0
    %v2323 = vadd.f32 %v2007, %v2322
    %v2324 = vpop.f32.mrb[0].mxu0
    %2325 = vdwg.mxu0
    %v2326 = vrot.slane %v1926, 4
    %v2327 = vsel %vm624, %v2326, 0
    %2329 = vmatprep.subr.mxu0 0.0
    %2330 = vmatpush1.msra.mxu0 %v2010
    %2331 = vmatprep.subr.mxu0 0.0
    %2332 = vmatpush1.msra.mxu0 %v2011
    %2333 = vmatprep.subr.mxu0 0.0
    %2334 = vmatpush1.msra.mxu0 %v2012
    %2335 = vmatprep.subr.mxu0 0.0
    %2336 = vmatpush1.msra.mxu0 %v2013
    %2337 = vmatprep.subr.mxu0 0.0
    %2338 = vmatpush1.msra.mxu0 0.0
    %2339 = vmatprep.subr.mxu0 0.0
    %2340 = vmatpush1.msra.mxu0 0.0
    %2341 = vmatprep.subr.mxu0 0.0
    %2342 = vmatpush1.msra.mxu0 0.0
    %2343 = vmatprep.subr.mxu0 0.0
    %2344 = vmatpush1.msra.mxu0 0.0
    %2345 = vmatprep.subr.mxu0 0.0
    %2346 = vmatpush1.msra.mxu0 0.0
    %2347 = vmatprep.subr.mxu0 0.0
    %2348 = vmatpush1.msra.mxu0 0.0
    %2349 = vmatprep.subr.mxu0 0.0
    %2350 = vmatpush1.msra.mxu0 0.0
    %2351 = vmatprep.subr.mxu0 0.0
    %2352 = vmatpush1.msra.mxu0 0.0
    %2353 = vmatprep.subr.mxu0 0.0
    %2354 = vmatpush1.msra.mxu0 0.0
    %2355 = vmatprep.subr.mxu0 0.0
    %2356 = vmatpush1.msra.mxu0 0.0
    %2357 = vmatprep.subr.mxu0 0.0
    %2358 = vmatpush1.msra.mxu0 0.0
    %2359 = vmatprep.subr.mxu0 0.0
    %2360 = vmatpush1.msra.mxu0 0.0
    %2361 = vmatprep.subr.mxu0 0.0
    %2362 = vmatpush1.msra.mxu0 0.0
    %2363 = vmatprep.subr.mxu0 0.0
    %2364 = vmatpush1.msra.mxu0 0.0
    %2365 = vmatprep.subr.mxu0 0.0
    %2366 = vmatpush1.msra.mxu0 0.0
    %2367 = vmatprep.subr.mxu0 0.0
    %2368 = vmatpush1.msra.mxu0 0.0
    %2369 = vmatprep.subr.mxu0 0.0
    %2370 = vmatpush1.msra.mxu0 0.0
    %2371 = vmatprep.subr.mxu0 0.0
    %2372 = vmatpush1.msra.mxu0 0.0
    %2373 = vmatprep.subr.mxu0 0.0
    %2374 = vmatpush1.msra.mxu0 0.0
    %2375 = vmatprep.subr.mxu0 0.0
    %2376 = vmatpush1.msra.mxu0 0.0
    %2377 = vmatprep.subr.mxu0 0.0
    %2378 = vmatpush1.msra.mxu0 0.0
    %2379 = vmatprep.subr.mxu0 0.0
    %2380 = vmatpush1.msra.mxu0 0.0
    %2381 = vmatprep.subr.mxu0 0.0
    %2382 = vmatpush1.msra.mxu0 0.0
    %2383 = vmatprep.subr.mxu0 0.0
    %2384 = vmatpush1.msra.mxu0 0.0
    %2385 = vmatprep.subr.mxu0 0.0
    %2386 = vmatpush1.msra.mxu0 0.0
    %2387 = vmatprep.subr.mxu0 0.0
    %2388 = vmatpush1.msra.mxu0 0.0
    %2389 = vmatprep.subr.mxu0 0.0
    %2390 = vmatpush1.msra.mxu0 0.0
    %2391 = vmatprep.subr.mxu0 0.0
    %2392 = vmatpush1.msra.mxu0 0.0
    %2393 = vmatprep.mubr.f32.mxu0 0.0
    %2394 = vmatmul.mubr.f32.gmra.mrb[0].mxu0 %v2327
    %v2395 = vpop.f32.mrb[0].mxu0
    %v2396 = vadd.f32 %v2088, %v2395
    %v2397 = vpop.f32.mrb[0].mxu0
    %2398 = vdwg.mxu0
    %v2399 = vsel %vm624, %v1927, 0
    %2401 = vmatprep.subr.mxu0 0.0
    %2402 = vmatpush1.msra.mxu0 %v2091
    %2403 = vmatprep.subr.mxu0 0.0
    %2404 = vmatpush1.msra.mxu0 %v2092
    %2405 = vmatprep.subr.mxu0 0.0
    %2406 = vmatpush1.msra.mxu0 %v2093
    %2407 = vmatprep.subr.mxu0 0.0
    %2408 = vmatpush1.msra.mxu0 %v2094
    %2409 = vmatprep.subr.mxu0 0.0
    %2410 = vmatpush1.msra.mxu0 0.0
    %2411 = vmatprep.subr.mxu0 0.0
    %2412 = vmatpush1.msra.mxu0 0.0
    %2413 = vmatprep.subr.mxu0 0.0
    %2414 = vmatpush1.msra.mxu0 0.0
    %2415 = vmatprep.subr.mxu0 0.0
    %2416 = vmatpush1.msra.mxu0 0.0
    %2417 = vmatprep.subr.mxu0 0.0
    %2418 = vmatpush1.msra.mxu0 0.0
    %2419 = vmatprep.subr.mxu0 0.0
    %2420 = vmatpush1.msra.mxu0 0.0
    %2421 = vmatprep.subr.mxu0 0.0
    %2422 = vmatpush1.msra.mxu0 0.0
    %2423 = vmatprep.subr.mxu0 0.0
    %2424 = vmatpush1.msra.mxu0 0.0
    %2425 = vmatprep.subr.mxu0 0.0
    %2426 = vmatpush1.msra.mxu0 0.0
    %2427 = vmatprep.subr.mxu0 0.0
    %2428 = vmatpush1.msra.mxu0 0.0
    %2429 = vmatprep.subr.mxu0 0.0
    %2430 = vmatpush1.msra.mxu0 0.0
    %2431 = vmatprep.subr.mxu0 0.0
    %2432 = vmatpush1.msra.mxu0 0.0
    %2433 = vmatprep.subr.mxu0 0.0
    %2434 = vmatpush1.msra.mxu0 0.0
    %2435 = vmatprep.subr.mxu0 0.0
    %2436 = vmatpush1.msra.mxu0 0.0
    %2437 = vmatprep.subr.mxu0 0.0
    %2438 = vmatpush1.msra.mxu0 0.0
    %2439 = vmatprep.subr.mxu0 0.0
    %2440 = vmatpush1.msra.mxu0 0.0
    %2441 = vmatprep.subr.mxu0 0.0
    %2442 = vmatpush1.msra.mxu0 0.0
    %2443 = vmatprep.subr.mxu0 0.0
    %2444 = vmatpush1.msra.mxu0 0.0
    %2445 = vmatprep.subr.mxu0 0.0
    %2446 = vmatpush1.msra.mxu0 0.0
    %2447 = vmatprep.subr.mxu0 0.0
    %2448 = vmatpush1.msra.mxu0 0.0
    %2449 = vmatprep.subr.mxu0 0.0
    %2450 = vmatpush1.msra.mxu0 0.0
    %2451 = vmatprep.subr.mxu0 0.0
    %2452 = vmatpush1.msra.mxu0 0.0
    %2453 = vmatprep.subr.mxu0 0.0
    %2454 = vmatpush1.msra.mxu0 0.0
    %2455 = vmatprep.subr.mxu0 0.0
    %2456 = vmatpush1.msra.mxu0 0.0
    %2457 = vmatprep.subr.mxu0 0.0
    %2458 = vmatpush1.msra.mxu0 0.0
    %2459 = vmatprep.subr.mxu0 0.0
    %2460 = vmatpush1.msra.mxu0 0.0
    %2461 = vmatprep.subr.mxu0 0.0
    %2462 = vmatpush1.msra.mxu0 0.0
    %2463 = vmatprep.subr.mxu0 0.0
    %2464 = vmatpush1.msra.mxu0 0.0
    %2465 = vmatprep.mubr.f32.mxu0 0.0
    %2466 = vmatmul.mubr.f32.gmra.mrb[0].mxu0 %v2399
    %v2467 = vpop.f32.mrb[0].mxu0
    %v2468 = vadd.f32 %v2170, %v2467
    %v2469 = vpop.f32.mrb[0].mxu0
    %2470 = vdwg.mxu0
    %v2471 = vrot.slane %v1927, 4
    %v2472 = vsel %vm624, %v2471, 0
    %2474 = vmatprep.subr.mxu0 0.0
    %2475 = vmatpush1.msra.mxu0 %v2173
    %2476 = vmatprep.subr.mxu0 0.0
    %2477 = vmatpush1.msra.mxu0 %v2174
    %2478 = vmatprep.subr.mxu0 0.0
    %2479 = vmatpush1.msra.mxu0 %v2175
    %2480 = vmatprep.subr.mxu0 0.0
    %2481 = vmatpush1.msra.mxu0 %v2176
    %2482 = vmatprep.subr.mxu0 0.0
    %2483 = vmatpush1.msra.mxu0 0.0
    %2484 = vmatprep.subr.mxu0 0.0
    %2485 = vmatpush1.msra.mxu0 0.0
    %2486 = vmatprep.subr.mxu0 0.0
    %2487 = vmatpush1.msra.mxu0 0.0
    %2488 = vmatprep.subr.mxu0 0.0
    %2489 = vmatpush1.msra.mxu0 0.0
    %2490 = vmatprep.subr.mxu0 0.0
    %2491 = vmatpush1.msra.mxu0 0.0
    %2492 = vmatprep.subr.mxu0 0.0
    %2493 = vmatpush1.msra.mxu0 0.0
    %2494 = vmatprep.subr.mxu0 0.0
    %2495 = vmatpush1.msra.mxu0 0.0
    %2496 = vmatprep.subr.mxu0 0.0
    %2497 = vmatpush1.msra.mxu0 0.0
    %2498 = vmatprep.subr.mxu0 0.0
    %2499 = vmatpush1.msra.mxu0 0.0
    %2500 = vmatprep.subr.mxu0 0.0
    %2501 = vmatpush1.msra.mxu0 0.0
    %2502 = vmatprep.subr.mxu0 0.0
    %2503 = vmatpush1.msra.mxu0 0.0
    %2504 = vmatprep.subr.mxu0 0.0
    %2505 = vmatpush1.msra.mxu0 0.0
    %2506 = vmatprep.subr.mxu0 0.0
    %2507 = vmatpush1.msra.mxu0 0.0
    %2508 = vmatprep.subr.mxu0 0.0
    %2509 = vmatpush1.msra.mxu0 0.0
    %2510 = vmatprep.subr.mxu0 0.0
    %2511 = vmatpush1.msra.mxu0 0.0
    %2512 = vmatprep.subr.mxu0 0.0
    %2513 = vmatpush1.msra.mxu0 0.0
    %2514 = vmatprep.subr.mxu0 0.0
    %2515 = vmatpush1.msra.mxu0 0.0
    %2516 = vmatprep.subr.mxu0 0.0
    %2517 = vmatpush1.msra.mxu0 0.0
    %2518 = vmatprep.subr.mxu0 0.0
    %2519 = vmatpush1.msra.mxu0 0.0
    %2520 = vmatprep.subr.mxu0 0.0
    %2521 = vmatpush1.msra.mxu0 0.0
    %2522 = vmatprep.subr.mxu0 0.0
    %2523 = vmatpush1.msra.mxu0 0.0
    %2524 = vmatprep.subr.mxu0 0.0
    %2525 = vmatpush1.msra.mxu0 0.0
    %2526 = vmatprep.subr.mxu0 0.0
    %2527 = vmatpush1.msra.mxu0 0.0
    %2528 = vmatprep.subr.mxu0 0.0
    %2529 = vmatpush1.msra.mxu0 0.0
    %2530 = vmatprep.subr.mxu0 0.0
    %2531 = vmatpush1.msra.mxu0 0.0
    %2532 = vmatprep.subr.mxu0 0.0
    %2533 = vmatpush1.msra.mxu0 0.0
    %2534 = vmatprep.subr.mxu0 0.0
    %2535 = vmatpush1.msra.mxu0 0.0
    %2536 = vmatprep.subr.mxu0 0.0
    %2537 = vmatpush1.msra.mxu0 0.0
    %2538 = vmatprep.mubr.f32.mxu0 0.0
    %2539 = vmatmul.mubr.f32.gmra.mrb[0].mxu0 %v2472
    %v2540 = vpop.f32.mrb[0].mxu0
    %v2541 = vadd.f32 %v2251, %v2540
    %v2542 = vpop.f32.mrb[0].mxu0
    %2543 = vdwg.mxu0
    %v2544 = vadd.f32 %v2323, %v2396
    %v2545 = vadd.f32 %v2468, %v2541
    %v2546 = vadd.f32 %v2544, %v2545
    %v2547 = vlaneseq
    %v2548 = vshrl.u32 %v2547, 7
    %v2549 = vsub.s32 0, %v2548
    %v2550 = vrot.slane %v650, %v2549
    %v2551 = vadd.f32 %v2546, %v2550
    %vm2552 = vcmask 222208
    %2553 = vst.msk [vmem:[#allocation7] sm:$0x3] %vm2552, %v2551
    // Predicated region
    $region22: #{forward.1} parent=1 // pred_check
      _
    $region23: #{forward.1} parent=1 // pred_check_branch
      %2555 = sbr.rel (0) target = $region25
    $region24: #{forward.1} parent=1 // pred_region
      %s2557 = ssub.s32 32, 32
      %2558 = vsyncadd [#allocation4], %s2557
      %s2560 = sshll.u32 [#allocation7], 4
      %s2561 = int_to_ptr.vmem [resolvable:$true] %s2560
      %2563 = dma.vmem_to_hbm [thread:$0]  %s2561, 32, %s3, [#allocation4]
    $region25: #{forward.1} parent=1 // pred_fallthru
      _
    // Predicated region
    $region26: #{forward.1} parent=1 // pred_check
      _
    $region27: #{forward.1} parent=1 // pred_check_branch
      %2565 = sbr.rel (0) target = $region29
    $region28: #{forward.1} parent=1 // pred_region
      %2566 = dma.done [#allocation4], 32
    $region29: #{forward.1} parent=1 // pred_fallthru
      _
    %2567 = vsyncpa [#allocation3], 1
    %2568 = vsyncpa [#allocation4], 1
    %2569 = vsyncpa [#allocation5], 1

</llo_original>
